<compile_context>
chip_gen: v6e
topology: v6e:2x2x1
jax: 0.10.0
libtpu: 0.0.40
codegen_flags: <defaults>
</compile_context>

<pallas_src>
import functools
import math

import jax
import jax.numpy as jnp
from jax import lax
from jax.experimental import pallas as pl
from jax.experimental.pallas import tpu as pltpu

# -------------------- config (small, synthetic) --------------------
D_MODEL = 32
N_HEADS = 4
D_FF = 64
N_LAYERS = 2
LN_EPS = 1e-5
NEG_INF = -1e9


# -------------------- in-kernel helpers --------------------
def _layernorm(x, gamma, beta, eps=LN_EPS):
    mean = jnp.mean(x, axis=-1, keepdims=True)
    var = jnp.mean((x - mean) ** 2, axis=-1, keepdims=True)
    return (x - mean) * lax.rsqrt(var + eps) * gamma + beta


# -------------------- fused whole-encoder kernel --------------------
def fused_encoder_kernel(x_ref, bias_ref, pos_ref, inln_ref,
                         wqkv_ref, bqkv_ref, wo_ref,
                         w1_ref, b1_ref, w2_ref, vec_ref,
                         o_ref, *, batch, seq, num_heads, n_layers):
    # x_ref   : (1, B*S, D)  activations of one stream (all batch samples
    #                        stacked along sublanes)
    # bias_ref: (1, B, S)    additive key-padding bias per sample
    # pos_ref : (B*S, D)     sinusoid positional embedding, pre-tiled over B
    # inln_ref: (1, 2, D)    [gamma; beta] of the stream's input LayerNorm
    # weight stacks are (1, L, ...) -- VMEM resident for the whole kernel.
    D = x_ref.shape[-1]
    dk = D // num_heads

    x = x_ref[0]                                      # (B*S, D) f32
    bias_all = bias_ref[0]                            # (B, S)
    gamma_in = inln_ref[0, 0:1, :]                    # (1, D)
    beta_in = inln_ref[0, 1:2, :]

    # Input LayerNorm + positional embedding (fused; no separate launch).
    x = _layernorm(x, gamma_in, beta_in) + pos_ref[...]

    for l in range(n_layers):
        vecs = vec_ref[0, l]                          # (6, D) per-layer vectors
        bo, mh_g, mh_b = vecs[0:1, :], vecs[1:2, :], vecs[2:3, :]
        b2, ff_g, ff_b = vecs[3:4, :], vecs[4:5, :], vecs[5:6, :]

        # ---------- self-attention sublayer (residual + LayerNorm) ----------
        # One fused QKV matmul for all samples; 1/sqrt(dk) already folded into
        # the Q columns / bias at pack time.
        qkv = (jnp.dot(x, wqkv_ref[0, l], preferred_element_type=jnp.float32)
               + bqkv_ref[0, l])                      # (B*S, 3D)

        ctx_rows = []
        for b in range(batch):                        # per-sample attention only
            qkv_b = qkv[b * seq:(b + 1) * seq, :]     # (S, 3D) static slice
            key_bias = bias_all[b:b + 1, :]           # (1, S) -> broadcasts (Sq, Sk)
            head_ctx = []
            for h in range(num_heads):
                qh = qkv_b[:, h * dk:(h + 1) * dk]
                kh = qkv_b[:, D + h * dk:D + (h + 1) * dk]
                vh = qkv_b[:, 2 * D + h * dk:2 * D + (h + 1) * dk]
                # q . k^T via dot_general dimension numbers (no explicit transpose)
                s = lax.dot_general(qh, kh, (((1,), (1,)), ((), ())),
                                    preferred_element_type=jnp.float32)
                s = s + key_bias
                s = s - jnp.max(s, axis=-1, keepdims=True)
                e = jnp.exp(s)
                att = e * pl.reciprocal(jnp.sum(e, axis=-1, keepdims=True),
                                        approx=True)
                head_ctx.append(jnp.dot(att, vh,
                                        preferred_element_type=jnp.float32))
            ctx_rows.append(jnp.concatenate(head_ctx, axis=-1))   # (S, D)
        ctx = jnp.concatenate(ctx_rows, axis=0)                   # (B*S, D)

        attn = jnp.dot(ctx, wo_ref[0, l],
                       preferred_element_type=jnp.float32) + bo
        x = _layernorm(x + attn, mh_g, mh_b)

        # ---------- position-wise feed-forward sublayer ----------
        hdn = (jnp.dot(x, w1_ref[0, l], preferred_element_type=jnp.float32)
               + b1_ref[0, l])
        hdn = jnp.maximum(hdn, 0.0)                   # ReLU
        y = jnp.dot(hdn, w2_ref[0, l], preferred_element_type=jnp.float32) + b2
        x = _layernorm(x + y, ff_g, ff_b)

    o_ref[0] = x.astype(o_ref.dtype)


# -------------------- BlockSpec helpers --------------------
def _stream_spec(shape):
    nd = len(shape)
    return pl.BlockSpec((1,) + tuple(shape[1:]),
                        lambda s, _n=nd: (s,) + (0,) * (_n - 1))


def _const_spec(shape):
    nd = len(shape)
    return pl.BlockSpec(tuple(shape), lambda s, _n=nd: (0,) * _n)


def encode_streams(x, bias, pos, packed, *, batch, seq, num_heads, n_layers):
    """Run both streams' full encoders (input LN+pos, then n_layers of
    self-attention + FFN) in a single fused pallas_call, gridded over streams."""
    n_streams, BS, D = x.shape
    kernel = functools.partial(fused_encoder_kernel, batch=batch, seq=seq,
                               num_heads=num_heads, n_layers=n_layers)
    in_specs = ([_stream_spec(x.shape), _stream_spec(bias.shape),
                 _const_spec(pos.shape)]
                + [_stream_spec(w.shape) for w in packed])
    return pl.pallas_call(
        kernel,
        out_shape=jax.ShapeDtypeStruct((n_streams, BS, D), jnp.float32),
        grid=(n_streams,),
        in_specs=in_specs,
        out_specs=pl.BlockSpec((1, BS, D), lambda s: (s, 0, 0)),
        compiler_params=pltpu.CompilerParams(
            dimension_semantics=("parallel",)),       # maps to v7x's 2 TCs
    )(x, bias, pos, *packed)


# -------------------- parameter packing --------------------
def pack_stream_params(in_g, in_b, layer_list, num_heads):
    """Pack one stream's params into a few dense (L, ...) buffers.
    Fuses Wq|Wk|Wv (with 1/sqrt(dk) folded into the Q part) and gathers all
    per-layer D-wide vectors into a single (L, 6, D) array."""
    d_model = layer_list[0]["mhatt"]["wq"].shape[0]
    scale = 1.0 / math.sqrt(d_model // num_heads)

    wqkv = jnp.stack([jnp.concatenate(
        [p["mhatt"]["wq"] * scale, p["mhatt"]["wk"], p["mhatt"]["wv"]], axis=1)
        for p in layer_list], axis=0)                                 # (L, D, 3D)
    bqkv = jnp.stack([jnp.concatenate(
        [p["mhatt"]["bq"] * scale, p["mhatt"]["bk"], p["mhatt"]["bv"]], axis=1)
        for p in layer_list], axis=0)                                 # (L, 1, 3D)
    wo = jnp.stack([p["mhatt"]["wo"] for p in layer_list], axis=0)    # (L, D, D)
    w1 = jnp.stack([p["pwff"]["w1"] for p in layer_list], axis=0)     # (L, D, Dff)
    b1 = jnp.stack([p["pwff"]["b1"] for p in layer_list], axis=0)     # (L, 1, Dff)
    w2 = jnp.stack([p["pwff"]["w2"] for p in layer_list], axis=0)     # (L, Dff, D)
    vec = jnp.stack([jnp.concatenate(
        [p["mhatt"]["bo"], p["mhatt"]["ln_g"], p["mhatt"]["ln_b"],
         p["pwff"]["b2"], p["pwff"]["ln_g"], p["pwff"]["ln_b"]], axis=0)
        for p in layer_list], axis=0)                                 # (L, 6, D)
    inln = jnp.concatenate([in_g, in_b], axis=0)                      # (2, D)
    return inln, wqkv, bqkv, wo, w1, b1, w2, vec


def sinusoid_positional_embedding(seq_len, d_model):
    pos = jnp.arange(seq_len, dtype=jnp.float32)[:, None]
    i = jnp.arange(d_model // 2, dtype=jnp.float32)[None, :]
    angle = pos / jnp.power(10000.0, 2.0 * i / d_model)
    pe = jnp.zeros((seq_len, d_model), dtype=jnp.float32)
    pe = pe.at[:, 0::2].set(jnp.sin(angle))
    pe = pe.at[:, 1::2].set(jnp.cos(angle))
    return pe


def init_encoder_layer_params(key, d_model, d_ff):
    ks = jax.random.split(key, 6)
    scale = 0.02
    mhatt = {
        "wq": scale * jax.random.normal(ks[0], (d_model, d_model), jnp.float32),
        "bq": jnp.zeros((1, d_model), jnp.float32),
        "wk": scale * jax.random.normal(ks[1], (d_model, d_model), jnp.float32),
        "bk": jnp.zeros((1, d_model), jnp.float32),
        "wv": scale * jax.random.normal(ks[2], (d_model, d_model), jnp.float32),
        "bv": jnp.zeros((1, d_model), jnp.float32),
        "wo": scale * jax.random.normal(ks[3], (d_model, d_model), jnp.float32),
        "bo": jnp.zeros((1, d_model), jnp.float32),
        "ln_g": jnp.ones((1, d_model), jnp.float32),
        "ln_b": jnp.zeros((1, d_model), jnp.float32),
    }
    pwff = {
        "w1": scale * jax.random.normal(ks[4], (d_model, d_ff), jnp.float32),
        "b1": jnp.zeros((1, d_ff), jnp.float32),
        "w2": scale * jax.random.normal(ks[5], (d_ff, d_model), jnp.float32),
        "b2": jnp.zeros((1, d_model), jnp.float32),
        "ln_g": jnp.ones((1, d_model), jnp.float32),
        "ln_b": jnp.zeros((1, d_model), jnp.float32),
    }
    return {"mhatt": mhatt, "pwff": pwff}


def init_cross_modality_params(key, d_model, d_ff, n_layers):
    # Only the sublayers that contribute to the output are instantiated; the
    # cross-attention sublayers in the reference are dead code (outputs
    # overwritten before use).
    keys = jax.random.split(key, 2 * n_layers)
    params = {
        "vision_ln_g": jnp.ones((1, d_model), jnp.float32),
        "vision_ln_b": jnp.zeros((1, d_model), jnp.float32),
        "language_ln_g": jnp.ones((1, d_model), jnp.float32),
        "language_ln_b": jnp.zeros((1, d_model), jnp.float32),
        "v_layers": [], "l_layers": [],
    }
    idx = 0
    for _ in range(n_layers):
        params["v_layers"].append(init_encoder_layer_params(keys[idx], d_model, d_ff)); idx += 1
        params["l_layers"].append(init_encoder_layer_params(keys[idx], d_model, d_ff)); idx += 1
    return params


# -------------------- top-level encoder --------------------
def cross_modality_encoder(params, vision_features, vision_padding_mask,
                           language_features, language_padding_mask):
    """vision_features: (B, Sv, D); language_features: (B, Sl, D);
    padding masks: boolean (B, S), True == padded token."""
    B, Sv, D = vision_features.shape
    Sl = language_features.shape[1]
    S = max(Sv, Sl)   # pad the shorter stream so both share one kernel

    def pad_seq(x):
        pad = S - x.shape[1]
        return x if pad == 0 else jnp.pad(x, ((0, 0), (0, pad), (0, 0)))

    def pad_mask(m):
        pad = S - m.shape[1]
        return m if pad == 0 else jnp.pad(m, ((0, 0), (0, pad)),
                                          constant_values=True)

    # (2, B*S, D) activations: streams stacked, batch stacked along sublanes.
    x_comb = jnp.stack([pad_seq(vision_features), pad_seq(language_features)],
                       axis=0).reshape(2, B * S, D)

    # additive key-padding biases, (2, B, S); padded-to-S positions are masked.
    bias = jnp.stack([pad_mask(vision_padding_mask),
                      pad_mask(language_padding_mask)],
                     axis=0).astype(jnp.float32) * NEG_INF

    pos = jnp.tile(sinusoid_positional_embedding(S, D), (B, 1))    # (B*S, D)

    v_pack = pack_stream_params(params["vision_ln_g"], params["vision_ln_b"],
                                params["v_layers"], N_HEADS)
    l_pack = pack_stream_params(params["language_ln_g"], params["language_ln_b"],
                                params["l_layers"], N_HEADS)
    packed = tuple(jnp.stack([a, b], axis=0) for a, b in zip(v_pack, l_pack))

    out = encode_streams(x_comb, bias, pos, packed, batch=B, seq=S,
                         num_heads=N_HEADS, n_layers=N_LAYERS)
    out = out.reshape(2, B, S, D)
    return out[0, :, :Sv, :], out[1, :, :Sl, :]


# -------------------- pure-JAX reference (correctness gate) --------------------
def _reference_forward(params, vision_features, vision_padding_mask,
                       language_features, language_padding_mask):
    def ln(x, g, b):
        mean = jnp.mean(x, -1, keepdims=True)
        var = jnp.mean((x - mean) ** 2, -1, keepdims=True)
        return (x - mean) / jnp.sqrt(var + LN_EPS) * g + b

    def mha(x, bias, p):
        B, S, D = x.shape
        dk = D // N_HEADS
        q = (x @ p["wq"] + p["bq"]).reshape(B, S, N_HEADS, dk).transpose(0, 2, 1, 3)
        k = (x @ p["wk"] + p["bk"]).reshape(B, S, N_HEADS, dk).transpose(0, 2, 1, 3)
        v = (x @ p["wv"] + p["bv"]).reshape(B, S, N_HEADS, dk).transpose(0, 2, 1, 3)
        s = jnp.einsum("bhqd,bhkd->bhqk", q, k) / math.sqrt(dk)
        s = s + bias[:, None, :, :]
        att = jax.nn.softmax(s, axis=-1)
        ctx = jnp.einsum("bhqk,bhkd->bhqd", att, v).transpose(0, 2, 1, 3).reshape(B, S, D)
        return ln(x + ctx @ p["wo"] + p["bo"], p["ln_g"], p["ln_b"])

    def pff(x, p):
        h = jnp.maximum(x @ p["w1"] + p["b1"], 0.0)
        return ln(x + h @ p["w2"] + p["b2"], p["ln_g"], p["ln_b"])

    _, Sv, D = vision_features.shape
    Sl = language_features.shape[1]
    v_bias = (vision_padding_mask.astype(jnp.float32) * NEG_INF)[:, None, :]
    l_bias = (language_padding_mask.astype(jnp.float32) * NEG_INF)[:, None, :]

    v = ln(vision_features, params["vision_ln_g"], params["vision_ln_b"]) \
        + sinusoid_positional_embedding(Sv, D)
    l = ln(language_features, params["language_ln_g"], params["language_ln_b"]) \
        + sinusoid_positional_embedding(Sl, D)
    for li in range(N_LAYERS):
        v = pff(mha(v, v_bias, params["v_layers"][li]["mhatt"]),
                params["v_layers"][li]["pwff"])
        l = pff(mha(l, l_bias, params["l_layers"][li]["mhatt"]),
                params["l_layers"][li]["pwff"])
    return v, l


# -------------------- main --------------------
if __name__ == "__main__":
    B, Sv, Sl = 2, 16, 8

    root = jax.random.PRNGKey(0)
    k_params, k_vis, k_lang = jax.random.split(root, 3)

    params = init_cross_modality_params(k_params, D_MODEL, D_FF, N_LAYERS)

    vision_features = jax.random.normal(k_vis, (B, Sv, D_MODEL), jnp.float32)
    language_features = jax.random.normal(k_lang, (B, Sl, D_MODEL), jnp.float32)

    # True == padded token
    vision_padding_mask = jnp.zeros((B, Sv), dtype=bool)
    language_padding_mask = jnp.zeros((B, Sl), dtype=bool)
    language_padding_mask = language_padding_mask.at[1, Sl - 2:].set(True)

    encoder = jax.jit(cross_modality_encoder)
    vision_out, language_out = encoder(
        params, vision_features, vision_padding_mask,
        language_features, language_padding_mask)
    jax.block_until_ready((vision_out, language_out))

    # correctness gate vs pure-JAX reference (covers approx-reciprocal softmax,
    # folded attention scale, fused QKV, stream/batch stacking and seq padding)
    v_ref, l_ref = _reference_forward(
        params, vision_features, vision_padding_mask,
        language_features, language_padding_mask)

    assert vision_out.shape == (B, Sv, D_MODEL)
    assert language_out.shape == (B, Sl, D_MODEL)
    assert bool(jnp.all(jnp.isfinite(vision_out)))
    assert bool(jnp.all(jnp.isfinite(language_out)))
    assert bool(jnp.allclose(vision_out, v_ref, atol=1e-2, rtol=1e-2))
    assert bool(jnp.allclose(language_out, l_ref, atol=1e-2, rtol=1e-2))
    print("KERNEL_OK")
</pallas_src>

<mosaic_0001>
module attributes {stable_mosaic.version = 11 : i64} {
  func.func @fused_encoder_kernel(%arg0: i32, %arg1: memref<1x32x32xf32, #tpu.memory_space<vmem>>, %arg2: memref<1x2x16xf32, #tpu.memory_space<vmem>>, %arg3: memref<32x32xf32, #tpu.memory_space<vmem>>, %arg4: memref<1x2x32xf32, #tpu.memory_space<vmem>>, %arg5: memref<1x2x32x96xf32, #tpu.memory_space<vmem>>, %arg6: memref<1x2x1x96xf32, #tpu.memory_space<vmem>>, %arg7: memref<1x2x32x32xf32, #tpu.memory_space<vmem>>, %arg8: memref<1x2x32x64xf32, #tpu.memory_space<vmem>>, %arg9: memref<1x2x1x64xf32, #tpu.memory_space<vmem>>, %arg10: memref<1x2x64x32xf32, #tpu.memory_space<vmem>>, %arg11: memref<1x2x6x32xf32, #tpu.memory_space<vmem>>, %arg12: memref<1x32x32xf32, #tpu.memory_space<vmem>>) attributes {dimension_semantics = [#tpu.dimension_semantics<parallel>], iteration_bounds = array<i64: 2>, scalar_prefetch = 0 : i64, scratch_operands = 0 : i64, tpu.core_type = #tpu.core_type<tc>, window_params = [{transform_indices = @transform_0, window_bounds = array<i64: 1, 32, 32>}, {transform_indices = @transform_1, window_bounds = array<i64: 1, 2, 16>}, {pipeline_mode = #tpu.pipeline_mode<synchronous>, transform_indices = @transform_2, window_bounds = array<i64: 32, 32>}, {transform_indices = @transform_3, window_bounds = array<i64: 1, 2, 32>}, {transform_indices = @transform_4, window_bounds = array<i64: 1, 2, 32, 96>}, {transform_indices = @transform_5, window_bounds = array<i64: 1, 2, 1, 96>}, {transform_indices = @transform_6, window_bounds = array<i64: 1, 2, 32, 32>}, {transform_indices = @transform_7, window_bounds = array<i64: 1, 2, 32, 64>}, {transform_indices = @transform_8, window_bounds = array<i64: 1, 2, 1, 64>}, {transform_indices = @transform_9, window_bounds = array<i64: 1, 2, 64, 32>}, {transform_indices = @transform_10, window_bounds = array<i64: 1, 2, 6, 32>}, {transform_indices = @transform_11, window_bounds = array<i64: 1, 32, 32>}]} {
    %c0 = arith.constant 0 : index
    %c0_0 = arith.constant 0 : index
    %c0_1 = arith.constant 0 : index
    %0 = vector.load %arg1[%c0, %c0_0, %c0_1] : memref<1x32x32xf32, #tpu.memory_space<vmem>>, vector<1x32x32xf32>
    %1 = vector.shape_cast %0 : vector<1x32x32xf32> to vector<32x32xf32>
    %c0_2 = arith.constant 0 : index
    %c0_3 = arith.constant 0 : index
    %c0_4 = arith.constant 0 : index
    %2 = vector.load %arg2[%c0_2, %c0_3, %c0_4] : memref<1x2x16xf32, #tpu.memory_space<vmem>>, vector<1x2x16xf32>
    %3 = vector.shape_cast %2 : vector<1x2x16xf32> to vector<2x16xf32>
    %c0_5 = arith.constant 0 : index
    %c0_6 = arith.constant 0 : index
    %c0_7 = arith.constant 0 : index
    %4 = vector.load %arg4[%c0_5, %c0_6, %c0_7] : memref<1x2x32xf32, #tpu.memory_space<vmem>>, vector<1x1x32xf32>
    %5 = vector.shape_cast %4 : vector<1x1x32xf32> to vector<1x32xf32>
    %c0_8 = arith.constant 0 : index
    %c1 = arith.constant 1 : index
    %c0_9 = arith.constant 0 : index
    %6 = vector.load %arg4[%c0_8, %c1, %c0_9] : memref<1x2x32xf32, #tpu.memory_space<vmem>>, vector<1x1x32xf32>
    %7 = vector.shape_cast %6 : vector<1x1x32xf32> to vector<1x32xf32>
    %cst = arith.constant dense<0.000000e+00> : vector<32xf32>
    %8 = vector.multi_reduction <add>, %1, %cst [1] : vector<32x32xf32> to vector<32xf32>
    %9 = vector.shape_cast %8 : vector<32xf32> to vector<32x1xf32>
    %cst_10 = arith.constant 3.200000e+01 : f32
    %10 = vector.broadcast %cst_10 : f32 to vector<32x1xf32>
    %11 = arith.divf %9, %10 : vector<32x1xf32>
    %12 = vector.broadcast %11 : vector<32x1xf32> to vector<32x32xf32>
    %13 = arith.subf %1, %12 : vector<32x32xf32>
    %14 = arith.mulf %13, %13 : vector<32x32xf32>
    %cst_11 = arith.constant dense<0.000000e+00> : vector<32xf32>
    %15 = vector.multi_reduction <add>, %14, %cst_11 [1] : vector<32x32xf32> to vector<32xf32>
    %16 = vector.shape_cast %15 : vector<32xf32> to vector<32x1xf32>
    %cst_12 = arith.constant 3.200000e+01 : f32
    %17 = vector.broadcast %cst_12 : f32 to vector<32x1xf32>
    %18 = arith.divf %16, %17 : vector<32x1xf32>
    %19 = vector.broadcast %11 : vector<32x1xf32> to vector<32x32xf32>
    %20 = arith.subf %1, %19 : vector<32x32xf32>
    %cst_13 = arith.constant 9.99999974E-6 : f32
    %21 = vector.broadcast %cst_13 : f32 to vector<32x1xf32>
    %22 = arith.addf %18, %21 : vector<32x1xf32>
    %23 = math.rsqrt %22 : vector<32x1xf32>
    %24 = vector.broadcast %23 : vector<32x1xf32> to vector<32x32xf32>
    %25 = arith.mulf %20, %24 : vector<32x32xf32>
    %26 = vector.broadcast %5 : vector<1x32xf32> to vector<32x32xf32>
    %27 = arith.mulf %25, %26 : vector<32x32xf32>
    %28 = vector.broadcast %7 : vector<1x32xf32> to vector<32x32xf32>
    %29 = arith.addf %27, %28 : vector<32x32xf32>
    %c0_14 = arith.constant 0 : index
    %c0_15 = arith.constant 0 : index
    %30 = vector.load %arg3[%c0_14, %c0_15] : memref<32x32xf32, #tpu.memory_space<vmem>>, vector<32x32xf32>
    %31 = arith.addf %29, %30 : vector<32x32xf32>
    %c0_16 = arith.constant 0 : index
    %c0_17 = arith.constant 0 : index
    %c0_18 = arith.constant 0 : index
    %c0_19 = arith.constant 0 : index
    %32 = vector.load %arg11[%c0_16, %c0_17, %c0_18, %c0_19] : memref<1x2x6x32xf32, #tpu.memory_space<vmem>>, vector<1x1x6x32xf32>
    %33 = vector.shape_cast %32 : vector<1x1x6x32xf32> to vector<6x32xf32>
    %34 = vector.extract_strided_slice %33 {offsets = [0, 0], sizes = [1, 32], strides = [1, 1]} : vector<6x32xf32> to vector<1x32xf32>
    %35 = vector.extract_strided_slice %33 {offsets = [1, 0], sizes = [1, 32], strides = [1, 1]} : vector<6x32xf32> to vector<1x32xf32>
    %36 = vector.extract_strided_slice %33 {offsets = [2, 0], sizes = [1, 32], strides = [1, 1]} : vector<6x32xf32> to vector<1x32xf32>
    %37 = vector.extract_strided_slice %33 {offsets = [3, 0], sizes = [1, 32], strides = [1, 1]} : vector<6x32xf32> to vector<1x32xf32>
    %38 = vector.extract_strided_slice %33 {offsets = [4, 0], sizes = [1, 32], strides = [1, 1]} : vector<6x32xf32> to vector<1x32xf32>
    %39 = vector.extract_strided_slice %33 {offsets = [5, 0], sizes = [1, 32], strides = [1, 1]} : vector<6x32xf32> to vector<1x32xf32>
    %c0_20 = arith.constant 0 : index
    %c0_21 = arith.constant 0 : index
    %c0_22 = arith.constant 0 : index
    %c0_23 = arith.constant 0 : index
    %40 = vector.load %arg5[%c0_20, %c0_21, %c0_22, %c0_23] : memref<1x2x32x96xf32, #tpu.memory_space<vmem>>, vector<1x1x32x96xf32>
    %41 = vector.shape_cast %40 : vector<1x1x32x96xf32> to vector<32x96xf32>
    %cst_24 = arith.constant dense<0.000000e+00> : vector<32x96xf32>
    %42 = tpu.matmul %31, %41, %cst_24 {dimension_numbers = #tpu.dot_dimension_numbers<[1], [0], [0], [1], [0, 0, 1, 1], [], []>} : vector<32x32xf32>, vector<32x96xf32>, vector<32x96xf32> -> vector<32x96xf32>
    %c0_25 = arith.constant 0 : index
    %c0_26 = arith.constant 0 : index
    %c0_27 = arith.constant 0 : index
    %c0_28 = arith.constant 0 : index
    %43 = vector.load %arg6[%c0_25, %c0_26, %c0_27, %c0_28] : memref<1x2x1x96xf32, #tpu.memory_space<vmem>>, vector<1x1x1x96xf32>
    %44 = vector.shape_cast %43 : vector<1x1x1x96xf32> to vector<1x96xf32>
    %45 = vector.broadcast %44 : vector<1x96xf32> to vector<32x96xf32>
    %46 = arith.addf %42, %45 : vector<32x96xf32>
    %47 = vector.extract_strided_slice %46 {offsets = [0, 0], sizes = [16, 96], strides = [1, 1]} : vector<32x96xf32> to vector<16x96xf32>
    %48 = vector.extract_strided_slice %3 {offsets = [0, 0], sizes = [1, 16], strides = [1, 1]} : vector<2x16xf32> to vector<1x16xf32>
    %49 = vector.extract_strided_slice %47 {offsets = [0, 0], sizes = [16, 8], strides = [1, 1]} : vector<16x96xf32> to vector<16x8xf32>
    %50 = vector.extract_strided_slice %47 {offsets = [0, 32], sizes = [16, 8], strides = [1, 1]} : vector<16x96xf32> to vector<16x8xf32>
    %51 = vector.extract_strided_slice %47 {offsets = [0, 64], sizes = [16, 8], strides = [1, 1]} : vector<16x96xf32> to vector<16x8xf32>
    %cst_29 = arith.constant dense<0.000000e+00> : vector<16x16xf32>
    %52 = tpu.matmul %49, %50, %cst_29 {dimension_numbers = #tpu.dot_dimension_numbers<[1], [1], [0], [0], [0, 0, 1, 0], [], []>} : vector<16x8xf32>, vector<16x8xf32>, vector<16x16xf32> -> vector<16x16xf32>
    %53 = vector.broadcast %48 : vector<1x16xf32> to vector<16x16xf32>
    %54 = arith.addf %52, %53 : vector<16x16xf32>
    %cst_30 = arith.constant dense<0xFF800000> : vector<16xf32>
    %55 = vector.multi_reduction <maximumf>, %54, %cst_30 [1] : vector<16x16xf32> to vector<16xf32>
    %56 = vector.shape_cast %55 : vector<16xf32> to vector<16x1xf32>
    %57 = vector.broadcast %56 : vector<16x1xf32> to vector<16x16xf32>
    %58 = arith.subf %54, %57 : vector<16x16xf32>
    %59 = math.exp %58 : vector<16x16xf32>
    %cst_31 = arith.constant dense<0.000000e+00> : vector<16xf32>
    %60 = vector.multi_reduction <add>, %59, %cst_31 [1] : vector<16x16xf32> to vector<16xf32>
    %61 = vector.shape_cast %60 : vector<16xf32> to vector<16x1xf32>
    %62 = tpu.reciprocal %61 {approx = true} : vector<16x1xf32> -> vector<16x1xf32>
    %63 = vector.broadcast %62 : vector<16x1xf32> to vector<16x16xf32>
    %64 = arith.mulf %59, %63 : vector<16x16xf32>
    %cst_32 = arith.constant dense<0.000000e+00> : vector<16x8xf32>
    %65 = tpu.matmul %64, %51, %cst_32 {dimension_numbers = #tpu.dot_dimension_numbers<[1], [0], [0], [1], [0, 0, 1, 1], [], []>} : vector<16x16xf32>, vector<16x8xf32>, vector<16x8xf32> -> vector<16x8xf32>
    %66 = vector.extract_strided_slice %47 {offsets = [0, 8], sizes = [16, 8], strides = [1, 1]} : vector<16x96xf32> to vector<16x8xf32>
    %67 = vector.extract_strided_slice %47 {offsets = [0, 40], sizes = [16, 8], strides = [1, 1]} : vector<16x96xf32> to vector<16x8xf32>
    %68 = vector.extract_strided_slice %47 {offsets = [0, 72], sizes = [16, 8], strides = [1, 1]} : vector<16x96xf32> to vector<16x8xf32>
    %cst_33 = arith.constant dense<0.000000e+00> : vector<16x16xf32>
    %69 = tpu.matmul %66, %67, %cst_33 {dimension_numbers = #tpu.dot_dimension_numbers<[1], [1], [0], [0], [0, 0, 1, 0], [], []>} : vector<16x8xf32>, vector<16x8xf32>, vector<16x16xf32> -> vector<16x16xf32>
    %70 = vector.broadcast %48 : vector<1x16xf32> to vector<16x16xf32>
    %71 = arith.addf %69, %70 : vector<16x16xf32>
    %cst_34 = arith.constant dense<0xFF800000> : vector<16xf32>
    %72 = vector.multi_reduction <maximumf>, %71, %cst_34 [1] : vector<16x16xf32> to vector<16xf32>
    %73 = vector.shape_cast %72 : vector<16xf32> to vector<16x1xf32>
    %74 = vector.broadcast %73 : vector<16x1xf32> to vector<16x16xf32>
    %75 = arith.subf %71, %74 : vector<16x16xf32>
    %76 = math.exp %75 : vector<16x16xf32>
    %cst_35 = arith.constant dense<0.000000e+00> : vector<16xf32>
    %77 = vector.multi_reduction <add>, %76, %cst_35 [1] : vector<16x16xf32> to vector<16xf32>
    %78 = vector.shape_cast %77 : vector<16xf32> to vector<16x1xf32>
    %79 = tpu.reciprocal %78 {approx = true} : vector<16x1xf32> -> vector<16x1xf32>
    %80 = vector.broadcast %79 : vector<16x1xf32> to vector<16x16xf32>
    %81 = arith.mulf %76, %80 : vector<16x16xf32>
    %cst_36 = arith.constant dense<0.000000e+00> : vector<16x8xf32>
    %82 = tpu.matmul %81, %68, %cst_36 {dimension_numbers = #tpu.dot_dimension_numbers<[1], [0], [0], [1], [0, 0, 1, 1], [], []>} : vector<16x16xf32>, vector<16x8xf32>, vector<16x8xf32> -> vector<16x8xf32>
    %83 = vector.extract_strided_slice %47 {offsets = [0, 16], sizes = [16, 8], strides = [1, 1]} : vector<16x96xf32> to vector<16x8xf32>
    %84 = vector.extract_strided_slice %47 {offsets = [0, 48], sizes = [16, 8], strides = [1, 1]} : vector<16x96xf32> to vector<16x8xf32>
    %85 = vector.extract_strided_slice %47 {offsets = [0, 80], sizes = [16, 8], strides = [1, 1]} : vector<16x96xf32> to vector<16x8xf32>
    %cst_37 = arith.constant dense<0.000000e+00> : vector<16x16xf32>
    %86 = tpu.matmul %83, %84, %cst_37 {dimension_numbers = #tpu.dot_dimension_numbers<[1], [1], [0], [0], [0, 0, 1, 0], [], []>} : vector<16x8xf32>, vector<16x8xf32>, vector<16x16xf32> -> vector<16x16xf32>
    %87 = vector.broadcast %48 : vector<1x16xf32> to vector<16x16xf32>
    %88 = arith.addf %86, %87 : vector<16x16xf32>
    %cst_38 = arith.constant dense<0xFF800000> : vector<16xf32>
    %89 = vector.multi_reduction <maximumf>, %88, %cst_38 [1] : vector<16x16xf32> to vector<16xf32>
    %90 = vector.shape_cast %89 : vector<16xf32> to vector<16x1xf32>
    %91 = vector.broadcast %90 : vector<16x1xf32> to vector<16x16xf32>
    %92 = arith.subf %88, %91 : vector<16x16xf32>
    %93 = math.exp %92 : vector<16x16xf32>
    %cst_39 = arith.constant dense<0.000000e+00> : vector<16xf32>
    %94 = vector.multi_reduction <add>, %93, %cst_39 [1] : vector<16x16xf32> to vector<16xf32>
    %95 = vector.shape_cast %94 : vector<16xf32> to vector<16x1xf32>
    %96 = tpu.reciprocal %95 {approx = true} : vector<16x1xf32> -> vector<16x1xf32>
    %97 = vector.broadcast %96 : vector<16x1xf32> to vector<16x16xf32>
    %98 = arith.mulf %93, %97 : vector<16x16xf32>
    %cst_40 = arith.constant dense<0.000000e+00> : vector<16x8xf32>
    %99 = tpu.matmul %98, %85, %cst_40 {dimension_numbers = #tpu.dot_dimension_numbers<[1], [0], [0], [1], [0, 0, 1, 1], [], []>} : vector<16x16xf32>, vector<16x8xf32>, vector<16x8xf32> -> vector<16x8xf32>
    %100 = vector.extract_strided_slice %47 {offsets = [0, 24], sizes = [16, 8], strides = [1, 1]} : vector<16x96xf32> to vector<16x8xf32>
    %101 = vector.extract_strided_slice %47 {offsets = [0, 56], sizes = [16, 8], strides = [1, 1]} : vector<16x96xf32> to vector<16x8xf32>
    %102 = vector.extract_strided_slice %47 {offsets = [0, 88], sizes = [16, 8], strides = [1, 1]} : vector<16x96xf32> to vector<16x8xf32>
    %cst_41 = arith.constant dense<0.000000e+00> : vector<16x16xf32>
    %103 = tpu.matmul %100, %101, %cst_41 {dimension_numbers = #tpu.dot_dimension_numbers<[1], [1], [0], [0], [0, 0, 1, 0], [], []>} : vector<16x8xf32>, vector<16x8xf32>, vector<16x16xf32> -> vector<16x16xf32>
    %104 = vector.broadcast %48 : vector<1x16xf32> to vector<16x16xf32>
    %105 = arith.addf %103, %104 : vector<16x16xf32>
    %cst_42 = arith.constant dense<0xFF800000> : vector<16xf32>
    %106 = vector.multi_reduction <maximumf>, %105, %cst_42 [1] : vector<16x16xf32> to vector<16xf32>
    %107 = vector.shape_cast %106 : vector<16xf32> to vector<16x1xf32>
    %108 = vector.broadcast %107 : vector<16x1xf32> to vector<16x16xf32>
    %109 = arith.subf %105, %108 : vector<16x16xf32>
    %110 = math.exp %109 : vector<16x16xf32>
    %cst_43 = arith.constant dense<0.000000e+00> : vector<16xf32>
    %111 = vector.multi_reduction <add>, %110, %cst_43 [1] : vector<16x16xf32> to vector<16xf32>
    %112 = vector.shape_cast %111 : vector<16xf32> to vector<16x1xf32>
    %113 = tpu.reciprocal %112 {approx = true} : vector<16x1xf32> -> vector<16x1xf32>
    %114 = vector.broadcast %113 : vector<16x1xf32> to vector<16x16xf32>
    %115 = arith.mulf %110, %114 : vector<16x16xf32>
    %cst_44 = arith.constant dense<0.000000e+00> : vector<16x8xf32>
    %116 = tpu.matmul %115, %102, %cst_44 {dimension_numbers = #tpu.dot_dimension_numbers<[1], [0], [0], [1], [0, 0, 1, 1], [], []>} : vector<16x16xf32>, vector<16x8xf32>, vector<16x8xf32> -> vector<16x8xf32>
    %117 = tpu.concatenate %65, %82, %99, %116 in 1 : vector<16x8xf32>, vector<16x8xf32>, vector<16x8xf32>, vector<16x8xf32> -> vector<16x32xf32>
    %118 = vector.extract_strided_slice %46 {offsets = [16, 0], sizes = [16, 96], strides = [1, 1]} : vector<32x96xf32> to vector<16x96xf32>
    %119 = vector.extract_strided_slice %3 {offsets = [1, 0], sizes = [1, 16], strides = [1, 1]} : vector<2x16xf32> to vector<1x16xf32>
    %120 = vector.extract_strided_slice %118 {offsets = [0, 0], sizes = [16, 8], strides = [1, 1]} : vector<16x96xf32> to vector<16x8xf32>
    %121 = vector.extract_strided_slice %118 {offsets = [0, 32], sizes = [16, 8], strides = [1, 1]} : vector<16x96xf32> to vector<16x8xf32>
    %122 = vector.extract_strided_slice %118 {offsets = [0, 64], sizes = [16, 8], strides = [1, 1]} : vector<16x96xf32> to vector<16x8xf32>
    %cst_45 = arith.constant dense<0.000000e+00> : vector<16x16xf32>
    %123 = tpu.matmul %120, %121, %cst_45 {dimension_numbers = #tpu.dot_dimension_numbers<[1], [1], [0], [0], [0, 0, 1, 0], [], []>} : vector<16x8xf32>, vector<16x8xf32>, vector<16x16xf32> -> vector<16x16xf32>
    %124 = vector.broadcast %119 : vector<1x16xf32> to vector<16x16xf32>
    %125 = arith.addf %123, %124 : vector<16x16xf32>
    %cst_46 = arith.constant dense<0xFF800000> : vector<16xf32>
    %126 = vector.multi_reduction <maximumf>, %125, %cst_46 [1] : vector<16x16xf32> to vector<16xf32>
    %127 = vector.shape_cast %126 : vector<16xf32> to vector<16x1xf32>
    %128 = vector.broadcast %127 : vector<16x1xf32> to vector<16x16xf32>
    %129 = arith.subf %125, %128 : vector<16x16xf32>
    %130 = math.exp %129 : vector<16x16xf32>
    %cst_47 = arith.constant dense<0.000000e+00> : vector<16xf32>
    %131 = vector.multi_reduction <add>, %130, %cst_47 [1] : vector<16x16xf32> to vector<16xf32>
    %132 = vector.shape_cast %131 : vector<16xf32> to vector<16x1xf32>
    %133 = tpu.reciprocal %132 {approx = true} : vector<16x1xf32> -> vector<16x1xf32>
    %134 = vector.broadcast %133 : vector<16x1xf32> to vector<16x16xf32>
    %135 = arith.mulf %130, %134 : vector<16x16xf32>
    %cst_48 = arith.constant dense<0.000000e+00> : vector<16x8xf32>
    %136 = tpu.matmul %135, %122, %cst_48 {dimension_numbers = #tpu.dot_dimension_numbers<[1], [0], [0], [1], [0, 0, 1, 1], [], []>} : vector<16x16xf32>, vector<16x8xf32>, vector<16x8xf32> -> vector<16x8xf32>
    %137 = vector.extract_strided_slice %118 {offsets = [0, 8], sizes = [16, 8], strides = [1, 1]} : vector<16x96xf32> to vector<16x8xf32>
    %138 = vector.extract_strided_slice %118 {offsets = [0, 40], sizes = [16, 8], strides = [1, 1]} : vector<16x96xf32> to vector<16x8xf32>
    %139 = vector.extract_strided_slice %118 {offsets = [0, 72], sizes = [16, 8], strides = [1, 1]} : vector<16x96xf32> to vector<16x8xf32>
    %cst_49 = arith.constant dense<0.000000e+00> : vector<16x16xf32>
    %140 = tpu.matmul %137, %138, %cst_49 {dimension_numbers = #tpu.dot_dimension_numbers<[1], [1], [0], [0], [0, 0, 1, 0], [], []>} : vector<16x8xf32>, vector<16x8xf32>, vector<16x16xf32> -> vector<16x16xf32>
    %141 = vector.broadcast %119 : vector<1x16xf32> to vector<16x16xf32>
    %142 = arith.addf %140, %141 : vector<16x16xf32>
    %cst_50 = arith.constant dense<0xFF800000> : vector<16xf32>
    %143 = vector.multi_reduction <maximumf>, %142, %cst_50 [1] : vector<16x16xf32> to vector<16xf32>
    %144 = vector.shape_cast %143 : vector<16xf32> to vector<16x1xf32>
    %145 = vector.broadcast %144 : vector<16x1xf32> to vector<16x16xf32>
    %146 = arith.subf %142, %145 : vector<16x16xf32>
    %147 = math.exp %146 : vector<16x16xf32>
    %cst_51 = arith.constant dense<0.000000e+00> : vector<16xf32>
    %148 = vector.multi_reduction <add>, %147, %cst_51 [1] : vector<16x16xf32> to vector<16xf32>
    %149 = vector.shape_cast %148 : vector<16xf32> to vector<16x1xf32>
    %150 = tpu.reciprocal %149 {approx = true} : vector<16x1xf32> -> vector<16x1xf32>
    %151 = vector.broadcast %150 : vector<16x1xf32> to vector<16x16xf32>
    %152 = arith.mulf %147, %151 : vector<16x16xf32>
    %cst_52 = arith.constant dense<0.000000e+00> : vector<16x8xf32>
    %153 = tpu.matmul %152, %139, %cst_52 {dimension_numbers = #tpu.dot_dimension_numbers<[1], [0], [0], [1], [0, 0, 1, 1], [], []>} : vector<16x16xf32>, vector<16x8xf32>, vector<16x8xf32> -> vector<16x8xf32>
    %154 = vector.extract_strided_slice %118 {offsets = [0, 16], sizes = [16, 8], strides = [1, 1]} : vector<16x96xf32> to vector<16x8xf32>
    %155 = vector.extract_strided_slice %118 {offsets = [0, 48], sizes = [16, 8], strides = [1, 1]} : vector<16x96xf32> to vector<16x8xf32>
    %156 = vector.extract_strided_slice %118 {offsets = [0, 80], sizes = [16, 8], strides = [1, 1]} : vector<16x96xf32> to vector<16x8xf32>
    %cst_53 = arith.constant dense<0.000000e+00> : vector<16x16xf32>
    %157 = tpu.matmul %154, %155, %cst_53 {dimension_numbers = #tpu.dot_dimension_numbers<[1], [1], [0], [0], [0, 0, 1, 0], [], []>} : vector<16x8xf32>, vector<16x8xf32>, vector<16x16xf32> -> vector<16x16xf32>
    %158 = vector.broadcast %119 : vector<1x16xf32> to vector<16x16xf32>
    %159 = arith.addf %157, %158 : vector<16x16xf32>
    %cst_54 = arith.constant dense<0xFF800000> : vector<16xf32>
    %160 = vector.multi_reduction <maximumf>, %159, %cst_54 [1] : vector<16x16xf32> to vector<16xf32>
    %161 = vector.shape_cast %160 : vector<16xf32> to vector<16x1xf32>
    %162 = vector.broadcast %161 : vector<16x1xf32> to vector<16x16xf32>
    %163 = arith.subf %159, %162 : vector<16x16xf32>
    %164 = math.exp %163 : vector<16x16xf32>
    %cst_55 = arith.constant dense<0.000000e+00> : vector<16xf32>
    %165 = vector.multi_reduction <add>, %164, %cst_55 [1] : vector<16x16xf32> to vector<16xf32>
    %166 = vector.shape_cast %165 : vector<16xf32> to vector<16x1xf32>
    %167 = tpu.reciprocal %166 {approx = true} : vector<16x1xf32> -> vector<16x1xf32>
    %168 = vector.broadcast %167 : vector<16x1xf32> to vector<16x16xf32>
    %169 = arith.mulf %164, %168 : vector<16x16xf32>
    %cst_56 = arith.constant dense<0.000000e+00> : vector<16x8xf32>
    %170 = tpu.matmul %169, %156, %cst_56 {dimension_numbers = #tpu.dot_dimension_numbers<[1], [0], [0], [1], [0, 0, 1, 1], [], []>} : vector<16x16xf32>, vector<16x8xf32>, vector<16x8xf32> -> vector<16x8xf32>
    %171 = vector.extract_strided_slice %118 {offsets = [0, 24], sizes = [16, 8], strides = [1, 1]} : vector<16x96xf32> to vector<16x8xf32>
    %172 = vector.extract_strided_slice %118 {offsets = [0, 56], sizes = [16, 8], strides = [1, 1]} : vector<16x96xf32> to vector<16x8xf32>
    %173 = vector.extract_strided_slice %118 {offsets = [0, 88], sizes = [16, 8], strides = [1, 1]} : vector<16x96xf32> to vector<16x8xf32>
    %cst_57 = arith.constant dense<0.000000e+00> : vector<16x16xf32>
    %174 = tpu.matmul %171, %172, %cst_57 {dimension_numbers = #tpu.dot_dimension_numbers<[1], [1], [0], [0], [0, 0, 1, 0], [], []>} : vector<16x8xf32>, vector<16x8xf32>, vector<16x16xf32> -> vector<16x16xf32>
    %175 = vector.broadcast %119 : vector<1x16xf32> to vector<16x16xf32>
    %176 = arith.addf %174, %175 : vector<16x16xf32>
    %cst_58 = arith.constant dense<0xFF800000> : vector<16xf32>
    %177 = vector.multi_reduction <maximumf>, %176, %cst_58 [1] : vector<16x16xf32> to vector<16xf32>
    %178 = vector.shape_cast %177 : vector<16xf32> to vector<16x1xf32>
    %179 = vector.broadcast %178 : vector<16x1xf32> to vector<16x16xf32>
    %180 = arith.subf %176, %179 : vector<16x16xf32>
    %181 = math.exp %180 : vector<16x16xf32>
    %cst_59 = arith.constant dense<0.000000e+00> : vector<16xf32>
    %182 = vector.multi_reduction <add>, %181, %cst_59 [1] : vector<16x16xf32> to vector<16xf32>
    %183 = vector.shape_cast %182 : vector<16xf32> to vector<16x1xf32>
    %184 = tpu.reciprocal %183 {approx = true} : vector<16x1xf32> -> vector<16x1xf32>
    %185 = vector.broadcast %184 : vector<16x1xf32> to vector<16x16xf32>
    %186 = arith.mulf %181, %185 : vector<16x16xf32>
    %cst_60 = arith.constant dense<0.000000e+00> : vector<16x8xf32>
    %187 = tpu.matmul %186, %173, %cst_60 {dimension_numbers = #tpu.dot_dimension_numbers<[1], [0], [0], [1], [0, 0, 1, 1], [], []>} : vector<16x16xf32>, vector<16x8xf32>, vector<16x8xf32> -> vector<16x8xf32>
    %188 = tpu.concatenate %136, %153, %170, %187 in 1 : vector<16x8xf32>, vector<16x8xf32>, vector<16x8xf32>, vector<16x8xf32> -> vector<16x32xf32>
    %189 = tpu.concatenate %117, %188 in 0 : vector<16x32xf32>, vector<16x32xf32> -> vector<32x32xf32>
    %c0_61 = arith.constant 0 : index
    %c0_62 = arith.constant 0 : index
    %c0_63 = arith.constant 0 : index
    %c0_64 = arith.constant 0 : index
    %190 = vector.load %arg7[%c0_61, %c0_62, %c0_63, %c0_64] : memref<1x2x32x32xf32, #tpu.memory_space<vmem>>, vector<1x1x32x32xf32>
    %191 = vector.shape_cast %190 : vector<1x1x32x32xf32> to vector<32x32xf32>
    %cst_65 = arith.constant dense<0.000000e+00> : vector<32x32xf32>
    %192 = tpu.matmul %189, %191, %cst_65 {dimension_numbers = #tpu.dot_dimension_numbers<[1], [0], [0], [1], [0, 0, 1, 1], [], []>} : vector<32x32xf32>, vector<32x32xf32>, vector<32x32xf32> -> vector<32x32xf32>
    %193 = vector.broadcast %34 : vector<1x32xf32> to vector<32x32xf32>
    %194 = arith.addf %192, %193 : vector<32x32xf32>
    %195 = arith.addf %31, %194 : vector<32x32xf32>
    %cst_66 = arith.constant dense<0.000000e+00> : vector<32xf32>
    %196 = vector.multi_reduction <add>, %195, %cst_66 [1] : vector<32x32xf32> to vector<32xf32>
    %197 = vector.shape_cast %196 : vector<32xf32> to vector<32x1xf32>
    %cst_67 = arith.constant 3.200000e+01 : f32
    %198 = vector.broadcast %cst_67 : f32 to vector<32x1xf32>
    %199 = arith.divf %197, %198 : vector<32x1xf32>
    %200 = vector.broadcast %199 : vector<32x1xf32> to vector<32x32xf32>
    %201 = arith.subf %195, %200 : vector<32x32xf32>
    %202 = arith.mulf %201, %201 : vector<32x32xf32>
    %cst_68 = arith.constant dense<0.000000e+00> : vector<32xf32>
    %203 = vector.multi_reduction <add>, %202, %cst_68 [1] : vector<32x32xf32> to vector<32xf32>
    %204 = vector.shape_cast %203 : vector<32xf32> to vector<32x1xf32>
    %cst_69 = arith.constant 3.200000e+01 : f32
    %205 = vector.broadcast %cst_69 : f32 to vector<32x1xf32>
    %206 = arith.divf %204, %205 : vector<32x1xf32>
    %207 = vector.broadcast %199 : vector<32x1xf32> to vector<32x32xf32>
    %208 = arith.subf %195, %207 : vector<32x32xf32>
    %cst_70 = arith.constant 9.99999974E-6 : f32
    %209 = vector.broadcast %cst_70 : f32 to vector<32x1xf32>
    %210 = arith.addf %206, %209 : vector<32x1xf32>
    %211 = math.rsqrt %210 : vector<32x1xf32>
    %212 = vector.broadcast %211 : vector<32x1xf32> to vector<32x32xf32>
    %213 = arith.mulf %208, %212 : vector<32x32xf32>
    %214 = vector.broadcast %35 : vector<1x32xf32> to vector<32x32xf32>
    %215 = arith.mulf %213, %214 : vector<32x32xf32>
    %216 = vector.broadcast %36 : vector<1x32xf32> to vector<32x32xf32>
    %217 = arith.addf %215, %216 : vector<32x32xf32>
    %c0_71 = arith.constant 0 : index
    %c0_72 = arith.constant 0 : index
    %c0_73 = arith.constant 0 : index
    %c0_74 = arith.constant 0 : index
    %218 = vector.load %arg8[%c0_71, %c0_72, %c0_73, %c0_74] : memref<1x2x32x64xf32, #tpu.memory_space<vmem>>, vector<1x1x32x64xf32>
    %219 = vector.shape_cast %218 : vector<1x1x32x64xf32> to vector<32x64xf32>
    %cst_75 = arith.constant dense<0.000000e+00> : vector<32x64xf32>
    %220 = tpu.matmul %217, %219, %cst_75 {dimension_numbers = #tpu.dot_dimension_numbers<[1], [0], [0], [1], [0, 0, 1, 1], [], []>} : vector<32x32xf32>, vector<32x64xf32>, vector<32x64xf32> -> vector<32x64xf32>
    %c0_76 = arith.constant 0 : index
    %c0_77 = arith.constant 0 : index
    %c0_78 = arith.constant 0 : index
    %c0_79 = arith.constant 0 : index
    %221 = vector.load %arg9[%c0_76, %c0_77, %c0_78, %c0_79] : memref<1x2x1x64xf32, #tpu.memory_space<vmem>>, vector<1x1x1x64xf32>
    %222 = vector.shape_cast %221 : vector<1x1x1x64xf32> to vector<1x64xf32>
    %223 = vector.broadcast %222 : vector<1x64xf32> to vector<32x64xf32>
    %224 = arith.addf %220, %223 : vector<32x64xf32>
    %cst_80 = arith.constant 0.000000e+00 : f32
    %225 = vector.broadcast %cst_80 : f32 to vector<32x64xf32>
    %226 = arith.maximumf %224, %225 : vector<32x64xf32>
    %c0_81 = arith.constant 0 : index
    %c0_82 = arith.constant 0 : index
    %c0_83 = arith.constant 0 : index
    %c0_84 = arith.constant 0 : index
    %227 = vector.load %arg10[%c0_81, %c0_82, %c0_83, %c0_84] : memref<1x2x64x32xf32, #tpu.memory_space<vmem>>, vector<1x1x64x32xf32>
    %228 = vector.shape_cast %227 : vector<1x1x64x32xf32> to vector<64x32xf32>
    %cst_85 = arith.constant dense<0.000000e+00> : vector<32x32xf32>
    %229 = tpu.matmul %226, %228, %cst_85 {dimension_numbers = #tpu.dot_dimension_numbers<[1], [0], [0], [1], [0, 0, 1, 1], [], []>} : vector<32x64xf32>, vector<64x32xf32>, vector<32x32xf32> -> vector<32x32xf32>
    %230 = vector.broadcast %37 : vector<1x32xf32> to vector<32x32xf32>
    %231 = arith.addf %229, %230 : vector<32x32xf32>
    %232 = arith.addf %217, %231 : vector<32x32xf32>
    %cst_86 = arith.constant dense<0.000000e+00> : vector<32xf32>
    %233 = vector.multi_reduction <add>, %232, %cst_86 [1] : vector<32x32xf32> to vector<32xf32>
    %234 = vector.shape_cast %233 : vector<32xf32> to vector<32x1xf32>
    %cst_87 = arith.constant 3.200000e+01 : f32
    %235 = vector.broadcast %cst_87 : f32 to vector<32x1xf32>
    %236 = arith.divf %234, %235 : vector<32x1xf32>
    %237 = vector.broadcast %236 : vector<32x1xf32> to vector<32x32xf32>
    %238 = arith.subf %232, %237 : vector<32x32xf32>
    %239 = arith.mulf %238, %238 : vector<32x32xf32>
    %cst_88 = arith.constant dense<0.000000e+00> : vector<32xf32>
    %240 = vector.multi_reduction <add>, %239, %cst_88 [1] : vector<32x32xf32> to vector<32xf32>
    %241 = vector.shape_cast %240 : vector<32xf32> to vector<32x1xf32>
    %cst_89 = arith.constant 3.200000e+01 : f32
    %242 = vector.broadcast %cst_89 : f32 to vector<32x1xf32>
    %243 = arith.divf %241, %242 : vector<32x1xf32>
    %244 = vector.broadcast %236 : vector<32x1xf32> to vector<32x32xf32>
    %245 = arith.subf %232, %244 : vector<32x32xf32>
    %cst_90 = arith.constant 9.99999974E-6 : f32
    %246 = vector.broadcast %cst_90 : f32 to vector<32x1xf32>
    %247 = arith.addf %243, %246 : vector<32x1xf32>
    %248 = math.rsqrt %247 : vector<32x1xf32>
    %249 = vector.broadcast %248 : vector<32x1xf32> to vector<32x32xf32>
    %250 = arith.mulf %245, %249 : vector<32x32xf32>
    %251 = vector.broadcast %38 : vector<1x32xf32> to vector<32x32xf32>
    %252 = arith.mulf %250, %251 : vector<32x32xf32>
    %253 = vector.broadcast %39 : vector<1x32xf32> to vector<32x32xf32>
    %254 = arith.addf %252, %253 : vector<32x32xf32>
    %c0_91 = arith.constant 0 : index
    %c1_92 = arith.constant 1 : index
    %c0_93 = arith.constant 0 : index
    %c0_94 = arith.constant 0 : index
    %255 = vector.load %arg11[%c0_91, %c1_92, %c0_93, %c0_94] : memref<1x2x6x32xf32, #tpu.memory_space<vmem>>, vector<1x1x6x32xf32>
    %256 = vector.shape_cast %255 : vector<1x1x6x32xf32> to vector<6x32xf32>
    %257 = vector.extract_strided_slice %256 {offsets = [0, 0], sizes = [1, 32], strides = [1, 1]} : vector<6x32xf32> to vector<1x32xf32>
    %258 = vector.extract_strided_slice %256 {offsets = [1, 0], sizes = [1, 32], strides = [1, 1]} : vector<6x32xf32> to vector<1x32xf32>
    %259 = vector.extract_strided_slice %256 {offsets = [2, 0], sizes = [1, 32], strides = [1, 1]} : vector<6x32xf32> to vector<1x32xf32>
    %260 = vector.extract_strided_slice %256 {offsets = [3, 0], sizes = [1, 32], strides = [1, 1]} : vector<6x32xf32> to vector<1x32xf32>
    %261 = vector.extract_strided_slice %256 {offsets = [4, 0], sizes = [1, 32], strides = [1, 1]} : vector<6x32xf32> to vector<1x32xf32>
    %262 = vector.extract_strided_slice %256 {offsets = [5, 0], sizes = [1, 32], strides = [1, 1]} : vector<6x32xf32> to vector<1x32xf32>
    %c0_95 = arith.constant 0 : index
    %c1_96 = arith.constant 1 : index
    %c0_97 = arith.constant 0 : index
    %c0_98 = arith.constant 0 : index
    %263 = vector.load %arg5[%c0_95, %c1_96, %c0_97, %c0_98] : memref<1x2x32x96xf32, #tpu.memory_space<vmem>>, vector<1x1x32x96xf32>
    %264 = vector.shape_cast %263 : vector<1x1x32x96xf32> to vector<32x96xf32>
    %cst_99 = arith.constant dense<0.000000e+00> : vector<32x96xf32>
    %265 = tpu.matmul %254, %264, %cst_99 {dimension_numbers = #tpu.dot_dimension_numbers<[1], [0], [0], [1], [0, 0, 1, 1], [], []>} : vector<32x32xf32>, vector<32x96xf32>, vector<32x96xf32> -> vector<32x96xf32>
    %c0_100 = arith.constant 0 : index
    %c1_101 = arith.constant 1 : index
    %c0_102 = arith.constant 0 : index
    %c0_103 = arith.constant 0 : index
    %266 = vector.load %arg6[%c0_100, %c1_101, %c0_102, %c0_103] : memref<1x2x1x96xf32, #tpu.memory_space<vmem>>, vector<1x1x1x96xf32>
    %267 = vector.shape_cast %266 : vector<1x1x1x96xf32> to vector<1x96xf32>
    %268 = vector.broadcast %267 : vector<1x96xf32> to vector<32x96xf32>
    %269 = arith.addf %265, %268 : vector<32x96xf32>
    %270 = vector.extract_strided_slice %269 {offsets = [0, 0], sizes = [16, 96], strides = [1, 1]} : vector<32x96xf32> to vector<16x96xf32>
    %271 = vector.extract_strided_slice %3 {offsets = [0, 0], sizes = [1, 16], strides = [1, 1]} : vector<2x16xf32> to vector<1x16xf32>
    %272 = vector.extract_strided_slice %270 {offsets = [0, 0], sizes = [16, 8], strides = [1, 1]} : vector<16x96xf32> to vector<16x8xf32>
    %273 = vector.extract_strided_slice %270 {offsets = [0, 32], sizes = [16, 8], strides = [1, 1]} : vector<16x96xf32> to vector<16x8xf32>
    %274 = vector.extract_strided_slice %270 {offsets = [0, 64], sizes = [16, 8], strides = [1, 1]} : vector<16x96xf32> to vector<16x8xf32>
    %cst_104 = arith.constant dense<0.000000e+00> : vector<16x16xf32>
    %275 = tpu.matmul %272, %273, %cst_104 {dimension_numbers = #tpu.dot_dimension_numbers<[1], [1], [0], [0], [0, 0, 1, 0], [], []>} : vector<16x8xf32>, vector<16x8xf32>, vector<16x16xf32> -> vector<16x16xf32>
    %276 = vector.broadcast %271 : vector<1x16xf32> to vector<16x16xf32>
    %277 = arith.addf %275, %276 : vector<16x16xf32>
    %cst_105 = arith.constant dense<0xFF800000> : vector<16xf32>
    %278 = vector.multi_reduction <maximumf>, %277, %cst_105 [1] : vector<16x16xf32> to vector<16xf32>
    %279 = vector.shape_cast %278 : vector<16xf32> to vector<16x1xf32>
    %280 = vector.broadcast %279 : vector<16x1xf32> to vector<16x16xf32>
    %281 = arith.subf %277, %280 : vector<16x16xf32>
    %282 = math.exp %281 : vector<16x16xf32>
    %cst_106 = arith.constant dense<0.000000e+00> : vector<16xf32>
    %283 = vector.multi_reduction <add>, %282, %cst_106 [1] : vector<16x16xf32> to vector<16xf32>
    %284 = vector.shape_cast %283 : vector<16xf32> to vector<16x1xf32>
    %285 = tpu.reciprocal %284 {approx = true} : vector<16x1xf32> -> vector<16x1xf32>
    %286 = vector.broadcast %285 : vector<16x1xf32> to vector<16x16xf32>
    %287 = arith.mulf %282, %286 : vector<16x16xf32>
    %cst_107 = arith.constant dense<0.000000e+00> : vector<16x8xf32>
    %288 = tpu.matmul %287, %274, %cst_107 {dimension_numbers = #tpu.dot_dimension_numbers<[1], [0], [0], [1], [0, 0, 1, 1], [], []>} : vector<16x16xf32>, vector<16x8xf32>, vector<16x8xf32> -> vector<16x8xf32>
    %289 = vector.extract_strided_slice %270 {offsets = [0, 8], sizes = [16, 8], strides = [1, 1]} : vector<16x96xf32> to vector<16x8xf32>
    %290 = vector.extract_strided_slice %270 {offsets = [0, 40], sizes = [16, 8], strides = [1, 1]} : vector<16x96xf32> to vector<16x8xf32>
    %291 = vector.extract_strided_slice %270 {offsets = [0, 72], sizes = [16, 8], strides = [1, 1]} : vector<16x96xf32> to vector<16x8xf32>
    %cst_108 = arith.constant dense<0.000000e+00> : vector<16x16xf32>
    %292 = tpu.matmul %289, %290, %cst_108 {dimension_numbers = #tpu.dot_dimension_numbers<[1], [1], [0], [0], [0, 0, 1, 0], [], []>} : vector<16x8xf32>, vector<16x8xf32>, vector<16x16xf32> -> vector<16x16xf32>
    %293 = vector.broadcast %271 : vector<1x16xf32> to vector<16x16xf32>
    %294 = arith.addf %292, %293 : vector<16x16xf32>
    %cst_109 = arith.constant dense<0xFF800000> : vector<16xf32>
    %295 = vector.multi_reduction <maximumf>, %294, %cst_109 [1] : vector<16x16xf32> to vector<16xf32>
    %296 = vector.shape_cast %295 : vector<16xf32> to vector<16x1xf32>
    %297 = vector.broadcast %296 : vector<16x1xf32> to vector<16x16xf32>
    %298 = arith.subf %294, %297 : vector<16x16xf32>
    %299 = math.exp %298 : vector<16x16xf32>
    %cst_110 = arith.constant dense<0.000000e+00> : vector<16xf32>
    %300 = vector.multi_reduction <add>, %299, %cst_110 [1] : vector<16x16xf32> to vector<16xf32>
    %301 = vector.shape_cast %300 : vector<16xf32> to vector<16x1xf32>
    %302 = tpu.reciprocal %301 {approx = true} : vector<16x1xf32> -> vector<16x1xf32>
    %303 = vector.broadcast %302 : vector<16x1xf32> to vector<16x16xf32>
    %304 = arith.mulf %299, %303 : vector<16x16xf32>
    %cst_111 = arith.constant dense<0.000000e+00> : vector<16x8xf32>
    %305 = tpu.matmul %304, %291, %cst_111 {dimension_numbers = #tpu.dot_dimension_numbers<[1], [0], [0], [1], [0, 0, 1, 1], [], []>} : vector<16x16xf32>, vector<16x8xf32>, vector<16x8xf32> -> vector<16x8xf32>
    %306 = vector.extract_strided_slice %270 {offsets = [0, 16], sizes = [16, 8], strides = [1, 1]} : vector<16x96xf32> to vector<16x8xf32>
    %307 = vector.extract_strided_slice %270 {offsets = [0, 48], sizes = [16, 8], strides = [1, 1]} : vector<16x96xf32> to vector<16x8xf32>
    %308 = vector.extract_strided_slice %270 {offsets = [0, 80], sizes = [16, 8], strides = [1, 1]} : vector<16x96xf32> to vector<16x8xf32>
    %cst_112 = arith.constant dense<0.000000e+00> : vector<16x16xf32>
    %309 = tpu.matmul %306, %307, %cst_112 {dimension_numbers = #tpu.dot_dimension_numbers<[1], [1], [0], [0], [0, 0, 1, 0], [], []>} : vector<16x8xf32>, vector<16x8xf32>, vector<16x16xf32> -> vector<16x16xf32>
    %310 = vector.broadcast %271 : vector<1x16xf32> to vector<16x16xf32>
    %311 = arith.addf %309, %310 : vector<16x16xf32>
    %cst_113 = arith.constant dense<0xFF800000> : vector<16xf32>
    %312 = vector.multi_reduction <maximumf>, %311, %cst_113 [1] : vector<16x16xf32> to vector<16xf32>
    %313 = vector.shape_cast %312 : vector<16xf32> to vector<16x1xf32>
    %314 = vector.broadcast %313 : vector<16x1xf32> to vector<16x16xf32>
    %315 = arith.subf %311, %314 : vector<16x16xf32>
    %316 = math.exp %315 : vector<16x16xf32>
    %cst_114 = arith.constant dense<0.000000e+00> : vector<16xf32>
    %317 = vector.multi_reduction <add>, %316, %cst_114 [1] : vector<16x16xf32> to vector<16xf32>
    %318 = vector.shape_cast %317 : vector<16xf32> to vector<16x1xf32>
    %319 = tpu.reciprocal %318 {approx = true} : vector<16x1xf32> -> vector<16x1xf32>
    %320 = vector.broadcast %319 : vector<16x1xf32> to vector<16x16xf32>
    %321 = arith.mulf %316, %320 : vector<16x16xf32>
    %cst_115 = arith.constant dense<0.000000e+00> : vector<16x8xf32>
    %322 = tpu.matmul %321, %308, %cst_115 {dimension_numbers = #tpu.dot_dimension_numbers<[1], [0], [0], [1], [0, 0, 1, 1], [], []>} : vector<16x16xf32>, vector<16x8xf32>, vector<16x8xf32> -> vector<16x8xf32>
    %323 = vector.extract_strided_slice %270 {offsets = [0, 24], sizes = [16, 8], strides = [1, 1]} : vector<16x96xf32> to vector<16x8xf32>
    %324 = vector.extract_strided_slice %270 {offsets = [0, 56], sizes = [16, 8], strides = [1, 1]} : vector<16x96xf32> to vector<16x8xf32>
    %325 = vector.extract_strided_slice %270 {offsets = [0, 88], sizes = [16, 8], strides = [1, 1]} : vector<16x96xf32> to vector<16x8xf32>
    %cst_116 = arith.constant dense<0.000000e+00> : vector<16x16xf32>
    %326 = tpu.matmul %323, %324, %cst_116 {dimension_numbers = #tpu.dot_dimension_numbers<[1], [1], [0], [0], [0, 0, 1, 0], [], []>} : vector<16x8xf32>, vector<16x8xf32>, vector<16x16xf32> -> vector<16x16xf32>
    %327 = vector.broadcast %271 : vector<1x16xf32> to vector<16x16xf32>
    %328 = arith.addf %326, %327 : vector<16x16xf32>
    %cst_117 = arith.constant dense<0xFF800000> : vector<16xf32>
    %329 = vector.multi_reduction <maximumf>, %328, %cst_117 [1] : vector<16x16xf32> to vector<16xf32>
    %330 = vector.shape_cast %329 : vector<16xf32> to vector<16x1xf32>
    %331 = vector.broadcast %330 : vector<16x1xf32> to vector<16x16xf32>
    %332 = arith.subf %328, %331 : vector<16x16xf32>
    %333 = math.exp %332 : vector<16x16xf32>
    %cst_118 = arith.constant dense<0.000000e+00> : vector<16xf32>
    %334 = vector.multi_reduction <add>, %333, %cst_118 [1] : vector<16x16xf32> to vector<16xf32>
    %335 = vector.shape_cast %334 : vector<16xf32> to vector<16x1xf32>
    %336 = tpu.reciprocal %335 {approx = true} : vector<16x1xf32> -> vector<16x1xf32>
    %337 = vector.broadcast %336 : vector<16x1xf32> to vector<16x16xf32>
    %338 = arith.mulf %333, %337 : vector<16x16xf32>
    %cst_119 = arith.constant dense<0.000000e+00> : vector<16x8xf32>
    %339 = tpu.matmul %338, %325, %cst_119 {dimension_numbers = #tpu.dot_dimension_numbers<[1], [0], [0], [1], [0, 0, 1, 1], [], []>} : vector<16x16xf32>, vector<16x8xf32>, vector<16x8xf32> -> vector<16x8xf32>
    %340 = tpu.concatenate %288, %305, %322, %339 in 1 : vector<16x8xf32>, vector<16x8xf32>, vector<16x8xf32>, vector<16x8xf32> -> vector<16x32xf32>
    %341 = vector.extract_strided_slice %269 {offsets = [16, 0], sizes = [16, 96], strides = [1, 1]} : vector<32x96xf32> to vector<16x96xf32>
    %342 = vector.extract_strided_slice %3 {offsets = [1, 0], sizes = [1, 16], strides = [1, 1]} : vector<2x16xf32> to vector<1x16xf32>
    %343 = vector.extract_strided_slice %341 {offsets = [0, 0], sizes = [16, 8], strides = [1, 1]} : vector<16x96xf32> to vector<16x8xf32>
    %344 = vector.extract_strided_slice %341 {offsets = [0, 32], sizes = [16, 8], strides = [1, 1]} : vector<16x96xf32> to vector<16x8xf32>
    %345 = vector.extract_strided_slice %341 {offsets = [0, 64], sizes = [16, 8], strides = [1, 1]} : vector<16x96xf32> to vector<16x8xf32>
    %cst_120 = arith.constant dense<0.000000e+00> : vector<16x16xf32>
    %346 = tpu.matmul %343, %344, %cst_120 {dimension_numbers = #tpu.dot_dimension_numbers<[1], [1], [0], [0], [0, 0, 1, 0], [], []>} : vector<16x8xf32>, vector<16x8xf32>, vector<16x16xf32> -> vector<16x16xf32>
    %347 = vector.broadcast %342 : vector<1x16xf32> to vector<16x16xf32>
    %348 = arith.addf %346, %347 : vector<16x16xf32>
    %cst_121 = arith.constant dense<0xFF800000> : vector<16xf32>
    %349 = vector.multi_reduction <maximumf>, %348, %cst_121 [1] : vector<16x16xf32> to vector<16xf32>
    %350 = vector.shape_cast %349 : vector<16xf32> to vector<16x1xf32>
    %351 = vector.broadcast %350 : vector<16x1xf32> to vector<16x16xf32>
    %352 = arith.subf %348, %351 : vector<16x16xf32>
    %353 = math.exp %352 : vector<16x16xf32>
    %cst_122 = arith.constant dense<0.000000e+00> : vector<16xf32>
    %354 = vector.multi_reduction <add>, %353, %cst_122 [1] : vector<16x16xf32> to vector<16xf32>
    %355 = vector.shape_cast %354 : vector<16xf32> to vector<16x1xf32>
    %356 = tpu.reciprocal %355 {approx = true} : vector<16x1xf32> -> vector<16x1xf32>
    %357 = vector.broadcast %356 : vector<16x1xf32> to vector<16x16xf32>
    %358 = arith.mulf %353, %357 : vector<16x16xf32>
    %cst_123 = arith.constant dense<0.000000e+00> : vector<16x8xf32>
    %359 = tpu.matmul %358, %345, %cst_123 {dimension_numbers = #tpu.dot_dimension_numbers<[1], [0], [0], [1], [0, 0, 1, 1], [], []>} : vector<16x16xf32>, vector<16x8xf32>, vector<16x8xf32> -> vector<16x8xf32>
    %360 = vector.extract_strided_slice %341 {offsets = [0, 8], sizes = [16, 8], strides = [1, 1]} : vector<16x96xf32> to vector<16x8xf32>
    %361 = vector.extract_strided_slice %341 {offsets = [0, 40], sizes = [16, 8], strides = [1, 1]} : vector<16x96xf32> to vector<16x8xf32>
    %362 = vector.extract_strided_slice %341 {offsets = [0, 72], sizes = [16, 8], strides = [1, 1]} : vector<16x96xf32> to vector<16x8xf32>
    %cst_124 = arith.constant dense<0.000000e+00> : vector<16x16xf32>
    %363 = tpu.matmul %360, %361, %cst_124 {dimension_numbers = #tpu.dot_dimension_numbers<[1], [1], [0], [0], [0, 0, 1, 0], [], []>} : vector<16x8xf32>, vector<16x8xf32>, vector<16x16xf32> -> vector<16x16xf32>
    %364 = vector.broadcast %342 : vector<1x16xf32> to vector<16x16xf32>
    %365 = arith.addf %363, %364 : vector<16x16xf32>
    %cst_125 = arith.constant dense<0xFF800000> : vector<16xf32>
    %366 = vector.multi_reduction <maximumf>, %365, %cst_125 [1] : vector<16x16xf32> to vector<16xf32>
    %367 = vector.shape_cast %366 : vector<16xf32> to vector<16x1xf32>
    %368 = vector.broadcast %367 : vector<16x1xf32> to vector<16x16xf32>
    %369 = arith.subf %365, %368 : vector<16x16xf32>
    %370 = math.exp %369 : vector<16x16xf32>
    %cst_126 = arith.constant dense<0.000000e+00> : vector<16xf32>
    %371 = vector.multi_reduction <add>, %370, %cst_126 [1] : vector<16x16xf32> to vector<16xf32>
    %372 = vector.shape_cast %371 : vector<16xf32> to vector<16x1xf32>
    %373 = tpu.reciprocal %372 {approx = true} : vector<16x1xf32> -> vector<16x1xf32>
    %374 = vector.broadcast %373 : vector<16x1xf32> to vector<16x16xf32>
    %375 = arith.mulf %370, %374 : vector<16x16xf32>
    %cst_127 = arith.constant dense<0.000000e+00> : vector<16x8xf32>
    %376 = tpu.matmul %375, %362, %cst_127 {dimension_numbers = #tpu.dot_dimension_numbers<[1], [0], [0], [1], [0, 0, 1, 1], [], []>} : vector<16x16xf32>, vector<16x8xf32>, vector<16x8xf32> -> vector<16x8xf32>
    %377 = vector.extract_strided_slice %341 {offsets = [0, 16], sizes = [16, 8], strides = [1, 1]} : vector<16x96xf32> to vector<16x8xf32>
    %378 = vector.extract_strided_slice %341 {offsets = [0, 48], sizes = [16, 8], strides = [1, 1]} : vector<16x96xf32> to vector<16x8xf32>
    %379 = vector.extract_strided_slice %341 {offsets = [0, 80], sizes = [16, 8], strides = [1, 1]} : vector<16x96xf32> to vector<16x8xf32>
    %cst_128 = arith.constant dense<0.000000e+00> : vector<16x16xf32>
    %380 = tpu.matmul %377, %378, %cst_128 {dimension_numbers = #tpu.dot_dimension_numbers<[1], [1], [0], [0], [0, 0, 1, 0], [], []>} : vector<16x8xf32>, vector<16x8xf32>, vector<16x16xf32> -> vector<16x16xf32>
    %381 = vector.broadcast %342 : vector<1x16xf32> to vector<16x16xf32>
    %382 = arith.addf %380, %381 : vector<16x16xf32>
    %cst_129 = arith.constant dense<0xFF800000> : vector<16xf32>
    %383 = vector.multi_reduction <maximumf>, %382, %cst_129 [1] : vector<16x16xf32> to vector<16xf32>
    %384 = vector.shape_cast %383 : vector<16xf32> to vector<16x1xf32>
    %385 = vector.broadcast %384 : vector<16x1xf32> to vector<16x16xf32>
    %386 = arith.subf %382, %385 : vector<16x16xf32>
    %387 = math.exp %386 : vector<16x16xf32>
    %cst_130 = arith.constant dense<0.000000e+00> : vector<16xf32>
    %388 = vector.multi_reduction <add>, %387, %cst_130 [1] : vector<16x16xf32> to vector<16xf32>
    %389 = vector.shape_cast %388 : vector<16xf32> to vector<16x1xf32>
    %390 = tpu.reciprocal %389 {approx = true} : vector<16x1xf32> -> vector<16x1xf32>
    %391 = vector.broadcast %390 : vector<16x1xf32> to vector<16x16xf32>
    %392 = arith.mulf %387, %391 : vector<16x16xf32>
    %cst_131 = arith.constant dense<0.000000e+00> : vector<16x8xf32>
    %393 = tpu.matmul %392, %379, %cst_131 {dimension_numbers = #tpu.dot_dimension_numbers<[1], [0], [0], [1], [0, 0, 1, 1], [], []>} : vector<16x16xf32>, vector<16x8xf32>, vector<16x8xf32> -> vector<16x8xf32>
    %394 = vector.extract_strided_slice %341 {offsets = [0, 24], sizes = [16, 8], strides = [1, 1]} : vector<16x96xf32> to vector<16x8xf32>
    %395 = vector.extract_strided_slice %341 {offsets = [0, 56], sizes = [16, 8], strides = [1, 1]} : vector<16x96xf32> to vector<16x8xf32>
    %396 = vector.extract_strided_slice %341 {offsets = [0, 88], sizes = [16, 8], strides = [1, 1]} : vector<16x96xf32> to vector<16x8xf32>
    %cst_132 = arith.constant dense<0.000000e+00> : vector<16x16xf32>
    %397 = tpu.matmul %394, %395, %cst_132 {dimension_numbers = #tpu.dot_dimension_numbers<[1], [1], [0], [0], [0, 0, 1, 0], [], []>} : vector<16x8xf32>, vector<16x8xf32>, vector<16x16xf32> -> vector<16x16xf32>
    %398 = vector.broadcast %342 : vector<1x16xf32> to vector<16x16xf32>
    %399 = arith.addf %397, %398 : vector<16x16xf32>
    %cst_133 = arith.constant dense<0xFF800000> : vector<16xf32>
    %400 = vector.multi_reduction <maximumf>, %399, %cst_133 [1] : vector<16x16xf32> to vector<16xf32>
    %401 = vector.shape_cast %400 : vector<16xf32> to vector<16x1xf32>
    %402 = vector.broadcast %401 : vector<16x1xf32> to vector<16x16xf32>
    %403 = arith.subf %399, %402 : vector<16x16xf32>
    %404 = math.exp %403 : vector<16x16xf32>
    %cst_134 = arith.constant dense<0.000000e+00> : vector<16xf32>
    %405 = vector.multi_reduction <add>, %404, %cst_134 [1] : vector<16x16xf32> to vector<16xf32>
    %406 = vector.shape_cast %405 : vector<16xf32> to vector<16x1xf32>
    %407 = tpu.reciprocal %406 {approx = true} : vector<16x1xf32> -> vector<16x1xf32>
    %408 = vector.broadcast %407 : vector<16x1xf32> to vector<16x16xf32>
    %409 = arith.mulf %404, %408 : vector<16x16xf32>
    %cst_135 = arith.constant dense<0.000000e+00> : vector<16x8xf32>
    %410 = tpu.matmul %409, %396, %cst_135 {dimension_numbers = #tpu.dot_dimension_numbers<[1], [0], [0], [1], [0, 0, 1, 1], [], []>} : vector<16x16xf32>, vector<16x8xf32>, vector<16x8xf32> -> vector<16x8xf32>
    %411 = tpu.concatenate %359, %376, %393, %410 in 1 : vector<16x8xf32>, vector<16x8xf32>, vector<16x8xf32>, vector<16x8xf32> -> vector<16x32xf32>
    %412 = tpu.concatenate %340, %411 in 0 : vector<16x32xf32>, vector<16x32xf32> -> vector<32x32xf32>
    %c0_136 = arith.constant 0 : index
    %c1_137 = arith.constant 1 : index
    %c0_138 = arith.constant 0 : index
    %c0_139 = arith.constant 0 : index
    %413 = vector.load %arg7[%c0_136, %c1_137, %c0_138, %c0_139] : memref<1x2x32x32xf32, #tpu.memory_space<vmem>>, vector<1x1x32x32xf32>
    %414 = vector.shape_cast %413 : vector<1x1x32x32xf32> to vector<32x32xf32>
    %cst_140 = arith.constant dense<0.000000e+00> : vector<32x32xf32>
    %415 = tpu.matmul %412, %414, %cst_140 {dimension_numbers = #tpu.dot_dimension_numbers<[1], [0], [0], [1], [0, 0, 1, 1], [], []>} : vector<32x32xf32>, vector<32x32xf32>, vector<32x32xf32> -> vector<32x32xf32>
    %416 = vector.broadcast %257 : vector<1x32xf32> to vector<32x32xf32>
    %417 = arith.addf %415, %416 : vector<32x32xf32>
    %418 = arith.addf %254, %417 : vector<32x32xf32>
    %cst_141 = arith.constant dense<0.000000e+00> : vector<32xf32>
    %419 = vector.multi_reduction <add>, %418, %cst_141 [1] : vector<32x32xf32> to vector<32xf32>
    %420 = vector.shape_cast %419 : vector<32xf32> to vector<32x1xf32>
    %cst_142 = arith.constant 3.200000e+01 : f32
    %421 = vector.broadcast %cst_142 : f32 to vector<32x1xf32>
    %422 = arith.divf %420, %421 : vector<32x1xf32>
    %423 = vector.broadcast %422 : vector<32x1xf32> to vector<32x32xf32>
    %424 = arith.subf %418, %423 : vector<32x32xf32>
    %425 = arith.mulf %424, %424 : vector<32x32xf32>
    %cst_143 = arith.constant dense<0.000000e+00> : vector<32xf32>
    %426 = vector.multi_reduction <add>, %425, %cst_143 [1] : vector<32x32xf32> to vector<32xf32>
    %427 = vector.shape_cast %426 : vector<32xf32> to vector<32x1xf32>
    %cst_144 = arith.constant 3.200000e+01 : f32
    %428 = vector.broadcast %cst_144 : f32 to vector<32x1xf32>
    %429 = arith.divf %427, %428 : vector<32x1xf32>
    %430 = vector.broadcast %422 : vector<32x1xf32> to vector<32x32xf32>
    %431 = arith.subf %418, %430 : vector<32x32xf32>
    %cst_145 = arith.constant 9.99999974E-6 : f32
    %432 = vector.broadcast %cst_145 : f32 to vector<32x1xf32>
    %433 = arith.addf %429, %432 : vector<32x1xf32>
    %434 = math.rsqrt %433 : vector<32x1xf32>
    %435 = vector.broadcast %434 : vector<32x1xf32> to vector<32x32xf32>
    %436 = arith.mulf %431, %435 : vector<32x32xf32>
    %437 = vector.broadcast %258 : vector<1x32xf32> to vector<32x32xf32>
    %438 = arith.mulf %436, %437 : vector<32x32xf32>
    %439 = vector.broadcast %259 : vector<1x32xf32> to vector<32x32xf32>
    %440 = arith.addf %438, %439 : vector<32x32xf32>
    %c0_146 = arith.constant 0 : index
    %c1_147 = arith.constant 1 : index
    %c0_148 = arith.constant 0 : index
    %c0_149 = arith.constant 0 : index
    %441 = vector.load %arg8[%c0_146, %c1_147, %c0_148, %c0_149] : memref<1x2x32x64xf32, #tpu.memory_space<vmem>>, vector<1x1x32x64xf32>
    %442 = vector.shape_cast %441 : vector<1x1x32x64xf32> to vector<32x64xf32>
    %cst_150 = arith.constant dense<0.000000e+00> : vector<32x64xf32>
    %443 = tpu.matmul %440, %442, %cst_150 {dimension_numbers = #tpu.dot_dimension_numbers<[1], [0], [0], [1], [0, 0, 1, 1], [], []>} : vector<32x32xf32>, vector<32x64xf32>, vector<32x64xf32> -> vector<32x64xf32>
    %c0_151 = arith.constant 0 : index
    %c1_152 = arith.constant 1 : index
    %c0_153 = arith.constant 0 : index
    %c0_154 = arith.constant 0 : index
    %444 = vector.load %arg9[%c0_151, %c1_152, %c0_153, %c0_154] : memref<1x2x1x64xf32, #tpu.memory_space<vmem>>, vector<1x1x1x64xf32>
    %445 = vector.shape_cast %444 : vector<1x1x1x64xf32> to vector<1x64xf32>
    %446 = vector.broadcast %445 : vector<1x64xf32> to vector<32x64xf32>
    %447 = arith.addf %443, %446 : vector<32x64xf32>
    %cst_155 = arith.constant 0.000000e+00 : f32
    %448 = vector.broadcast %cst_155 : f32 to vector<32x64xf32>
    %449 = arith.maximumf %447, %448 : vector<32x64xf32>
    %c0_156 = arith.constant 0 : index
    %c1_157 = arith.constant 1 : index
    %c0_158 = arith.constant 0 : index
    %c0_159 = arith.constant 0 : index
    %450 = vector.load %arg10[%c0_156, %c1_157, %c0_158, %c0_159] : memref<1x2x64x32xf32, #tpu.memory_space<vmem>>, vector<1x1x64x32xf32>
    %451 = vector.shape_cast %450 : vector<1x1x64x32xf32> to vector<64x32xf32>
    %cst_160 = arith.constant dense<0.000000e+00> : vector<32x32xf32>
    %452 = tpu.matmul %449, %451, %cst_160 {dimension_numbers = #tpu.dot_dimension_numbers<[1], [0], [0], [1], [0, 0, 1, 1], [], []>} : vector<32x64xf32>, vector<64x32xf32>, vector<32x32xf32> -> vector<32x32xf32>
    %453 = vector.broadcast %260 : vector<1x32xf32> to vector<32x32xf32>
    %454 = arith.addf %452, %453 : vector<32x32xf32>
    %455 = arith.addf %440, %454 : vector<32x32xf32>
    %cst_161 = arith.constant dense<0.000000e+00> : vector<32xf32>
    %456 = vector.multi_reduction <add>, %455, %cst_161 [1] : vector<32x32xf32> to vector<32xf32>
    %457 = vector.shape_cast %456 : vector<32xf32> to vector<32x1xf32>
    %cst_162 = arith.constant 3.200000e+01 : f32
    %458 = vector.broadcast %cst_162 : f32 to vector<32x1xf32>
    %459 = arith.divf %457, %458 : vector<32x1xf32>
    %460 = vector.broadcast %459 : vector<32x1xf32> to vector<32x32xf32>
    %461 = arith.subf %455, %460 : vector<32x32xf32>
    %462 = arith.mulf %461, %461 : vector<32x32xf32>
    %cst_163 = arith.constant dense<0.000000e+00> : vector<32xf32>
    %463 = vector.multi_reduction <add>, %462, %cst_163 [1] : vector<32x32xf32> to vector<32xf32>
    %464 = vector.shape_cast %463 : vector<32xf32> to vector<32x1xf32>
    %cst_164 = arith.constant 3.200000e+01 : f32
    %465 = vector.broadcast %cst_164 : f32 to vector<32x1xf32>
    %466 = arith.divf %464, %465 : vector<32x1xf32>
    %467 = vector.broadcast %459 : vector<32x1xf32> to vector<32x32xf32>
    %468 = arith.subf %455, %467 : vector<32x32xf32>
    %cst_165 = arith.constant 9.99999974E-6 : f32
    %469 = vector.broadcast %cst_165 : f32 to vector<32x1xf32>
    %470 = arith.addf %466, %469 : vector<32x1xf32>
    %471 = math.rsqrt %470 : vector<32x1xf32>
    %472 = vector.broadcast %471 : vector<32x1xf32> to vector<32x32xf32>
    %473 = arith.mulf %468, %472 : vector<32x32xf32>
    %474 = vector.broadcast %261 : vector<1x32xf32> to vector<32x32xf32>
    %475 = arith.mulf %473, %474 : vector<32x32xf32>
    %476 = vector.broadcast %262 : vector<1x32xf32> to vector<32x32xf32>
    %477 = arith.addf %475, %476 : vector<32x32xf32>
    %c0_166 = arith.constant 0 : index
    %c0_167 = arith.constant 0 : index
    %c0_168 = arith.constant 0 : index
    %478 = vector.load %arg12[%c0_166, %c0_167, %c0_168] : memref<1x32x32xf32, #tpu.memory_space<vmem>>, vector<1x32x32xf32>
    %479 = vector.shape_cast %478 : vector<1x32x32xf32> to vector<32x32xf32>
    %480 = vector.shape_cast %477 : vector<32x32xf32> to vector<1x32x32xf32>
    tpu.vector_store %arg12[%c0_166, %c0_167, %c0_168], %480 {strides = array<i32>} : memref<1x32x32xf32, #tpu.memory_space<vmem>>, vector<1x32x32xf32>,
    return
  }
  func.func @transform_0(%arg0: i32) -> (i32, i32, i32) {
    %c0_i32 = arith.constant 0 : i32
    %c0_i32_0 = arith.constant 0 : i32
    %c0_i32_1 = arith.constant 0 : i32
    return %arg0, %c0_i32, %c0_i32_0 : i32, i32, i32
  }
  func.func @transform_1(%arg0: i32) -> (i32, i32, i32) {
    %c0_i32 = arith.constant 0 : i32
    %c0_i32_0 = arith.constant 0 : i32
    %c0_i32_1 = arith.constant 0 : i32
    return %arg0, %c0_i32, %c0_i32_0 : i32, i32, i32
  }
  func.func @transform_2(%arg0: i32) -> (i32, i32) {
    %c0_i32 = arith.constant 0 : i32
    %c0_i32_0 = arith.constant 0 : i32
    %c0_i32_1 = arith.constant 0 : i32
    return %c0_i32, %c0_i32_0 : i32, i32
  }
  func.func @transform_3(%arg0: i32) -> (i32, i32, i32) {
    %c0_i32 = arith.constant 0 : i32
    %c0_i32_0 = arith.constant 0 : i32
    %c0_i32_1 = arith.constant 0 : i32
    return %arg0, %c0_i32, %c0_i32_0 : i32, i32, i32
  }
  func.func @transform_4(%arg0: i32) -> (i32, i32, i32, i32) {
    %c0_i32 = arith.constant 0 : i32
    %c0_i32_0 = arith.constant 0 : i32
    %c0_i32_1 = arith.constant 0 : i32
    %c0_i32_2 = arith.constant 0 : i32
    return %arg0, %c0_i32, %c0_i32_0, %c0_i32_1 : i32, i32, i32, i32
  }
  func.func @transform_5(%arg0: i32) -> (i32, i32, i32, i32) {
    %c0_i32 = arith.constant 0 : i32
    %c0_i32_0 = arith.constant 0 : i32
    %c0_i32_1 = arith.constant 0 : i32
    %c0_i32_2 = arith.constant 0 : i32
    return %arg0, %c0_i32, %c0_i32_0, %c0_i32_1 : i32, i32, i32, i32
  }
  func.func @transform_6(%arg0: i32) -> (i32, i32, i32, i32) {
    %c0_i32 = arith.constant 0 : i32
    %c0_i32_0 = arith.constant 0 : i32
    %c0_i32_1 = arith.constant 0 : i32
    %c0_i32_2 = arith.constant 0 : i32
    return %arg0, %c0_i32, %c0_i32_0, %c0_i32_1 : i32, i32, i32, i32
  }
  func.func @transform_7(%arg0: i32) -> (i32, i32, i32, i32) {
    %c0_i32 = arith.constant 0 : i32
    %c0_i32_0 = arith.constant 0 : i32
    %c0_i32_1 = arith.constant 0 : i32
    %c0_i32_2 = arith.constant 0 : i32
    return %arg0, %c0_i32, %c0_i32_0, %c0_i32_1 : i32, i32, i32, i32
  }
  func.func @transform_8(%arg0: i32) -> (i32, i32, i32, i32) {
    %c0_i32 = arith.constant 0 : i32
    %c0_i32_0 = arith.constant 0 : i32
    %c0_i32_1 = arith.constant 0 : i32
    %c0_i32_2 = arith.constant 0 : i32
    return %arg0, %c0_i32, %c0_i32_0, %c0_i32_1 : i32, i32, i32, i32
  }
  func.func @transform_9(%arg0: i32) -> (i32, i32, i32, i32) {
    %c0_i32 = arith.constant 0 : i32
    %c0_i32_0 = arith.constant 0 : i32
    %c0_i32_1 = arith.constant 0 : i32
    %c0_i32_2 = arith.constant 0 : i32
    return %arg0, %c0_i32, %c0_i32_0, %c0_i32_1 : i32, i32, i32, i32
  }
  func.func @transform_10(%arg0: i32) -> (i32, i32, i32, i32) {
    %c0_i32 = arith.constant 0 : i32
    %c0_i32_0 = arith.constant 0 : i32
    %c0_i32_1 = arith.constant 0 : i32
    %c0_i32_2 = arith.constant 0 : i32
    return %arg0, %c0_i32, %c0_i32_0, %c0_i32_1 : i32, i32, i32, i32
  }
  func.func @transform_11(%arg0: i32) -> (i32, i32, i32) {
    %c0_i32 = arith.constant 0 : i32
    %c0_i32_0 = arith.constant 0 : i32
    %c0_i32_1 = arith.constant 0 : i32
    return %arg0, %c0_i32, %c0_i32_0 : i32, i32, i32
  }
}

</mosaic_0001>

<llo_original>
// kernel: cross_modality_encoder.1
$region0: #{cross_modality_encoder.1}
  #allocation0 [shape = 'u32[]', space=smem, size = 0x4, offset = 0x4, fixed_abs, tag = 'smem constant byte address 0x4 - core index']
  #allocation1 [shape = 'u32[144,128]{1,0:T(1,128)}', space=vmem, size = 0x12000, scoped, tag = 'internal scratch']
  %s0 = inlined_call_operand.vmem [shape: f32[2,32,32], index: 0, kind: input, shape index: {}]
  %s1 = inlined_call_operand.vmem [shape: f32[2,2,16], index: 1, kind: input, shape index: {}]
  %s2 = inlined_call_operand.vmem [shape: f32[32,32], index: 2, kind: input, shape index: {}]
  %s3 = inlined_call_operand.vmem [shape: f32[2,2,32], index: 3, kind: input, shape index: {}]
  %s4 = inlined_call_operand.vmem [shape: f32[2,2,32,96], index: 4, kind: input, shape index: {}]
  %s5 = inlined_call_operand.vmem [shape: f32[2,2,1,96], index: 5, kind: input, shape index: {}]
  %s6 = inlined_call_operand.vmem [shape: f32[2,2,32,32], index: 6, kind: input, shape index: {}]
  %s7 = inlined_call_operand.vmem [shape: f32[2,2,32,64], index: 7, kind: input, shape index: {}]
  %s8 = inlined_call_operand.vmem [shape: f32[2,2,1,64], index: 8, kind: input, shape index: {}]
  %s9 = inlined_call_operand.vmem [shape: f32[2,2,64,32], index: 9, kind: input, shape index: {}]
  %s10 = inlined_call_operand.vmem [shape: f32[2,2,6,32], index: 10, kind: input, shape index: {}]
  %s11 = inlined_call_operand.vmem [shape: f32[2,32,32], index: 11, kind: output, shape index: {}]
  %s12 = sld [smem:[#allocation0]]
  $region77: #{cross_modality_encoder.1} parent=0
    _
  %s14 = ssub.s32 1, %s12
  %s15 = scalar_select 0, %s14, %s12
  loop: start=0, step=1, limit=4
  $region2: #{cross_modality_encoder.1} parent=0 // loop_pre_header
    _
  $region3: #{cross_modality_encoder.1} parent=0 // loop_header
    %s17 = sphi 0, %s21
    %p18 = scmp.ge.s32.totalorder %s17, 4
    %s27 = sphi 0, %s29
    %s30 = sphi 0, %s27
    %s31 = sphi 0, %s30
    %s47 = sphi 0, %s31
    %s53 = sphi 0, %s55
    %s56 = sphi 0, %s53
    %s57 = sphi 0, %s56
    %s73 = sphi 0, %s57
    %s77 = sphi 0, %s77
    %s79 = sphi 0, %s77
    %s80 = sphi 0, %s79
    %s94 = sphi 0, %s80
    %s100 = sphi 0, %s102
    %s103 = sphi 0, %s100
    %s104 = sphi 0, %s103
    %s120 = sphi 0, %s104
    %s126 = sphi 0, %s128
    %s129 = sphi 0, %s126
    %s130 = sphi 0, %s129
    %s146 = sphi 0, %s130
    %s152 = sphi 0, %s154
    %s155 = sphi 0, %s152
    %s156 = sphi 0, %s155
    %s172 = sphi 0, %s156
    %s178 = sphi 0, %s180
    %s181 = sphi 0, %s178
    %s182 = sphi 0, %s181
    %s198 = sphi 0, %s182
    %s204 = sphi 0, %s206
    %s207 = sphi 0, %s204
    %s208 = sphi 0, %s207
    %s224 = sphi 0, %s208
    %s230 = sphi 0, %s232
    %s233 = sphi 0, %s230
    %s234 = sphi 0, %s233
    %s250 = sphi 0, %s234
    %s256 = sphi 0, %s258
    %s259 = sphi 0, %s256
    %s260 = sphi 0, %s259
    %s276 = sphi 0, %s260
    %s282 = sphi 0, %s284
    %s285 = sphi 0, %s282
    %s286 = sphi 0, %s285
    %s302 = sphi 0, %s286
    %s308 = sphi 0, %s310
    %s311 = sphi 0, %s308
    %s312 = sphi 0, %s311
    %s328 = sphi 0, %s312
  $region4: #{cross_modality_encoder.1} parent=0 // loop_header_branch
    %20 = sbr.rel (%p18) target = $region8
  $region5: #{cross_modality_encoder.1} parent=0 // loop_body
    %s22 = ssub.s32 %s17, 1
    %s23 = ssub.s32 %s17, 2
    %s24 = sadd.s32 %s17, 1
    %s25 = ssub.s32 %s17, %s24
    %p26 = scmp.eq.s32.totalorder %s25, 0
    %s28 = sadd.s32 %s27, 1
    %s29 = scalar_select %p26, %s27, %s28
    %p32 = pneg %p26
    %p33 = scmp.eq.s32.totalorder %s17, 1
    %p34 = por %p32, %p33
    %p35 = scmp.ne.s32.totalorder %s27, %s30
    %p36 = scmp.eq.s32.totalorder %s17, 0
    %p37 = por %p35, %p36
    %p38 = scmp.ne.s32.totalorder %s27, %s30
    %p39 = scmp.eq.s32.totalorder %s22, 1
    %p40 = por %p38, %p39
    %p41 = scmp.ne.s32.totalorder %s30, %s31
    %p42 = scmp.eq.s32.totalorder %s22, 0
    %p43 = por %p41, %p42
    %p44 = scmp.ne.s32.totalorder %s30, %s31
    %p45 = scmp.eq.s32.totalorder %s23, 1
    %p46 = por %p44, %p45
    %p48 = scmp.ne.s32.totalorder %s31, %s47
    %p49 = scmp.eq.s32.totalorder %s23, 0
    %p50 = por %p48, %p49
    %s51 = ssub.s32 %s17, %s24
    %p52 = scmp.eq.s32.totalorder %s51, 0
    %s54 = sadd.s32 %s53, 1
    %s55 = scalar_select %p52, %s53, %s54
    %p58 = pneg %p52
    %p59 = scmp.eq.s32.totalorder %s17, 1
    %p60 = por %p58, %p59
    %p61 = scmp.ne.s32.totalorder %s53, %s56
    %p62 = scmp.eq.s32.totalorder %s17, 0
    %p63 = por %p61, %p62
    %p64 = scmp.ne.s32.totalorder %s53, %s56
    %p65 = scmp.eq.s32.totalorder %s22, 1
    %p66 = por %p64, %p65
    %p67 = scmp.ne.s32.totalorder %s56, %s57
    %p68 = scmp.eq.s32.totalorder %s22, 0
    %p69 = por %p67, %p68
    %p70 = scmp.ne.s32.totalorder %s56, %s57
    %p71 = scmp.eq.s32.totalorder %s23, 1
    %p72 = por %p70, %p71
    %p74 = scmp.ne.s32.totalorder %s57, %s73
    %p75 = scmp.eq.s32.totalorder %s23, 0
    %p76 = por %p74, %p75
    %s78 = sadd.s32 %s77, 1
    %p81 = scmp.eq.s32.totalorder %s17, 1
    %p82 = scmp.ne.s32.totalorder %s77, %s79
    %p83 = scmp.eq.s32.totalorder %s17, 0
    %p84 = por %p82, %p83
    %p85 = scmp.ne.s32.totalorder %s77, %s79
    %p86 = scmp.eq.s32.totalorder %s22, 1
    %p87 = por %p85, %p86
    %p88 = scmp.ne.s32.totalorder %s79, %s80
    %p89 = scmp.eq.s32.totalorder %s22, 0
    %p90 = por %p88, %p89
    %p91 = scmp.ne.s32.totalorder %s79, %s80
    %p92 = scmp.eq.s32.totalorder %s23, 1
    %p93 = por %p91, %p92
    %p95 = scmp.ne.s32.totalorder %s80, %s94
    %p96 = scmp.eq.s32.totalorder %s23, 0
    %p97 = por %p95, %p96
    %s98 = ssub.s32 %s17, %s24
    %p99 = scmp.eq.s32.totalorder %s98, 0
    %s101 = sadd.s32 %s100, 1
    %s102 = scalar_select %p99, %s100, %s101
    %p105 = pneg %p99
    %p106 = scmp.eq.s32.totalorder %s17, 1
    %p107 = por %p105, %p106
    %p108 = scmp.ne.s32.totalorder %s100, %s103
    %p109 = scmp.eq.s32.totalorder %s17, 0
    %p110 = por %p108, %p109
    %p111 = scmp.ne.s32.totalorder %s100, %s103
    %p112 = scmp.eq.s32.totalorder %s22, 1
    %p113 = por %p111, %p112
    %p114 = scmp.ne.s32.totalorder %s103, %s104
    %p115 = scmp.eq.s32.totalorder %s22, 0
    %p116 = por %p114, %p115
    %p117 = scmp.ne.s32.totalorder %s103, %s104
    %p118 = scmp.eq.s32.totalorder %s23, 1
    %p119 = por %p117, %p118
    %p121 = scmp.ne.s32.totalorder %s104, %s120
    %p122 = scmp.eq.s32.totalorder %s23, 0
    %p123 = por %p121, %p122
    %s124 = ssub.s32 %s17, %s24
    %p125 = scmp.eq.s32.totalorder %s124, 0
    %s127 = sadd.s32 %s126, 1
    %s128 = scalar_select %p125, %s126, %s127
    %p131 = pneg %p125
    %p132 = scmp.eq.s32.totalorder %s17, 1
    %p133 = por %p131, %p132
    %p134 = scmp.ne.s32.totalorder %s126, %s129
    %p135 = scmp.eq.s32.totalorder %s17, 0
    %p136 = por %p134, %p135
    %p137 = scmp.ne.s32.totalorder %s126, %s129
    %p138 = scmp.eq.s32.totalorder %s22, 1
    %p139 = por %p137, %p138
    %p140 = scmp.ne.s32.totalorder %s129, %s130
    %p141 = scmp.eq.s32.totalorder %s22, 0
    %p142 = por %p140, %p141
    %p143 = scmp.ne.s32.totalorder %s129, %s130
    %p144 = scmp.eq.s32.totalorder %s23, 1
    %p145 = por %p143, %p144
    %p147 = scmp.ne.s32.totalorder %s130, %s146
    %p148 = scmp.eq.s32.totalorder %s23, 0
    %p149 = por %p147, %p148
    %s150 = ssub.s32 %s17, %s24
    %p151 = scmp.eq.s32.totalorder %s150, 0
    %s153 = sadd.s32 %s152, 1
    %s154 = scalar_select %p151, %s152, %s153
    %p157 = pneg %p151
    %p158 = scmp.eq.s32.totalorder %s17, 1
    %p159 = por %p157, %p158
    %p160 = scmp.ne.s32.totalorder %s152, %s155
    %p161 = scmp.eq.s32.totalorder %s17, 0
    %p162 = por %p160, %p161
    %p163 = scmp.ne.s32.totalorder %s152, %s155
    %p164 = scmp.eq.s32.totalorder %s22, 1
    %p165 = por %p163, %p164
    %p166 = scmp.ne.s32.totalorder %s155, %s156
    %p167 = scmp.eq.s32.totalorder %s22, 0
    %p168 = por %p166, %p167
    %p169 = scmp.ne.s32.totalorder %s155, %s156
    %p170 = scmp.eq.s32.totalorder %s23, 1
    %p171 = por %p169, %p170
    %p173 = scmp.ne.s32.totalorder %s156, %s172
    %p174 = scmp.eq.s32.totalorder %s23, 0
    %p175 = por %p173, %p174
    %s176 = ssub.s32 %s17, %s24
    %p177 = scmp.eq.s32.totalorder %s176, 0
    %s179 = sadd.s32 %s178, 1
    %s180 = scalar_select %p177, %s178, %s179
    %p183 = pneg %p177
    %p184 = scmp.eq.s32.totalorder %s17, 1
    %p185 = por %p183, %p184
    %p186 = scmp.ne.s32.totalorder %s178, %s181
    %p187 = scmp.eq.s32.totalorder %s17, 0
    %p188 = por %p186, %p187
    %p189 = scmp.ne.s32.totalorder %s178, %s181
    %p190 = scmp.eq.s32.totalorder %s22, 1
    %p191 = por %p189, %p190
    %p192 = scmp.ne.s32.totalorder %s181, %s182
    %p193 = scmp.eq.s32.totalorder %s22, 0
    %p194 = por %p192, %p193
    %p195 = scmp.ne.s32.totalorder %s181, %s182
    %p196 = scmp.eq.s32.totalorder %s23, 1
    %p197 = por %p195, %p196
    %p199 = scmp.ne.s32.totalorder %s182, %s198
    %p200 = scmp.eq.s32.totalorder %s23, 0
    %p201 = por %p199, %p200
    %s202 = ssub.s32 %s17, %s24
    %p203 = scmp.eq.s32.totalorder %s202, 0
    %s205 = sadd.s32 %s204, 1
    %s206 = scalar_select %p203, %s204, %s205
    %p209 = pneg %p203
    %p210 = scmp.eq.s32.totalorder %s17, 1
    %p211 = por %p209, %p210
    %p212 = scmp.ne.s32.totalorder %s204, %s207
    %p213 = scmp.eq.s32.totalorder %s17, 0
    %p214 = por %p212, %p213
    %p215 = scmp.ne.s32.totalorder %s204, %s207
    %p216 = scmp.eq.s32.totalorder %s22, 1
    %p217 = por %p215, %p216
    %p218 = scmp.ne.s32.totalorder %s207, %s208
    %p219 = scmp.eq.s32.totalorder %s22, 0
    %p220 = por %p218, %p219
    %p221 = scmp.ne.s32.totalorder %s207, %s208
    %p222 = scmp.eq.s32.totalorder %s23, 1
    %p223 = por %p221, %p222
    %p225 = scmp.ne.s32.totalorder %s208, %s224
    %p226 = scmp.eq.s32.totalorder %s23, 0
    %p227 = por %p225, %p226
    %s228 = ssub.s32 %s17, %s24
    %p229 = scmp.eq.s32.totalorder %s228, 0
    %s231 = sadd.s32 %s230, 1
    %s232 = scalar_select %p229, %s230, %s231
    %p235 = pneg %p229
    %p236 = scmp.eq.s32.totalorder %s17, 1
    %p237 = por %p235, %p236
    %p238 = scmp.ne.s32.totalorder %s230, %s233
    %p239 = scmp.eq.s32.totalorder %s17, 0
    %p240 = por %p238, %p239
    %p241 = scmp.ne.s32.totalorder %s230, %s233
    %p242 = scmp.eq.s32.totalorder %s22, 1
    %p243 = por %p241, %p242
    %p244 = scmp.ne.s32.totalorder %s233, %s234
    %p245 = scmp.eq.s32.totalorder %s22, 0
    %p246 = por %p244, %p245
    %p247 = scmp.ne.s32.totalorder %s233, %s234
    %p248 = scmp.eq.s32.totalorder %s23, 1
    %p249 = por %p247, %p248
    %p251 = scmp.ne.s32.totalorder %s234, %s250
    %p252 = scmp.eq.s32.totalorder %s23, 0
    %p253 = por %p251, %p252
    %s254 = ssub.s32 %s17, %s24
    %p255 = scmp.eq.s32.totalorder %s254, 0
    %s257 = sadd.s32 %s256, 1
    %s258 = scalar_select %p255, %s256, %s257
    %p261 = pneg %p255
    %p262 = scmp.eq.s32.totalorder %s17, 1
    %p263 = por %p261, %p262
    %p264 = scmp.ne.s32.totalorder %s256, %s259
    %p265 = scmp.eq.s32.totalorder %s17, 0
    %p266 = por %p264, %p265
    %p267 = scmp.ne.s32.totalorder %s256, %s259
    %p268 = scmp.eq.s32.totalorder %s22, 1
    %p269 = por %p267, %p268
    %p270 = scmp.ne.s32.totalorder %s259, %s260
    %p271 = scmp.eq.s32.totalorder %s22, 0
    %p272 = por %p270, %p271
    %p273 = scmp.ne.s32.totalorder %s259, %s260
    %p274 = scmp.eq.s32.totalorder %s23, 1
    %p275 = por %p273, %p274
    %p277 = scmp.ne.s32.totalorder %s260, %s276
    %p278 = scmp.eq.s32.totalorder %s23, 0
    %p279 = por %p277, %p278
    %s280 = ssub.s32 %s17, %s24
    %p281 = scmp.eq.s32.totalorder %s280, 0
    %s283 = sadd.s32 %s282, 1
    %s284 = scalar_select %p281, %s282, %s283
    %p287 = pneg %p281
    %p288 = scmp.eq.s32.totalorder %s17, 1
    %p289 = por %p287, %p288
    %p290 = scmp.ne.s32.totalorder %s282, %s285
    %p291 = scmp.eq.s32.totalorder %s17, 0
    %p292 = por %p290, %p291
    %p293 = scmp.ne.s32.totalorder %s282, %s285
    %p294 = scmp.eq.s32.totalorder %s22, 1
    %p295 = por %p293, %p294
    %p296 = scmp.ne.s32.totalorder %s285, %s286
    %p297 = scmp.eq.s32.totalorder %s22, 0
    %p298 = por %p296, %p297
    %p299 = scmp.ne.s32.totalorder %s285, %s286
    %p300 = scmp.eq.s32.totalorder %s23, 1
    %p301 = por %p299, %p300
    %p303 = scmp.ne.s32.totalorder %s286, %s302
    %p304 = scmp.eq.s32.totalorder %s23, 0
    %p305 = por %p303, %p304
    %s306 = ssub.s32 %s17, %s24
    %p307 = scmp.eq.s32.totalorder %s306, 0
    %s309 = sadd.s32 %s308, 1
    %s310 = scalar_select %p307, %s308, %s309
    %p313 = pneg %p307
    %p314 = scmp.eq.s32.totalorder %s17, 1
    %p315 = por %p313, %p314
    %p316 = scmp.ne.s32.totalorder %s308, %s311
    %p317 = scmp.eq.s32.totalorder %s17, 0
    %p318 = por %p316, %p317
    %p319 = scmp.ne.s32.totalorder %s308, %s311
    %p320 = scmp.eq.s32.totalorder %s22, 1
    %p321 = por %p319, %p320
    %p322 = scmp.ne.s32.totalorder %s311, %s312
    %p323 = scmp.eq.s32.totalorder %s22, 0
    %p324 = por %p322, %p323
    %p325 = scmp.ne.s32.totalorder %s311, %s312
    %p326 = scmp.eq.s32.totalorder %s23, 1
    %p327 = por %p325, %p326
    %p329 = scmp.ne.s32.totalorder %s312, %s328
    %p330 = scmp.eq.s32.totalorder %s23, 0
    %p331 = por %p329, %p330
    %p332 = scmp.le.s32.totalorder 1, %s17
    %p333 = scmp.lt.s32.totalorder %s17, 3
    %p334 = pnand %p332, %p333
    %p335 = pneg %p334
    // Predicated region
    $region9: #{cross_modality_encoder.1} parent=5 // pred_check
      _
    $region10: #{cross_modality_encoder.1} parent=5 // pred_check_branch
      %337 = sbr.rel (%p334) target = $region12
    $region11: #{cross_modality_encoder.1} parent=5 // pred_region
      %s338 = ssub.s32 %s17, 1
      // Predicated region
      $region13: #{cross_modality_encoder.1} parent=11 // pred_check
        %p339 = pneg %p90
      $region14: #{cross_modality_encoder.1} parent=11 // pred_check_branch
        %341 = sbr.rel (%p339) target = $region16
      $region15: #{cross_modality_encoder.1} parent=11 // pred_region
        _
      $region16: #{cross_modality_encoder.1} parent=11 // pred_fallthru
        _
    $region12: #{cross_modality_encoder.1} parent=5 // pred_fallthru
      _
    %p342 = scmp.lt.s32.totalorder %s17, 2
    // Predicated region
    $region17: #{cross_modality_encoder.1} parent=5 // pred_check
      %p343 = pneg %p342
    $region18: #{cross_modality_encoder.1} parent=5 // pred_check_branch
      %345 = sbr.rel (%p343) target = $region20
    $region19: #{cross_modality_encoder.1} parent=5 // pred_region
      // Predicated region
      $region21: #{cross_modality_encoder.1} parent=19 // pred_check
        %p346 = pneg %p37
      $region22: #{cross_modality_encoder.1} parent=19 // pred_check_branch
        %348 = sbr.rel (%p346) target = $region24
      $region23: #{cross_modality_encoder.1} parent=19 // pred_region
        %p349 = scmp.lt.s32.totalorder %s17, 1
        %s350 = scalar_select %p349, %s17, 1
        %s351 = smul.addr %s350, 4
        %s352 = smul.addr %s351, 8
        %s353 = scalar_lea.vmem %s0, %s352
      $region24: #{cross_modality_encoder.1} parent=19 // pred_fallthru
        _
      // Predicated region
      $region25: #{cross_modality_encoder.1} parent=19 // pred_check
        %p354 = pneg %p63
      $region26: #{cross_modality_encoder.1} parent=19 // pred_check_branch
        %356 = sbr.rel (%p354) target = $region28
      $region27: #{cross_modality_encoder.1} parent=19 // pred_region
        %p357 = scmp.lt.s32.totalorder %s17, 1
        %s358 = scalar_select %p357, %s17, 1
        %s359 = smul.addr %s358, 2
        %s360 = scalar_lea.vmem %s1, %s359
      $region28: #{cross_modality_encoder.1} parent=19 // pred_fallthru
        _
      // Predicated region
      $region29: #{cross_modality_encoder.1} parent=19 // pred_check
        %p361 = pneg %p110
      $region30: #{cross_modality_encoder.1} parent=19 // pred_check_branch
        %363 = sbr.rel (%p361) target = $region32
      $region31: #{cross_modality_encoder.1} parent=19 // pred_region
        %p364 = scmp.lt.s32.totalorder %s17, 1
        %s365 = scalar_select %p364, %s17, 1
        %s366 = smul.addr %s365, 2
        %s367 = scalar_lea.vmem %s3, %s366
      $region32: #{cross_modality_encoder.1} parent=19 // pred_fallthru
        _
      // Predicated region
      $region33: #{cross_modality_encoder.1} parent=19 // pred_check
        %p368 = pneg %p136
      $region34: #{cross_modality_encoder.1} parent=19 // pred_check_branch
        %370 = sbr.rel (%p368) target = $region36
      $region35: #{cross_modality_encoder.1} parent=19 // pred_region
        %p371 = scmp.lt.s32.totalorder %s17, 1
        %s372 = scalar_select %p371, %s17, 1
        %s373 = smul.addr %s372, 8
        %s374 = smul.addr %s373, 8
        %s375 = scalar_lea.vmem %s4, %s374
      $region36: #{cross_modality_encoder.1} parent=19 // pred_fallthru
        _
      // Predicated region
      $region37: #{cross_modality_encoder.1} parent=19 // pred_check
        %p376 = pneg %p162
      $region38: #{cross_modality_encoder.1} parent=19 // pred_check_branch
        %378 = sbr.rel (%p376) target = $region40
      $region39: #{cross_modality_encoder.1} parent=19 // pred_region
        %p379 = scmp.lt.s32.totalorder %s17, 1
        %s380 = scalar_select %p379, %s17, 1
        %s381 = smul.addr %s380, 2
        %s382 = scalar_lea.vmem %s5, %s381
      $region40: #{cross_modality_encoder.1} parent=19 // pred_fallthru
        _
      // Predicated region
      $region41: #{cross_modality_encoder.1} parent=19 // pred_check
        %p383 = pneg %p188
      $region42: #{cross_modality_encoder.1} parent=19 // pred_check_branch
        %385 = sbr.rel (%p383) target = $region44
      $region43: #{cross_modality_encoder.1} parent=19 // pred_region
        %p386 = scmp.lt.s32.totalorder %s17, 1
        %s387 = scalar_select %p386, %s17, 1
        %s388 = smul.addr %s387, 8
        %s389 = smul.addr %s388, 8
        %s390 = scalar_lea.vmem %s6, %s389
      $region44: #{cross_modality_encoder.1} parent=19 // pred_fallthru
        _
      // Predicated region
      $region45: #{cross_modality_encoder.1} parent=19 // pred_check
        %p391 = pneg %p214
      $region46: #{cross_modality_encoder.1} parent=19 // pred_check_branch
        %393 = sbr.rel (%p391) target = $region48
      $region47: #{cross_modality_encoder.1} parent=19 // pred_region
        %p394 = scmp.lt.s32.totalorder %s17, 1
        %s395 = scalar_select %p394, %s17, 1
        %s396 = smul.addr %s395, 8
        %s397 = smul.addr %s396, 8
        %s398 = scalar_lea.vmem %s7, %s397
      $region48: #{cross_modality_encoder.1} parent=19 // pred_fallthru
        _
      // Predicated region
      $region49: #{cross_modality_encoder.1} parent=19 // pred_check
        %p399 = pneg %p240
      $region50: #{cross_modality_encoder.1} parent=19 // pred_check_branch
        %401 = sbr.rel (%p399) target = $region52
      $region51: #{cross_modality_encoder.1} parent=19 // pred_region
        %p402 = scmp.lt.s32.totalorder %s17, 1
        %s403 = scalar_select %p402, %s17, 1
        %s404 = smul.addr %s403, 2
        %s405 = scalar_lea.vmem %s8, %s404
      $region52: #{cross_modality_encoder.1} parent=19 // pred_fallthru
        _
      // Predicated region
      $region53: #{cross_modality_encoder.1} parent=19 // pred_check
        %p406 = pneg %p266
      $region54: #{cross_modality_encoder.1} parent=19 // pred_check_branch
        %408 = sbr.rel (%p406) target = $region56
      $region55: #{cross_modality_encoder.1} parent=19 // pred_region
        %p409 = scmp.lt.s32.totalorder %s17, 1
        %s410 = scalar_select %p409, %s17, 1
        %s411 = smul.addr %s410, 16
        %s412 = smul.addr %s411, 8
        %s413 = scalar_lea.vmem %s9, %s412
      $region56: #{cross_modality_encoder.1} parent=19 // pred_fallthru
        _
      // Predicated region
      $region57: #{cross_modality_encoder.1} parent=19 // pred_check
        %p414 = pneg %p292
      $region58: #{cross_modality_encoder.1} parent=19 // pred_check_branch
        %416 = sbr.rel (%p414) target = $region60
      $region59: #{cross_modality_encoder.1} parent=19 // pred_region
        %p417 = scmp.lt.s32.totalorder %s17, 1
        %s418 = scalar_select %p417, %s17, 1
        %s419 = smul.addr %s418, 2
        %s420 = smul.addr %s419, 8
        %s421 = scalar_lea.vmem %s10, %s420
      $region60: #{cross_modality_encoder.1} parent=19 // pred_fallthru
        _
    $region20: #{cross_modality_encoder.1} parent=5 // pred_fallthru
      _
    %p422 = scmp.le.s32.totalorder 1, %s17
    %p423 = scmp.lt.s32.totalorder %s17, 3
    %p424 = pnand %p422, %p423
    %p425 = pneg %p424
    // Predicated region
    $region61: #{cross_modality_encoder.1} parent=5 // pred_check
      _
    $region62: #{cross_modality_encoder.1} parent=5 // pred_check_branch
      %427 = sbr.rel (%p424) target = $region64
    $region63: #{cross_modality_encoder.1} parent=5 // pred_region
      %s428 = ssub.s32 %s17, 1
      %p429 = scmp.lt.s32.totalorder %s22, 1
      %s430 = scalar_select %p429, %s22, 1
      %s431 = smul.addr %s430, 4
      %s432 = smul.addr %s431, 8
      %s433 = scalar_lea.vmem %s0, %s432
      %p434 = pneg %p43
      %p435 = pneg %p40
      %p436 = scmp.lt.s32.totalorder %s22, 1
      %s437 = scalar_select %p436, %s22, 1
      %s438 = smul.addr %s437, 2
      %s439 = scalar_lea.vmem %s1, %s438
      %p440 = pneg %p69
      %p441 = pneg %p66
      %p442 = pneg %p90
      %p443 = pneg %p87
      %p444 = scmp.lt.s32.totalorder %s22, 1
      %s445 = scalar_select %p444, %s22, 1
      %s446 = smul.addr %s445, 2
      %s447 = scalar_lea.vmem %s3, %s446
      %p448 = pneg %p116
      %p449 = pneg %p113
      %p450 = scmp.lt.s32.totalorder %s22, 1
      %s451 = scalar_select %p450, %s22, 1
      %s452 = smul.addr %s451, 8
      %s453 = smul.addr %s452, 8
      %s454 = scalar_lea.vmem %s4, %s453
      %p455 = pneg %p142
      %p456 = pneg %p139
      %p457 = scmp.lt.s32.totalorder %s22, 1
      %s458 = scalar_select %p457, %s22, 1
      %s459 = smul.addr %s458, 2
      %s460 = scalar_lea.vmem %s5, %s459
      %p461 = pneg %p168
      %p462 = pneg %p165
      %p463 = scmp.lt.s32.totalorder %s22, 1
      %s464 = scalar_select %p463, %s22, 1
      %s465 = smul.addr %s464, 8
      %s466 = smul.addr %s465, 8
      %s467 = scalar_lea.vmem %s6, %s466
      %p468 = pneg %p194
      %p469 = pneg %p191
      %p470 = scmp.lt.s32.totalorder %s22, 1
      %s471 = scalar_select %p470, %s22, 1
      %s472 = smul.addr %s471, 8
      %s473 = smul.addr %s472, 8
      %s474 = scalar_lea.vmem %s7, %s473
      %p475 = pneg %p220
      %p476 = pneg %p217
      %p477 = scmp.lt.s32.totalorder %s22, 1
      %s478 = scalar_select %p477, %s22, 1
      %s479 = smul.addr %s478, 2
      %s480 = scalar_lea.vmem %s8, %s479
      %p481 = pneg %p246
      %p482 = pneg %p243
      %p483 = scmp.lt.s32.totalorder %s22, 1
      %s484 = scalar_select %p483, %s22, 1
      %s485 = smul.addr %s484, 16
      %s486 = smul.addr %s485, 8
      %s487 = scalar_lea.vmem %s9, %s486
      %p488 = pneg %p272
      %p489 = pneg %p269
      %p490 = scmp.lt.s32.totalorder %s22, 1
      %s491 = scalar_select %p490, %s22, 1
      %s492 = smul.addr %s491, 2
      %s493 = smul.addr %s492, 8
      %s494 = scalar_lea.vmem %s10, %s493
      %p495 = pneg %p298
      %p496 = pneg %p295
      %p497 = pneg %p324
      %p498 = pneg %p321
      %p499 = scmp.lt.s32.totalorder %s22, 1
      %s500 = scalar_select %p499, %s22, 1
      %s501 = smul.addr %s500, 4
      %s502 = smul.addr %s501, 8
      %s503 = scalar_lea.vmem %s11, %s502
      %p504 = scmp.lt.s32.totalorder %s22, 1
      %s505 = scalar_select %p504, %s22, 1
      %s506 = smul.addr %s505, 4
      %s507 = smul.addr %s506, 8
      %s508 = scalar_lea.vmem %s0, %s507
      %p509 = scmp.lt.s32.totalorder %s22, 1
      %s510 = scalar_select %p509, %s22, 1
      %s511 = smul.addr %s510, 2
      %s512 = scalar_lea.vmem %s1, %s511
      %p513 = scmp.lt.s32.totalorder %s22, 1
      %s514 = scalar_select %p513, %s22, 1
      %s515 = smul.addr %s514, 2
      %s516 = scalar_lea.vmem %s3, %s515
      %p517 = scmp.lt.s32.totalorder %s22, 1
      %s518 = scalar_select %p517, %s22, 1
      %s519 = smul.addr %s518, 8
      %s520 = smul.addr %s519, 8
      %s521 = scalar_lea.vmem %s4, %s520
      %p522 = scmp.lt.s32.totalorder %s22, 1
      %s523 = scalar_select %p522, %s22, 1
      %s524 = smul.addr %s523, 2
      %s525 = scalar_lea.vmem %s5, %s524
      %p526 = scmp.lt.s32.totalorder %s22, 1
      %s527 = scalar_select %p526, %s22, 1
      %s528 = smul.addr %s527, 8
      %s529 = smul.addr %s528, 8
      %s530 = scalar_lea.vmem %s6, %s529
      %p531 = scmp.lt.s32.totalorder %s22, 1
      %s532 = scalar_select %p531, %s22, 1
      %s533 = smul.addr %s532, 8
      %s534 = smul.addr %s533, 8
      %s535 = scalar_lea.vmem %s7, %s534
      %p536 = scmp.lt.s32.totalorder %s22, 1
      %s537 = scalar_select %p536, %s22, 1
      %s538 = smul.addr %s537, 2
      %s539 = scalar_lea.vmem %s8, %s538
      %p540 = scmp.lt.s32.totalorder %s22, 1
      %s541 = scalar_select %p540, %s22, 1
      %s542 = smul.addr %s541, 16
      %s543 = smul.addr %s542, 8
      %s544 = scalar_lea.vmem %s9, %s543
      %p545 = scmp.lt.s32.totalorder %s22, 1
      %s546 = scalar_select %p545, %s22, 1
      %s547 = smul.addr %s546, 2
      %s548 = smul.addr %s547, 8
      %s549 = scalar_lea.vmem %s10, %s548
      %p550 = scmp.lt.s32.totalorder %s22, 1
      %s551 = scalar_select %p550, %s22, 1
      %s552 = smul.addr %s551, 4
      %s553 = smul.addr %s552, 8
      %s554 = scalar_lea.vmem %s11, %s553
      %v555 = vld [vmem:[%s508] sm:$0xff]
      %v556 = vld [vmem:[%s508 + $0x8] sm:$0xff]
      %v557 = vld [vmem:[%s508 + $0x10] sm:$0xff]
      %v558 = vld [vmem:[%s508 + $0x18] sm:$0xff]
      %v559 = vld [vmem:[%s512] sm:$0x3]
      %v560 = vld [vmem:[%s516] sm:$0x1]
      %v561 = vld [vmem:[%s516 + $0x1] sm:$0x1]
      %vm562 = vcmask 261120
      %v563 = vsel %vm562, %v555, 0.0
      %564 = vadd.xlane.f32.xlu0 %v563
      %v565 = vpop.xlane.xlu0 %564
      %v566 = vsel %vm562, %v556, 0.0
      %567 = vadd.xlane.f32.xlu0 %v566
      %v568 = vpop.xlane.xlu0 %567
      %v569 = vsel %vm562, %v557, 0.0
      %570 = vadd.xlane.f32.xlu0 %v569
      %v571 = vpop.xlane.xlu0 %570
      %v572 = vsel %vm562, %v558, 0.0
      %573 = vadd.xlane.f32.xlu0 %v572
      %v574 = vpop.xlane.xlu0 %573
      %v575 = vrcp.pop 32.0
      %v576 = vmul.f32 %v565, %v575
      %v577 = vmul.f32 %v568, %v575
      %v578 = vmul.f32 %v571, %v575
      %v579 = vmul.f32 %v574, %v575
      %v580 = vsub.f32 %v555, %v576
      %v581 = vsub.f32 %v556, %v577
      %v582 = vsub.f32 %v557, %v578
      %v583 = vsub.f32 %v558, %v579
      %v584 = vmul.f32 %v580, %v580
      %v585 = vmul.f32 %v581, %v581
      %v586 = vmul.f32 %v582, %v582
      %v587 = vmul.f32 %v583, %v583
      %v588 = vsel %vm562, %v584, 0.0
      %589 = vadd.xlane.f32.xlu0 %v588
      %v590 = vpop.xlane.xlu0 %589
      %v591 = vsel %vm562, %v585, 0.0
      %592 = vadd.xlane.f32.xlu0 %v591
      %v593 = vpop.xlane.xlu0 %592
      %v594 = vsel %vm562, %v586, 0.0
      %595 = vadd.xlane.f32.xlu0 %v594
      %v596 = vpop.xlane.xlu0 %595
      %v597 = vsel %vm562, %v587, 0.0
      %598 = vadd.xlane.f32.xlu0 %v597
      %v599 = vpop.xlane.xlu0 %598
      %v600 = vmul.f32 %v590, %v575
      %v601 = vmul.f32 %v593, %v575
      %v602 = vmul.f32 %v596, %v575
      %v603 = vmul.f32 %v599, %v575
      %v604 = vadd.f32 %v600, 1e-05
      %v605 = vadd.f32 %v601, 1e-05
      %v606 = vadd.f32 %v602, 1e-05
      %v607 = vadd.f32 %v603, 1e-05
      %v608 = vrsqrt.pop %v604
      %v609 = vrsqrt.pop %v605
      %v610 = vrsqrt.pop %v606
      %v611 = vrsqrt.pop %v607
      %v612 = vmul.f32 %v580, %v608
      %v613 = vmul.f32 %v581, %v609
      %v614 = vmul.f32 %v582, %v610
      %v615 = vmul.f32 %v583, %v611
      %v616 = vlaneseq
      %v617 = vshrl.u32 %v616, 7
      %v618 = vsub.s32 0, %v617
      %v619 = vrot.slane %v560, %v618
      %v620 = vmul.f32 %v612, %v619
      %v621 = vmul.f32 %v613, %v619
      %v622 = vmul.f32 %v614, %v619
      %v623 = vmul.f32 %v615, %v619
      %v624 = vlaneseq
      %v625 = vshrl.u32 %v624, 7
      %v626 = vsub.s32 0, %v625
      %v627 = vrot.slane %v561, %v626
      %v628 = vadd.f32 %v620, %v627
      %v629 = vadd.f32 %v621, %v627
      %v630 = vadd.f32 %v622, %v627
      %v631 = vadd.f32 %v623, %v627
      %v632 = vld [vmem:[%s2] sm:$0xff]
      %v633 = vld [vmem:[%s2 + $0x8] sm:$0xff]
      %v634 = vld [vmem:[%s2 + $0x10] sm:$0xff]
      %v635 = vld [vmem:[%s2 + $0x18] sm:$0xff]
      %v636 = vadd.f32 %v628, %v632
      %v637 = vadd.f32 %v629, %v633
      %v638 = vadd.f32 %v630, %v634
      %v639 = vadd.f32 %v631, %v635
      %v640 = vld [vmem:[%s549] sm:$0x3f]
      %v641 = vld [vmem:[%s521] sm:$0xff]
      %v642 = vld [vmem:[%s521 + $0x8] sm:$0xff]
      %v643 = vld [vmem:[%s521 + $0x10] sm:$0xff]
      %v644 = vld [vmem:[%s521 + $0x18] sm:$0xff]
      %v645 = vld [vmem:[%s525] sm:$0x1]
      %v647 = vlaneseq
      %v648 = vshrl.u32 %v647, 7
      %v649 = vsub.s32 0, %v648
      %v650 = vrot.slane %v645, %v649
      %v653 = vsel %vm562, %v636, 0
      %v656 = vsel %vm562, %v637, 0
      %v659 = vsel %vm562, %v638, 0
      %v662 = vsel %vm562, %v639, 0
      %664 = vmatprep.subr.mxu0 0.0
      %665 = vmatpush1.msra.mxu0 0.0
      %666 = vmatprep.subr.mxu0 0.0
      %667 = vmatpush1.msra.mxu0 0.0
      %668 = vmatprep.subr.mxu0 0.0
      %669 = vmatpush1.msra.mxu0 0.0
      %670 = vmatprep.subr.mxu0 0.0
      %671 = vmatpush1.msra.mxu0 0.0
      %672 = vmatprep.subr.mxu0 0.0
      %673 = vmatpush1.msra.mxu0 0.0
      %674 = vmatprep.subr.mxu0 0.0
      %675 = vmatpush1.msra.mxu0 0.0
      %676 = vmatprep.subr.mxu0 0.0
      %677 = vmatpush1.msra.mxu0 0.0
      %678 = vmatprep.subr.mxu0 0.0
      %679 = vmatpush1.msra.mxu0 0.0
      %680 = vmatprep.subr.mxu0 0.0
      %681 = vmatpush1.msra.mxu0 0.0
      %682 = vmatprep.subr.mxu0 0.0
      %683 = vmatpush1.msra.mxu0 0.0
      %684 = vmatprep.subr.mxu0 0.0
      %685 = vmatpush1.msra.mxu0 0.0
      %686 = vmatprep.subr.mxu0 0.0
      %687 = vmatpush1.msra.mxu0 0.0
      %688 = vmatprep.subr.mxu0 0.0
      %689 = vmatpush1.msra.mxu0 %v644
      %690 = vmatprep.subr.mxu0 0.0
      %691 = vmatpush1.msra.mxu0 %v643
      %692 = vmatprep.subr.mxu0 0.0
      %693 = vmatpush1.msra.mxu0 %v642
      %694 = vmatprep.subr.mxu0 0.0
      %695 = vmatpush1.msra.mxu0 %v641
      %696 = vmatprep.subr.mxu0 0.0
      %697 = vmatpush2.msra.mxu0 0.0
      %698 = vmatprep.subr.mxu0 0.0
      %699 = vmatpush2.msra.mxu0 0.0
      %700 = vmatprep.subr.mxu0 0.0
      %701 = vmatpush2.msra.mxu0 0.0
      %702 = vmatprep.subr.mxu0 0.0
      %703 = vmatpush2.msra.mxu0 0.0
      %704 = vmatprep.subr.mxu0 0.0
      %705 = vmatpush2.msra.mxu0 0.0
      %706 = vmatprep.subr.mxu0 0.0
      %707 = vmatpush2.msra.mxu0 0.0
      %708 = vmatprep.subr.mxu0 0.0
      %709 = vmatpush2.msra.mxu0 0.0
      %710 = vmatprep.subr.mxu0 0.0
      %711 = vmatpush2.msra.mxu0 0.0
      %712 = vmatprep.subr.mxu0 0.0
      %713 = vmatpush2.msra.mxu0 0.0
      %714 = vmatprep.subr.mxu0 0.0
      %715 = vmatpush2.msra.mxu0 0.0
      %716 = vmatprep.subr.mxu0 0.0
      %717 = vmatpush2.msra.mxu0 0.0
      %718 = vmatprep.subr.mxu0 0.0
      %719 = vmatpush2.msra.mxu0 0.0
      %720 = vmatprep.subr.mxu0 0.0
      %721 = vmatpush2.msra.mxu0 0.0
      %722 = vmatprep.subr.mxu0 0.0
      %723 = vmatpush2.msra.mxu0 0.0
      %724 = vmatprep.subr.mxu0 0.0
      %725 = vmatpush2.msra.mxu0 0.0
      %726 = vmatprep.subr.mxu0 0.0
      %727 = vmatpush2.msra.mxu0 0.0
      %728 = vmatprep.mubr.f32.mxu0 0.0
      %729 = vmatmul.mubr.f32.gmra.mxu0 %v653
      %v730 = vpop.f32.mrf.mxu0
      %v731 = vadd.f32 %v650, %v730
      %v732 = vpop.f32.mrf.mxu0
      %733 = vmatprep.mubr.f32.mxu0 0.0
      %734 = vmatmul.mubr.f32.gmra.mxu0 %v656
      %v735 = vpop.f32.mrf.mxu0
      %v736 = vadd.f32 %v650, %v735
      %v737 = vpop.f32.mrf.mxu0
      %738 = vmatprep.mubr.f32.mxu0 0.0
      %739 = vmatmul.mubr.f32.gmra.mxu0 %v659
      %v740 = vpop.f32.mrf.mxu0
      %v741 = vadd.f32 %v650, %v740
      %v742 = vpop.f32.mrf.mxu0
      %743 = vmatprep.mubr.f32.mxu0 0.0
      %744 = vmatmul.mubr.f32.gmra.mxu0 %v662
      %v745 = vpop.f32.mrf.mxu0
      %v746 = vadd.f32 %v650, %v745
      %v747 = vpop.f32.mrf.mxu0
      %748 = vdwg.mxu0
      %v749 = vlaneseq
      %v750 = vshrl.u32 %v749, 7
      %v751 = vsub.s32 0, %v750
      %v752 = vrot.slane %v559, %v751
      %755 = vrot.lane.b32.xlu0 %v731, 96
      %v756 = vpop.permute.xlu0 %755
      %757 = vrot.lane.b32.xlu0 %v736, 96
      %v758 = vpop.permute.xlu0 %757
      %vm759 = vcmask 64512
      %v760 = vsel %vm759, %v731, 0
      %v762 = vsel %vm759, %v736, 0
      %v764 = vsel %vm759, %v756, 0
      %v766 = vsel %vm759, %v758, 0
      %768 = vmatprep.subr.mxu0 0.0
      %769 = vmatpush1.xpose.msra.mxu0 0.0
      %770 = vmatprep.subr.mxu0 0.0
      %771 = vmatpush1.xpose.msra.mxu0 0.0
      %772 = vmatprep.subr.mxu0 0.0
      %773 = vmatpush1.xpose.msra.mxu0 0.0
      %774 = vmatprep.subr.mxu0 0.0
      %775 = vmatpush1.xpose.msra.mxu0 0.0
      %776 = vmatprep.subr.mxu0 0.0
      %777 = vmatpush1.xpose.msra.mxu0 0.0
      %778 = vmatprep.subr.mxu0 0.0
      %779 = vmatpush1.xpose.msra.mxu0 0.0
      %780 = vmatprep.subr.mxu0 0.0
      %781 = vmatpush1.xpose.msra.mxu0 0.0
      %782 = vmatprep.subr.mxu0 0.0
      %783 = vmatpush1.xpose.msra.mxu0 0.0
      %784 = vmatprep.subr.mxu0 0.0
      %785 = vmatpush1.xpose.msra.mxu0 0.0
      %786 = vmatprep.subr.mxu0 0.0
      %787 = vmatpush1.xpose.msra.mxu0 0.0
      %788 = vmatprep.subr.mxu0 0.0
      %789 = vmatpush1.xpose.msra.mxu0 0.0
      %790 = vmatprep.subr.mxu0 0.0
      %791 = vmatpush1.xpose.msra.mxu0 0.0
      %792 = vmatprep.subr.mxu0 0.0
      %793 = vmatpush1.xpose.msra.mxu0 0.0
      %794 = vmatprep.subr.mxu0 0.0
      %795 = vmatpush1.xpose.msra.mxu0 0.0
      %796 = vmatprep.subr.mxu0 0.0
      %797 = vmatpush1.xpose.msra.mxu0 %v766
      %798 = vmatprep.subr.mxu0 0.0
      %799 = vmatpush1.xpose.msra.mxu0 %v764
      %800 = vmatprep.subr.mxu0 0.0
      %801 = vmatpush2.xpose.msra.mxu0 0.0
      %802 = vmatprep.subr.mxu0 0.0
      %803 = vmatpush2.xpose.msra.mxu0 0.0
      %804 = vmatprep.subr.mxu0 0.0
      %805 = vmatpush2.xpose.msra.mxu0 0.0
      %806 = vmatprep.subr.mxu0 0.0
      %807 = vmatpush2.xpose.msra.mxu0 0.0
      %808 = vmatprep.subr.mxu0 0.0
      %809 = vmatpush2.xpose.msra.mxu0 0.0
      %810 = vmatprep.subr.mxu0 0.0
      %811 = vmatpush2.xpose.msra.mxu0 0.0
      %812 = vmatprep.subr.mxu0 0.0
      %813 = vmatpush2.xpose.msra.mxu0 0.0
      %814 = vmatprep.subr.mxu0 0.0
      %815 = vmatpush2.xpose.msra.mxu0 0.0
      %816 = vmatprep.subr.mxu0 0.0
      %817 = vmatpush2.xpose.msra.mxu0 0.0
      %818 = vmatprep.subr.mxu0 0.0
      %819 = vmatpush2.xpose.msra.mxu0 0.0
      %820 = vmatprep.subr.mxu0 0.0
      %821 = vmatpush2.xpose.msra.mxu0 0.0
      %822 = vmatprep.subr.mxu0 0.0
      %823 = vmatpush2.xpose.msra.mxu0 0.0
      %824 = vmatprep.subr.mxu0 0.0
      %825 = vmatpush2.xpose.msra.mxu0 0.0
      %826 = vmatprep.subr.mxu0 0.0
      %827 = vmatpush2.xpose.msra.mxu0 0.0
      %828 = vmatprep.subr.mxu0 0.0
      %829 = vmatpush2.xpose.msra.mxu0 0.0
      %830 = vmatprep.subr.mxu0 0.0
      %831 = vmatpush2.xpose.msra.mxu0 0.0
      %832 = vmatprep.mubr.f32.mxu0 0.0
      %833 = vmatmul.mubr.f32.gmra.mxu0 %v760
      %v834 = vpop.f32.mrf.mxu0
      %v835 = vadd.f32 %v752, %v834
      %v836 = vpop.f32.mrf.mxu0
      %837 = vmatprep.mubr.f32.mxu0 0.0
      %838 = vmatmul.mubr.f32.gmra.mxu0 %v762
      %v839 = vpop.f32.mrf.mxu0
      %v840 = vadd.f32 %v752, %v839
      %v841 = vpop.f32.mrf.mxu0
      %842 = vdwg.mxu0
      %vm843 = vcmask 130048
      %v844 = vsel %vm843, %v835, -inf
      %845 = vmax.xlane.f32.xlu0 %v844
      %v846 = vpop.xlane.xlu0 %845
      %v847 = vsel %vm843, %v840, -inf
      %848 = vmax.xlane.f32.xlu0 %v847
      %v849 = vpop.xlane.xlu0 %848
      %v850 = vsub.f32 %v835, %v846
      %v851 = vsub.f32 %v840, %v849
      %v852 = vmul.f32 %v850, 1.442695
      %v853 = vpow.pop %v852
      %v854 = vmul.f32 %v851, 1.442695
      %v855 = vpow.pop %v854
      %v856 = vsel %vm843, %v853, 0.0
      %857 = vadd.xlane.f32.xlu0 %v856
      %v858 = vpop.xlane.xlu0 %857
      %v859 = vsel %vm843, %v855, 0.0
      %860 = vadd.xlane.f32.xlu0 %v859
      %v861 = vpop.xlane.xlu0 %860
      %v862 = vrcp.pop %v858
      %v863 = vrcp.pop %v861
      %v864 = vmul.f32 %v853, %v862
      %v865 = vmul.f32 %v855, %v863
      %866 = vrot.lane.b32.xlu0 %v731, 64
      %v867 = vpop.permute.xlu0 %866
      %868 = vrot.lane.b32.xlu0 %v736, 64
      %v869 = vpop.permute.xlu0 %868
      %v873 = vsel %vm843, %v864, 0
      %v876 = vsel %vm843, %v865, 0
      %878 = vmatprep.subr.mxu0 0.0
      %879 = vmatpush1.msra.mxu0 0.0
      %880 = vmatprep.subr.mxu0 0.0
      %881 = vmatpush1.msra.mxu0 0.0
      %882 = vmatprep.subr.mxu0 0.0
      %883 = vmatpush1.msra.mxu0 0.0
      %884 = vmatprep.subr.mxu0 0.0
      %885 = vmatpush1.msra.mxu0 0.0
      %886 = vmatprep.subr.mxu0 0.0
      %887 = vmatpush1.msra.mxu0 0.0
      %888 = vmatprep.subr.mxu0 0.0
      %889 = vmatpush1.msra.mxu0 0.0
      %890 = vmatprep.subr.mxu0 0.0
      %891 = vmatpush1.msra.mxu0 0.0
      %892 = vmatprep.subr.mxu0 0.0
      %893 = vmatpush1.msra.mxu0 0.0
      %894 = vmatprep.subr.mxu0 0.0
      %895 = vmatpush1.msra.mxu0 0.0
      %896 = vmatprep.subr.mxu0 0.0
      %897 = vmatpush1.msra.mxu0 0.0
      %898 = vmatprep.subr.mxu0 0.0
      %899 = vmatpush1.msra.mxu0 0.0
      %900 = vmatprep.subr.mxu0 0.0
      %901 = vmatpush1.msra.mxu0 0.0
      %902 = vmatprep.subr.mxu0 0.0
      %903 = vmatpush1.msra.mxu0 0.0
      %904 = vmatprep.subr.mxu0 0.0
      %905 = vmatpush1.msra.mxu0 0.0
      %906 = vmatprep.subr.mxu0 0.0
      %907 = vmatpush1.msra.mxu0 %v869
      %908 = vmatprep.subr.mxu0 0.0
      %909 = vmatpush1.msra.mxu0 %v867
      %910 = vmatprep.subr.mxu0 0.0
      %911 = vmatpush2.msra.mxu0 0.0
      %912 = vmatprep.subr.mxu0 0.0
      %913 = vmatpush2.msra.mxu0 0.0
      %914 = vmatprep.subr.mxu0 0.0
      %915 = vmatpush2.msra.mxu0 0.0
      %916 = vmatprep.subr.mxu0 0.0
      %917 = vmatpush2.msra.mxu0 0.0
      %918 = vmatprep.subr.mxu0 0.0
      %919 = vmatpush2.msra.mxu0 0.0
      %920 = vmatprep.subr.mxu0 0.0
      %921 = vmatpush2.msra.mxu0 0.0
      %922 = vmatprep.subr.mxu0 0.0
      %923 = vmatpush2.msra.mxu0 0.0
      %924 = vmatprep.subr.mxu0 0.0
      %925 = vmatpush2.msra.mxu0 0.0
      %926 = vmatprep.subr.mxu0 0.0
      %927 = vmatpush2.msra.mxu0 0.0
      %928 = vmatprep.subr.mxu0 0.0
      %929 = vmatpush2.msra.mxu0 0.0
      %930 = vmatprep.subr.mxu0 0.0
      %931 = vmatpush2.msra.mxu0 0.0
      %932 = vmatprep.subr.mxu0 0.0
      %933 = vmatpush2.msra.mxu0 0.0
      %934 = vmatprep.subr.mxu0 0.0
      %935 = vmatpush2.msra.mxu0 0.0
      %936 = vmatprep.subr.mxu0 0.0
      %937 = vmatpush2.msra.mxu0 0.0
      %938 = vmatprep.subr.mxu0 0.0
      %939 = vmatpush2.msra.mxu0 0.0
      %940 = vmatprep.subr.mxu0 0.0
      %941 = vmatpush2.msra.mxu0 0.0
      %942 = vmatprep.mubr.f32.mxu0 0.0
      %943 = vmatmul.mubr.f32.gmra.mxu0 %v873
      %v944 = vpop.f32.mrf.mxu0
      %v945 = vadd.f32 0.0, %v944
      %v946 = vpop.f32.mrf.mxu0
      %947 = vmatprep.mubr.f32.mxu0 0.0
      %948 = vmatmul.mubr.f32.gmra.mxu0 %v876
      %v949 = vpop.f32.mrf.mxu0
      %v950 = vadd.f32 0.0, %v949
      %v951 = vpop.f32.mrf.mxu0
      %952 = vdwg.mxu0
      %953 = vrot.lane.b32.xlu0 %v731, 120
      %v954 = vpop.permute.xlu0 %953
      %955 = vrot.lane.b32.xlu0 %v736, 120
      %v956 = vpop.permute.xlu0 %955
      %957 = vrot.lane.b32.xlu0 %v731, 88
      %v958 = vpop.permute.xlu0 %957
      %959 = vrot.lane.b32.xlu0 %v736, 88
      %v960 = vpop.permute.xlu0 %959
      %v961 = vsel %vm759, %v954, 0
      %v963 = vsel %vm759, %v956, 0
      %v965 = vsel %vm759, %v958, 0
      %v967 = vsel %vm759, %v960, 0
      %969 = vmatprep.subr.mxu0 0.0
      %970 = vmatpush1.xpose.msra.mxu0 0.0
      %971 = vmatprep.subr.mxu0 0.0
      %972 = vmatpush1.xpose.msra.mxu0 0.0
      %973 = vmatprep.subr.mxu0 0.0
      %974 = vmatpush1.xpose.msra.mxu0 0.0
      %975 = vmatprep.subr.mxu0 0.0
      %976 = vmatpush1.xpose.msra.mxu0 0.0
      %977 = vmatprep.subr.mxu0 0.0
      %978 = vmatpush1.xpose.msra.mxu0 0.0
      %979 = vmatprep.subr.mxu0 0.0
      %980 = vmatpush1.xpose.msra.mxu0 0.0
      %981 = vmatprep.subr.mxu0 0.0
      %982 = vmatpush1.xpose.msra.mxu0 0.0
      %983 = vmatprep.subr.mxu0 0.0
      %984 = vmatpush1.xpose.msra.mxu0 0.0
      %985 = vmatprep.subr.mxu0 0.0
      %986 = vmatpush1.xpose.msra.mxu0 0.0
      %987 = vmatprep.subr.mxu0 0.0
      %988 = vmatpush1.xpose.msra.mxu0 0.0
      %989 = vmatprep.subr.mxu0 0.0
      %990 = vmatpush1.xpose.msra.mxu0 0.0
      %991 = vmatprep.subr.mxu0 0.0
      %992 = vmatpush1.xpose.msra.mxu0 0.0
      %993 = vmatprep.subr.mxu0 0.0
      %994 = vmatpush1.xpose.msra.mxu0 0.0
      %995 = vmatprep.subr.mxu0 0.0
      %996 = vmatpush1.xpose.msra.mxu0 0.0
      %997 = vmatprep.subr.mxu0 0.0
      %998 = vmatpush1.xpose.msra.mxu0 %v967
      %999 = vmatprep.subr.mxu0 0.0
      %1000 = vmatpush1.xpose.msra.mxu0 %v965
      %1001 = vmatprep.subr.mxu0 0.0
      %1002 = vmatpush2.xpose.msra.mxu0 0.0
      %1003 = vmatprep.subr.mxu0 0.0
      %1004 = vmatpush2.xpose.msra.mxu0 0.0
      %1005 = vmatprep.subr.mxu0 0.0
      %1006 = vmatpush2.xpose.msra.mxu0 0.0
      %1007 = vmatprep.subr.mxu0 0.0
      %1008 = vmatpush2.xpose.msra.mxu0 0.0
      %1009 = vmatprep.subr.mxu0 0.0
      %1010 = vmatpush2.xpose.msra.mxu0 0.0
      %1011 = vmatprep.subr.mxu0 0.0
      %1012 = vmatpush2.xpose.msra.mxu0 0.0
      %1013 = vmatprep.subr.mxu0 0.0
      %1014 = vmatpush2.xpose.msra.mxu0 0.0
      %1015 = vmatprep.subr.mxu0 0.0
      %1016 = vmatpush2.xpose.msra.mxu0 0.0
      %1017 = vmatprep.subr.mxu0 0.0
      %1018 = vmatpush2.xpose.msra.mxu0 0.0
      %1019 = vmatprep.subr.mxu0 0.0
      %1020 = vmatpush2.xpose.msra.mxu0 0.0
      %1021 = vmatprep.subr.mxu0 0.0
      %1022 = vmatpush2.xpose.msra.mxu0 0.0
      %1023 = vmatprep.subr.mxu0 0.0
      %1024 = vmatpush2.xpose.msra.mxu0 0.0
      %1025 = vmatprep.subr.mxu0 0.0
      %1026 = vmatpush2.xpose.msra.mxu0 0.0
      %1027 = vmatprep.subr.mxu0 0.0
      %1028 = vmatpush2.xpose.msra.mxu0 0.0
      %1029 = vmatprep.subr.mxu0 0.0
      %1030 = vmatpush2.xpose.msra.mxu0 0.0
      %1031 = vmatprep.subr.mxu0 0.0
      %1032 = vmatpush2.xpose.msra.mxu0 0.0
      %1033 = vmatprep.mubr.f32.mxu0 0.0
      %1034 = vmatmul.mubr.f32.gmra.mxu0 %v961
      %v1035 = vpop.f32.mrf.mxu0
      %v1036 = vadd.f32 %v752, %v1035
      %v1037 = vpop.f32.mrf.mxu0
      %1038 = vmatprep.mubr.f32.mxu0 0.0
      %1039 = vmatmul.mubr.f32.gmra.mxu0 %v963
      %v1040 = vpop.f32.mrf.mxu0
      %v1041 = vadd.f32 %v752, %v1040
      %v1042 = vpop.f32.mrf.mxu0
      %1043 = vdwg.mxu0
      %v1044 = vsel %vm843, %v1036, -inf
      %1045 = vmax.xlane.f32.xlu0 %v1044
      %v1046 = vpop.xlane.xlu0 %1045
      %v1047 = vsel %vm843, %v1041, -inf
      %1048 = vmax.xlane.f32.xlu0 %v1047
      %v1049 = vpop.xlane.xlu0 %1048
      %v1050 = vsub.f32 %v1036, %v1046
      %v1051 = vsub.f32 %v1041, %v1049
      %v1052 = vmul.f32 %v1050, 1.442695
      %v1053 = vpow.pop %v1052
      %v1054 = vmul.f32 %v1051, 1.442695
      %v1055 = vpow.pop %v1054
      %v1056 = vsel %vm843, %v1053, 0.0
      %1057 = vadd.xlane.f32.xlu0 %v1056
      %v1058 = vpop.xlane.xlu0 %1057
      %v1059 = vsel %vm843, %v1055, 0.0
      %1060 = vadd.xlane.f32.xlu0 %v1059
      %v1061 = vpop.xlane.xlu0 %1060
      %v1062 = vrcp.pop %v1058
      %v1063 = vrcp.pop %v1061
      %v1064 = vmul.f32 %v1053, %v1062
      %v1065 = vmul.f32 %v1055, %v1063
      %1066 = vrot.lane.b32.xlu0 %v731, 56
      %v1067 = vpop.permute.xlu0 %1066
      %1068 = vrot.lane.b32.xlu0 %v736, 56
      %v1069 = vpop.permute.xlu0 %1068
      %v1073 = vsel %vm843, %v1064, 0
      %v1076 = vsel %vm843, %v1065, 0
      %1078 = vmatprep.subr.mxu0 0.0
      %1079 = vmatpush1.msra.mxu0 0.0
      %1080 = vmatprep.subr.mxu0 0.0
      %1081 = vmatpush1.msra.mxu0 0.0
      %1082 = vmatprep.subr.mxu0 0.0
      %1083 = vmatpush1.msra.mxu0 0.0
      %1084 = vmatprep.subr.mxu0 0.0
      %1085 = vmatpush1.msra.mxu0 0.0
      %1086 = vmatprep.subr.mxu0 0.0
      %1087 = vmatpush1.msra.mxu0 0.0
      %1088 = vmatprep.subr.mxu0 0.0
      %1089 = vmatpush1.msra.mxu0 0.0
      %1090 = vmatprep.subr.mxu0 0.0
      %1091 = vmatpush1.msra.mxu0 0.0
      %1092 = vmatprep.subr.mxu0 0.0
      %1093 = vmatpush1.msra.mxu0 0.0
      %1094 = vmatprep.subr.mxu0 0.0
      %1095 = vmatpush1.msra.mxu0 0.0
      %1096 = vmatprep.subr.mxu0 0.0
      %1097 = vmatpush1.msra.mxu0 0.0
      %1098 = vmatprep.subr.mxu0 0.0
      %1099 = vmatpush1.msra.mxu0 0.0
      %1100 = vmatprep.subr.mxu0 0.0
      %1101 = vmatpush1.msra.mxu0 0.0
      %1102 = vmatprep.subr.mxu0 0.0
      %1103 = vmatpush1.msra.mxu0 0.0
      %1104 = vmatprep.subr.mxu0 0.0
      %1105 = vmatpush1.msra.mxu0 0.0
      %1106 = vmatprep.subr.mxu0 0.0
      %1107 = vmatpush1.msra.mxu0 %v1069
      %1108 = vmatprep.subr.mxu0 0.0
      %1109 = vmatpush1.msra.mxu0 %v1067
      %1110 = vmatprep.subr.mxu0 0.0
      %1111 = vmatpush2.msra.mxu0 0.0
      %1112 = vmatprep.subr.mxu0 0.0
      %1113 = vmatpush2.msra.mxu0 0.0
      %1114 = vmatprep.subr.mxu0 0.0
      %1115 = vmatpush2.msra.mxu0 0.0
      %1116 = vmatprep.subr.mxu0 0.0
      %1117 = vmatpush2.msra.mxu0 0.0
      %1118 = vmatprep.subr.mxu0 0.0
      %1119 = vmatpush2.msra.mxu0 0.0
      %1120 = vmatprep.subr.mxu0 0.0
      %1121 = vmatpush2.msra.mxu0 0.0
      %1122 = vmatprep.subr.mxu0 0.0
      %1123 = vmatpush2.msra.mxu0 0.0
      %1124 = vmatprep.subr.mxu0 0.0
      %1125 = vmatpush2.msra.mxu0 0.0
      %1126 = vmatprep.subr.mxu0 0.0
      %1127 = vmatpush2.msra.mxu0 0.0
      %1128 = vmatprep.subr.mxu0 0.0
      %1129 = vmatpush2.msra.mxu0 0.0
      %1130 = vmatprep.subr.mxu0 0.0
      %1131 = vmatpush2.msra.mxu0 0.0
      %1132 = vmatprep.subr.mxu0 0.0
      %1133 = vmatpush2.msra.mxu0 0.0
      %1134 = vmatprep.subr.mxu0 0.0
      %1135 = vmatpush2.msra.mxu0 0.0
      %1136 = vmatprep.subr.mxu0 0.0
      %1137 = vmatpush2.msra.mxu0 0.0
      %1138 = vmatprep.subr.mxu0 0.0
      %1139 = vmatpush2.msra.mxu0 0.0
      %1140 = vmatprep.subr.mxu0 0.0
      %1141 = vmatpush2.msra.mxu0 0.0
      %1142 = vmatprep.mubr.f32.mxu0 0.0
      %1143 = vmatmul.mubr.f32.gmra.mxu0 %v1073
      %v1144 = vpop.f32.mrf.mxu0
      %v1145 = vadd.f32 0.0, %v1144
      %v1146 = vpop.f32.mrf.mxu0
      %1147 = vmatprep.mubr.f32.mxu0 0.0
      %1148 = vmatmul.mubr.f32.gmra.mxu0 %v1076
      %v1149 = vpop.f32.mrf.mxu0
      %v1150 = vadd.f32 0.0, %v1149
      %v1151 = vpop.f32.mrf.mxu0
      %1152 = vdwg.mxu0
      %1153 = vrot.lane.b32.xlu0 %v731, 112
      %v1154 = vpop.permute.xlu0 %1153
      %1155 = vrot.lane.b32.xlu0 %v736, 112
      %v1156 = vpop.permute.xlu0 %1155
      %1157 = vrot.lane.b32.xlu0 %v731, 80
      %v1158 = vpop.permute.xlu0 %1157
      %1159 = vrot.lane.b32.xlu0 %v736, 80
      %v1160 = vpop.permute.xlu0 %1159
      %v1161 = vsel %vm759, %v1154, 0
      %v1163 = vsel %vm759, %v1156, 0
      %v1165 = vsel %vm759, %v1158, 0
      %v1167 = vsel %vm759, %v1160, 0
      %1169 = vmatprep.subr.mxu0 0.0
      %1170 = vmatpush1.xpose.msra.mxu0 0.0
      %1171 = vmatprep.subr.mxu0 0.0
      %1172 = vmatpush1.xpose.msra.mxu0 0.0
      %1173 = vmatprep.subr.mxu0 0.0
      %1174 = vmatpush1.xpose.msra.mxu0 0.0
      %1175 = vmatprep.subr.mxu0 0.0
      %1176 = vmatpush1.xpose.msra.mxu0 0.0
      %1177 = vmatprep.subr.mxu0 0.0
      %1178 = vmatpush1.xpose.msra.mxu0 0.0
      %1179 = vmatprep.subr.mxu0 0.0
      %1180 = vmatpush1.xpose.msra.mxu0 0.0
      %1181 = vmatprep.subr.mxu0 0.0
      %1182 = vmatpush1.xpose.msra.mxu0 0.0
      %1183 = vmatprep.subr.mxu0 0.0
      %1184 = vmatpush1.xpose.msra.mxu0 0.0
      %1185 = vmatprep.subr.mxu0 0.0
      %1186 = vmatpush1.xpose.msra.mxu0 0.0
      %1187 = vmatprep.subr.mxu0 0.0
      %1188 = vmatpush1.xpose.msra.mxu0 0.0
      %1189 = vmatprep.subr.mxu0 0.0
      %1190 = vmatpush1.xpose.msra.mxu0 0.0
      %1191 = vmatprep.subr.mxu0 0.0
      %1192 = vmatpush1.xpose.msra.mxu0 0.0
      %1193 = vmatprep.subr.mxu0 0.0
      %1194 = vmatpush1.xpose.msra.mxu0 0.0
      %1195 = vmatprep.subr.mxu0 0.0
      %1196 = vmatpush1.xpose.msra.mxu0 0.0
      %1197 = vmatprep.subr.mxu0 0.0
      %1198 = vmatpush1.xpose.msra.mxu0 %v1167
      %1199 = vmatprep.subr.mxu0 0.0
      %1200 = vmatpush1.xpose.msra.mxu0 %v1165
      %1201 = vmatprep.subr.mxu0 0.0
      %1202 = vmatpush2.xpose.msra.mxu0 0.0
      %1203 = vmatprep.subr.mxu0 0.0
      %1204 = vmatpush2.xpose.msra.mxu0 0.0
      %1205 = vmatprep.subr.mxu0 0.0
      %1206 = vmatpush2.xpose.msra.mxu0 0.0
      %1207 = vmatprep.subr.mxu0 0.0
      %1208 = vmatpush2.xpose.msra.mxu0 0.0
      %1209 = vmatprep.subr.mxu0 0.0
      %1210 = vmatpush2.xpose.msra.mxu0 0.0
      %1211 = vmatprep.subr.mxu0 0.0
      %1212 = vmatpush2.xpose.msra.mxu0 0.0
      %1213 = vmatprep.subr.mxu0 0.0
      %1214 = vmatpush2.xpose.msra.mxu0 0.0
      %1215 = vmatprep.subr.mxu0 0.0
      %1216 = vmatpush2.xpose.msra.mxu0 0.0
      %1217 = vmatprep.subr.mxu0 0.0
      %1218 = vmatpush2.xpose.msra.mxu0 0.0
      %1219 = vmatprep.subr.mxu0 0.0
      %1220 = vmatpush2.xpose.msra.mxu0 0.0
      %1221 = vmatprep.subr.mxu0 0.0
      %1222 = vmatpush2.xpose.msra.mxu0 0.0
      %1223 = vmatprep.subr.mxu0 0.0
      %1224 = vmatpush2.xpose.msra.mxu0 0.0
      %1225 = vmatprep.subr.mxu0 0.0
      %1226 = vmatpush2.xpose.msra.mxu0 0.0
      %1227 = vmatprep.subr.mxu0 0.0
      %1228 = vmatpush2.xpose.msra.mxu0 0.0
      %1229 = vmatprep.subr.mxu0 0.0
      %1230 = vmatpush2.xpose.msra.mxu0 0.0
      %1231 = vmatprep.subr.mxu0 0.0
      %1232 = vmatpush2.xpose.msra.mxu0 0.0
      %1233 = vmatprep.mubr.f32.mxu0 0.0
      %1234 = vmatmul.mubr.f32.gmra.mxu0 %v1161
      %v1235 = vpop.f32.mrf.mxu0
      %v1236 = vadd.f32 %v752, %v1235
      %v1237 = vpop.f32.mrf.mxu0
      %1238 = vmatprep.mubr.f32.mxu0 0.0
      %1239 = vmatmul.mubr.f32.gmra.mxu0 %v1163
      %v1240 = vpop.f32.mrf.mxu0
      %v1241 = vadd.f32 %v752, %v1240
      %v1242 = vpop.f32.mrf.mxu0
      %1243 = vdwg.mxu0
      %v1244 = vsel %vm843, %v1236, -inf
      %1245 = vmax.xlane.f32.xlu0 %v1244
      %v1246 = vpop.xlane.xlu0 %1245
      %v1247 = vsel %vm843, %v1241, -inf
      %1248 = vmax.xlane.f32.xlu0 %v1247
      %v1249 = vpop.xlane.xlu0 %1248
      %v1250 = vsub.f32 %v1236, %v1246
      %v1251 = vsub.f32 %v1241, %v1249
      %v1252 = vmul.f32 %v1250, 1.442695
      %v1253 = vpow.pop %v1252
      %v1254 = vmul.f32 %v1251, 1.442695
      %v1255 = vpow.pop %v1254
      %v1256 = vsel %vm843, %v1253, 0.0
      %1257 = vadd.xlane.f32.xlu0 %v1256
      %v1258 = vpop.xlane.xlu0 %1257
      %v1259 = vsel %vm843, %v1255, 0.0
      %1260 = vadd.xlane.f32.xlu0 %v1259
      %v1261 = vpop.xlane.xlu0 %1260
      %v1262 = vrcp.pop %v1258
      %v1263 = vrcp.pop %v1261
      %v1264 = vmul.f32 %v1253, %v1262
      %v1265 = vmul.f32 %v1255, %v1263
      %1266 = vrot.lane.b32.xlu0 %v731, 48
      %v1267 = vpop.permute.xlu0 %1266
      %1268 = vrot.lane.b32.xlu0 %v736, 48
      %v1269 = vpop.permute.xlu0 %1268
      %v1273 = vsel %vm843, %v1264, 0
      %v1276 = vsel %vm843, %v1265, 0
      %1278 = vmatprep.subr.mxu0 0.0
      %1279 = vmatpush1.msra.mxu0 0.0
      %1280 = vmatprep.subr.mxu0 0.0
      %1281 = vmatpush1.msra.mxu0 0.0
      %1282 = vmatprep.subr.mxu0 0.0
      %1283 = vmatpush1.msra.mxu0 0.0
      %1284 = vmatprep.subr.mxu0 0.0
      %1285 = vmatpush1.msra.mxu0 0.0
      %1286 = vmatprep.subr.mxu0 0.0
      %1287 = vmatpush1.msra.mxu0 0.0
      %1288 = vmatprep.subr.mxu0 0.0
      %1289 = vmatpush1.msra.mxu0 0.0
      %1290 = vmatprep.subr.mxu0 0.0
      %1291 = vmatpush1.msra.mxu0 0.0
      %1292 = vmatprep.subr.mxu0 0.0
      %1293 = vmatpush1.msra.mxu0 0.0
      %1294 = vmatprep.subr.mxu0 0.0
      %1295 = vmatpush1.msra.mxu0 0.0
      %1296 = vmatprep.subr.mxu0 0.0
      %1297 = vmatpush1.msra.mxu0 0.0
      %1298 = vmatprep.subr.mxu0 0.0
      %1299 = vmatpush1.msra.mxu0 0.0
      %1300 = vmatprep.subr.mxu0 0.0
      %1301 = vmatpush1.msra.mxu0 0.0
      %1302 = vmatprep.subr.mxu0 0.0
      %1303 = vmatpush1.msra.mxu0 0.0
      %1304 = vmatprep.subr.mxu0 0.0
      %1305 = vmatpush1.msra.mxu0 0.0
      %1306 = vmatprep.subr.mxu0 0.0
      %1307 = vmatpush1.msra.mxu0 %v1269
      %1308 = vmatprep.subr.mxu0 0.0
      %1309 = vmatpush1.msra.mxu0 %v1267
      %1310 = vmatprep.subr.mxu0 0.0
      %1311 = vmatpush2.msra.mxu0 0.0
      %1312 = vmatprep.subr.mxu0 0.0
      %1313 = vmatpush2.msra.mxu0 0.0
      %1314 = vmatprep.subr.mxu0 0.0
      %1315 = vmatpush2.msra.mxu0 0.0
      %1316 = vmatprep.subr.mxu0 0.0
      %1317 = vmatpush2.msra.mxu0 0.0
      %1318 = vmatprep.subr.mxu0 0.0
      %1319 = vmatpush2.msra.mxu0 0.0
      %1320 = vmatprep.subr.mxu0 0.0
      %1321 = vmatpush2.msra.mxu0 0.0
      %1322 = vmatprep.subr.mxu0 0.0
      %1323 = vmatpush2.msra.mxu0 0.0
      %1324 = vmatprep.subr.mxu0 0.0
      %1325 = vmatpush2.msra.mxu0 0.0
      %1326 = vmatprep.subr.mxu0 0.0
      %1327 = vmatpush2.msra.mxu0 0.0
      %1328 = vmatprep.subr.mxu0 0.0
      %1329 = vmatpush2.msra.mxu0 0.0
      %1330 = vmatprep.subr.mxu0 0.0
      %1331 = vmatpush2.msra.mxu0 0.0
      %1332 = vmatprep.subr.mxu0 0.0
      %1333 = vmatpush2.msra.mxu0 0.0
      %1334 = vmatprep.subr.mxu0 0.0
      %1335 = vmatpush2.msra.mxu0 0.0
      %1336 = vmatprep.subr.mxu0 0.0
      %1337 = vmatpush2.msra.mxu0 0.0
      %1338 = vmatprep.subr.mxu0 0.0
      %1339 = vmatpush2.msra.mxu0 0.0
      %1340 = vmatprep.subr.mxu0 0.0
      %1341 = vmatpush2.msra.mxu0 0.0
      %1342 = vmatprep.mubr.f32.mxu0 0.0
      %1343 = vmatmul.mubr.f32.gmra.mxu0 %v1273
      %v1344 = vpop.f32.mrf.mxu0
      %v1345 = vadd.f32 0.0, %v1344
      %v1346 = vpop.f32.mrf.mxu0
      %1347 = vmatprep.mubr.f32.mxu0 0.0
      %1348 = vmatmul.mubr.f32.gmra.mxu0 %v1276
      %v1349 = vpop.f32.mrf.mxu0
      %v1350 = vadd.f32 0.0, %v1349
      %v1351 = vpop.f32.mrf.mxu0
      %1352 = vdwg.mxu0
      %1353 = vrot.lane.b32.xlu0 %v731, 104
      %v1354 = vpop.permute.xlu0 %1353
      %1355 = vrot.lane.b32.xlu0 %v736, 104
      %v1356 = vpop.permute.xlu0 %1355
      %1357 = vrot.lane.b32.xlu0 %v731, 72
      %v1358 = vpop.permute.xlu0 %1357
      %1359 = vrot.lane.b32.xlu0 %v736, 72
      %v1360 = vpop.permute.xlu0 %1359
      %v1361 = vsel %vm759, %v1354, 0
      %v1363 = vsel %vm759, %v1356, 0
      %v1365 = vsel %vm759, %v1358, 0
      %v1367 = vsel %vm759, %v1360, 0
      %1369 = vmatprep.subr.mxu0 0.0
      %1370 = vmatpush1.xpose.msra.mxu0 0.0
      %1371 = vmatprep.subr.mxu0 0.0
      %1372 = vmatpush1.xpose.msra.mxu0 0.0
      %1373 = vmatprep.subr.mxu0 0.0
      %1374 = vmatpush1.xpose.msra.mxu0 0.0
      %1375 = vmatprep.subr.mxu0 0.0
      %1376 = vmatpush1.xpose.msra.mxu0 0.0
      %1377 = vmatprep.subr.mxu0 0.0
      %1378 = vmatpush1.xpose.msra.mxu0 0.0
      %1379 = vmatprep.subr.mxu0 0.0
      %1380 = vmatpush1.xpose.msra.mxu0 0.0
      %1381 = vmatprep.subr.mxu0 0.0
      %1382 = vmatpush1.xpose.msra.mxu0 0.0
      %1383 = vmatprep.subr.mxu0 0.0
      %1384 = vmatpush1.xpose.msra.mxu0 0.0
      %1385 = vmatprep.subr.mxu0 0.0
      %1386 = vmatpush1.xpose.msra.mxu0 0.0
      %1387 = vmatprep.subr.mxu0 0.0
      %1388 = vmatpush1.xpose.msra.mxu0 0.0
      %1389 = vmatprep.subr.mxu0 0.0
      %1390 = vmatpush1.xpose.msra.mxu0 0.0
      %1391 = vmatprep.subr.mxu0 0.0
      %1392 = vmatpush1.xpose.msra.mxu0 0.0
      %1393 = vmatprep.subr.mxu0 0.0
      %1394 = vmatpush1.xpose.msra.mxu0 0.0
      %1395 = vmatprep.subr.mxu0 0.0
      %1396 = vmatpush1.xpose.msra.mxu0 0.0
      %1397 = vmatprep.subr.mxu0 0.0
      %1398 = vmatpush1.xpose.msra.mxu0 %v1367
      %1399 = vmatprep.subr.mxu0 0.0
      %1400 = vmatpush1.xpose.msra.mxu0 %v1365
      %1401 = vmatprep.subr.mxu0 0.0
      %1402 = vmatpush2.xpose.msra.mxu0 0.0
      %1403 = vmatprep.subr.mxu0 0.0
      %1404 = vmatpush2.xpose.msra.mxu0 0.0
      %1405 = vmatprep.subr.mxu0 0.0
      %1406 = vmatpush2.xpose.msra.mxu0 0.0
      %1407 = vmatprep.subr.mxu0 0.0
      %1408 = vmatpush2.xpose.msra.mxu0 0.0
      %1409 = vmatprep.subr.mxu0 0.0
      %1410 = vmatpush2.xpose.msra.mxu0 0.0
      %1411 = vmatprep.subr.mxu0 0.0
      %1412 = vmatpush2.xpose.msra.mxu0 0.0
      %1413 = vmatprep.subr.mxu0 0.0
      %1414 = vmatpush2.xpose.msra.mxu0 0.0
      %1415 = vmatprep.subr.mxu0 0.0
      %1416 = vmatpush2.xpose.msra.mxu0 0.0
      %1417 = vmatprep.subr.mxu0 0.0
      %1418 = vmatpush2.xpose.msra.mxu0 0.0
      %1419 = vmatprep.subr.mxu0 0.0
      %1420 = vmatpush2.xpose.msra.mxu0 0.0
      %1421 = vmatprep.subr.mxu0 0.0
      %1422 = vmatpush2.xpose.msra.mxu0 0.0
      %1423 = vmatprep.subr.mxu0 0.0
      %1424 = vmatpush2.xpose.msra.mxu0 0.0
      %1425 = vmatprep.subr.mxu0 0.0
      %1426 = vmatpush2.xpose.msra.mxu0 0.0
      %1427 = vmatprep.subr.mxu0 0.0
      %1428 = vmatpush2.xpose.msra.mxu0 0.0
      %1429 = vmatprep.subr.mxu0 0.0
      %1430 = vmatpush2.xpose.msra.mxu0 0.0
      %1431 = vmatprep.subr.mxu0 0.0
      %1432 = vmatpush2.xpose.msra.mxu0 0.0
      %1433 = vmatprep.mubr.f32.mxu0 0.0
      %1434 = vmatmul.mubr.f32.gmra.mxu0 %v1361
      %v1435 = vpop.f32.mrf.mxu0
      %v1436 = vadd.f32 %v752, %v1435
      %v1437 = vpop.f32.mrf.mxu0
      %1438 = vmatprep.mubr.f32.mxu0 0.0
      %1439 = vmatmul.mubr.f32.gmra.mxu0 %v1363
      %v1440 = vpop.f32.mrf.mxu0
      %v1441 = vadd.f32 %v752, %v1440
      %v1442 = vpop.f32.mrf.mxu0
      %1443 = vdwg.mxu0
      %v1444 = vsel %vm843, %v1436, -inf
      %1445 = vmax.xlane.f32.xlu0 %v1444
      %v1446 = vpop.xlane.xlu0 %1445
      %v1447 = vsel %vm843, %v1441, -inf
      %1448 = vmax.xlane.f32.xlu0 %v1447
      %v1449 = vpop.xlane.xlu0 %1448
      %v1450 = vsub.f32 %v1436, %v1446
      %v1451 = vsub.f32 %v1441, %v1449
      %v1452 = vmul.f32 %v1450, 1.442695
      %v1453 = vpow.pop %v1452
      %v1454 = vmul.f32 %v1451, 1.442695
      %v1455 = vpow.pop %v1454
      %v1456 = vsel %vm843, %v1453, 0.0
      %1457 = vadd.xlane.f32.xlu0 %v1456
      %v1458 = vpop.xlane.xlu0 %1457
      %v1459 = vsel %vm843, %v1455, 0.0
      %1460 = vadd.xlane.f32.xlu0 %v1459
      %v1461 = vpop.xlane.xlu0 %1460
      %v1462 = vrcp.pop %v1458
      %v1463 = vrcp.pop %v1461
      %v1464 = vmul.f32 %v1453, %v1462
      %v1465 = vmul.f32 %v1455, %v1463
      %1466 = vrot.lane.b32.xlu0 %v731, 40
      %v1467 = vpop.permute.xlu0 %1466
      %1468 = vrot.lane.b32.xlu0 %v736, 40
      %v1469 = vpop.permute.xlu0 %1468
      %v1473 = vsel %vm843, %v1464, 0
      %v1476 = vsel %vm843, %v1465, 0
      %1478 = vmatprep.subr.mxu0 0.0
      %1479 = vmatpush1.msra.mxu0 0.0
      %1480 = vmatprep.subr.mxu0 0.0
      %1481 = vmatpush1.msra.mxu0 0.0
      %1482 = vmatprep.subr.mxu0 0.0
      %1483 = vmatpush1.msra.mxu0 0.0
      %1484 = vmatprep.subr.mxu0 0.0
      %1485 = vmatpush1.msra.mxu0 0.0
      %1486 = vmatprep.subr.mxu0 0.0
      %1487 = vmatpush1.msra.mxu0 0.0
      %1488 = vmatprep.subr.mxu0 0.0
      %1489 = vmatpush1.msra.mxu0 0.0
      %1490 = vmatprep.subr.mxu0 0.0
      %1491 = vmatpush1.msra.mxu0 0.0
      %1492 = vmatprep.subr.mxu0 0.0
      %1493 = vmatpush1.msra.mxu0 0.0
      %1494 = vmatprep.subr.mxu0 0.0
      %1495 = vmatpush1.msra.mxu0 0.0
      %1496 = vmatprep.subr.mxu0 0.0
      %1497 = vmatpush1.msra.mxu0 0.0
      %1498 = vmatprep.subr.mxu0 0.0
      %1499 = vmatpush1.msra.mxu0 0.0
      %1500 = vmatprep.subr.mxu0 0.0
      %1501 = vmatpush1.msra.mxu0 0.0
      %1502 = vmatprep.subr.mxu0 0.0
      %1503 = vmatpush1.msra.mxu0 0.0
      %1504 = vmatprep.subr.mxu0 0.0
      %1505 = vmatpush1.msra.mxu0 0.0
      %1506 = vmatprep.subr.mxu0 0.0
      %1507 = vmatpush1.msra.mxu0 %v1469
      %1508 = vmatprep.subr.mxu0 0.0
      %1509 = vmatpush1.msra.mxu0 %v1467
      %1510 = vmatprep.subr.mxu0 0.0
      %1511 = vmatpush2.msra.mxu0 0.0
      %1512 = vmatprep.subr.mxu0 0.0
      %1513 = vmatpush2.msra.mxu0 0.0
      %1514 = vmatprep.subr.mxu0 0.0
      %1515 = vmatpush2.msra.mxu0 0.0
      %1516 = vmatprep.subr.mxu0 0.0
      %1517 = vmatpush2.msra.mxu0 0.0
      %1518 = vmatprep.subr.mxu0 0.0
      %1519 = vmatpush2.msra.mxu0 0.0
      %1520 = vmatprep.subr.mxu0 0.0
      %1521 = vmatpush2.msra.mxu0 0.0
      %1522 = vmatprep.subr.mxu0 0.0
      %1523 = vmatpush2.msra.mxu0 0.0
      %1524 = vmatprep.subr.mxu0 0.0
      %1525 = vmatpush2.msra.mxu0 0.0
      %1526 = vmatprep.subr.mxu0 0.0
      %1527 = vmatpush2.msra.mxu0 0.0
      %1528 = vmatprep.subr.mxu0 0.0
      %1529 = vmatpush2.msra.mxu0 0.0
      %1530 = vmatprep.subr.mxu0 0.0
      %1531 = vmatpush2.msra.mxu0 0.0
      %1532 = vmatprep.subr.mxu0 0.0
      %1533 = vmatpush2.msra.mxu0 0.0
      %1534 = vmatprep.subr.mxu0 0.0
      %1535 = vmatpush2.msra.mxu0 0.0
      %1536 = vmatprep.subr.mxu0 0.0
      %1537 = vmatpush2.msra.mxu0 0.0
      %1538 = vmatprep.subr.mxu0 0.0
      %1539 = vmatpush2.msra.mxu0 0.0
      %1540 = vmatprep.subr.mxu0 0.0
      %1541 = vmatpush2.msra.mxu0 0.0
      %1542 = vmatprep.mubr.f32.mxu0 0.0
      %1543 = vmatmul.mubr.f32.gmra.mxu0 %v1473
      %v1544 = vpop.f32.mrf.mxu0
      %v1545 = vadd.f32 0.0, %v1544
      %v1546 = vpop.f32.mrf.mxu0
      %1547 = vmatprep.mubr.f32.mxu0 0.0
      %1548 = vmatmul.mubr.f32.gmra.mxu0 %v1476
      %v1549 = vpop.f32.mrf.mxu0
      %v1550 = vadd.f32 0.0, %v1549
      %v1551 = vpop.f32.mrf.mxu0
      %1552 = vdwg.mxu0
      %1555 = vrot.lane.b32.xlu0 %v1145, 8
      %v1556 = vpop.permute.xlu0 %1555
      %1557 = vrot.lane.b32.xlu0 %v1150, 8
      %v1558 = vpop.permute.xlu0 %1557
      %1563 = vrot.lane.b32.xlu0 %v1345, 16
      %v1564 = vpop.permute.xlu0 %1563
      %1565 = vrot.lane.b32.xlu0 %v1350, 16
      %v1566 = vpop.permute.xlu0 %1565
      %1571 = vrot.lane.b32.xlu0 %v1545, 24
      %v1572 = vpop.permute.xlu0 %1571
      %1573 = vrot.lane.b32.xlu0 %v1550, 24
      %v1574 = vpop.permute.xlu0 %1573
      %v1577 = vsel %vm759, %v945, %v1556
      %v1578 = vsel %vm759, %v950, %v1558
      %v1579 = vsel %vm843, %v1577, %v1564
      %v1580 = vsel %vm843, %v1578, %v1566
      %vm1581 = vcmask 195584
      %v1582 = vsel %vm1581, %v1579, %v1572
      %v1583 = vsel %vm1581, %v1580, %v1574
      %v1584 = vlaneseq
      %v1585 = vshrl.u32 %v1584, 7
      %v1586 = vsub.s32 1, %v1585
      %v1587 = vrot.slane %v559, %v1586
      %1590 = vrot.lane.b32.xlu0 %v741, 96
      %v1591 = vpop.permute.xlu0 %1590
      %1592 = vrot.lane.b32.xlu0 %v746, 96
      %v1593 = vpop.permute.xlu0 %1592
      %v1594 = vsel %vm759, %v741, 0
      %v1596 = vsel %vm759, %v746, 0
      %v1598 = vsel %vm759, %v1591, 0
      %v1600 = vsel %vm759, %v1593, 0
      %1602 = vmatprep.subr.mxu0 0.0
      %1603 = vmatpush1.xpose.msra.mxu0 0.0
      %1604 = vmatprep.subr.mxu0 0.0
      %1605 = vmatpush1.xpose.msra.mxu0 0.0
      %1606 = vmatprep.subr.mxu0 0.0
      %1607 = vmatpush1.xpose.msra.mxu0 0.0
      %1608 = vmatprep.subr.mxu0 0.0
      %1609 = vmatpush1.xpose.msra.mxu0 0.0
      %1610 = vmatprep.subr.mxu0 0.0
      %1611 = vmatpush1.xpose.msra.mxu0 0.0
      %1612 = vmatprep.subr.mxu0 0.0
      %1613 = vmatpush1.xpose.msra.mxu0 0.0
      %1614 = vmatprep.subr.mxu0 0.0
      %1615 = vmatpush1.xpose.msra.mxu0 0.0
      %1616 = vmatprep.subr.mxu0 0.0
      %1617 = vmatpush1.xpose.msra.mxu0 0.0
      %1618 = vmatprep.subr.mxu0 0.0
      %1619 = vmatpush1.xpose.msra.mxu0 0.0
      %1620 = vmatprep.subr.mxu0 0.0
      %1621 = vmatpush1.xpose.msra.mxu0 0.0
      %1622 = vmatprep.subr.mxu0 0.0
      %1623 = vmatpush1.xpose.msra.mxu0 0.0
      %1624 = vmatprep.subr.mxu0 0.0
      %1625 = vmatpush1.xpose.msra.mxu0 0.0
      %1626 = vmatprep.subr.mxu0 0.0
      %1627 = vmatpush1.xpose.msra.mxu0 0.0
      %1628 = vmatprep.subr.mxu0 0.0
      %1629 = vmatpush1.xpose.msra.mxu0 0.0
      %1630 = vmatprep.subr.mxu0 0.0
      %1631 = vmatpush1.xpose.msra.mxu0 %v1600
      %1632 = vmatprep.subr.mxu0 0.0
      %1633 = vmatpush1.xpose.msra.mxu0 %v1598
      %1634 = vmatprep.subr.mxu0 0.0
      %1635 = vmatpush2.xpose.msra.mxu0 0.0
      %1636 = vmatprep.subr.mxu0 0.0
      %1637 = vmatpush2.xpose.msra.mxu0 0.0
      %1638 = vmatprep.subr.mxu0 0.0
      %1639 = vmatpush2.xpose.msra.mxu0 0.0
      %1640 = vmatprep.subr.mxu0 0.0
      %1641 = vmatpush2.xpose.msra.mxu0 0.0
      %1642 = vmatprep.subr.mxu0 0.0
      %1643 = vmatpush2.xpose.msra.mxu0 0.0
      %1644 = vmatprep.subr.mxu0 0.0
      %1645 = vmatpush2.xpose.msra.mxu0 0.0
      %1646 = vmatprep.subr.mxu0 0.0
      %1647 = vmatpush2.xpose.msra.mxu0 0.0
      %1648 = vmatprep.subr.mxu0 0.0
      %1649 = vmatpush2.xpose.msra.mxu0 0.0
      %1650 = vmatprep.subr.mxu0 0.0
      %1651 = vmatpush2.xpose.msra.mxu0 0.0
      %1652 = vmatprep.subr.mxu0 0.0
      %1653 = vmatpush2.xpose.msra.mxu0 0.0
      %1654 = vmatprep.subr.mxu0 0.0
      %1655 = vmatpush2.xpose.msra.mxu0 0.0
      %1656 = vmatprep.subr.mxu0 0.0
      %1657 = vmatpush2.xpose.msra.mxu0 0.0
      %1658 = vmatprep.subr.mxu0 0.0
      %1659 = vmatpush2.xpose.msra.mxu0 0.0
      %1660 = vmatprep.subr.mxu0 0.0
      %1661 = vmatpush2.xpose.msra.mxu0 0.0
      %1662 = vmatprep.subr.mxu0 0.0
      %1663 = vmatpush2.xpose.msra.mxu0 0.0
      %1664 = vmatprep.subr.mxu0 0.0
      %1665 = vmatpush2.xpose.msra.mxu0 0.0
      %1666 = vmatprep.mubr.f32.mxu0 0.0
      %1667 = vmatmul.mubr.f32.gmra.mxu0 %v1594
      %v1668 = vpop.f32.mrf.mxu0
      %v1669 = vadd.f32 %v1587, %v1668
      %v1670 = vpop.f32.mrf.mxu0
      %1671 = vmatprep.mubr.f32.mxu0 0.0
      %1672 = vmatmul.mubr.f32.gmra.mxu0 %v1596
      %v1673 = vpop.f32.mrf.mxu0
      %v1674 = vadd.f32 %v1587, %v1673
      %v1675 = vpop.f32.mrf.mxu0
      %1676 = vdwg.mxu0
      %v1677 = vsel %vm843, %v1669, -inf
      %1678 = vmax.xlane.f32.xlu0 %v1677
      %v1679 = vpop.xlane.xlu0 %1678
      %v1680 = vsel %vm843, %v1674, -inf
      %1681 = vmax.xlane.f32.xlu0 %v1680
      %v1682 = vpop.xlane.xlu0 %1681
      %v1683 = vsub.f32 %v1669, %v1679
      %v1684 = vsub.f32 %v1674, %v1682
      %v1685 = vmul.f32 %v1683, 1.442695
      %v1686 = vpow.pop %v1685
      %v1687 = vmul.f32 %v1684, 1.442695
      %v1688 = vpow.pop %v1687
      %v1689 = vsel %vm843, %v1686, 0.0
      %1690 = vadd.xlane.f32.xlu0 %v1689
      %v1691 = vpop.xlane.xlu0 %1690
      %v1692 = vsel %vm843, %v1688, 0.0
      %1693 = vadd.xlane.f32.xlu0 %v1692
      %v1694 = vpop.xlane.xlu0 %1693
      %v1695 = vrcp.pop %v1691
      %v1696 = vrcp.pop %v1694
      %v1697 = vmul.f32 %v1686, %v1695
      %v1698 = vmul.f32 %v1688, %v1696
      %1699 = vrot.lane.b32.xlu0 %v741, 64
      %v1700 = vpop.permute.xlu0 %1699
      %1701 = vrot.lane.b32.xlu0 %v746, 64
      %v1702 = vpop.permute.xlu0 %1701
      %v1706 = vsel %vm843, %v1697, 0
      %v1709 = vsel %vm843, %v1698, 0
      %1711 = vmatprep.subr.mxu0 0.0
      %1712 = vmatpush1.msra.mxu0 0.0
      %1713 = vmatprep.subr.mxu0 0.0
      %1714 = vmatpush1.msra.mxu0 0.0
      %1715 = vmatprep.subr.mxu0 0.0
      %1716 = vmatpush1.msra.mxu0 0.0
      %1717 = vmatprep.subr.mxu0 0.0
      %1718 = vmatpush1.msra.mxu0 0.0
      %1719 = vmatprep.subr.mxu0 0.0
      %1720 = vmatpush1.msra.mxu0 0.0
      %1721 = vmatprep.subr.mxu0 0.0
      %1722 = vmatpush1.msra.mxu0 0.0
      %1723 = vmatprep.subr.mxu0 0.0
      %1724 = vmatpush1.msra.mxu0 0.0
      %1725 = vmatprep.subr.mxu0 0.0
      %1726 = vmatpush1.msra.mxu0 0.0
      %1727 = vmatprep.subr.mxu0 0.0
      %1728 = vmatpush1.msra.mxu0 0.0
      %1729 = vmatprep.subr.mxu0 0.0
      %1730 = vmatpush1.msra.mxu0 0.0
      %1731 = vmatprep.subr.mxu0 0.0
      %1732 = vmatpush1.msra.mxu0 0.0
      %1733 = vmatprep.subr.mxu0 0.0
      %1734 = vmatpush1.msra.mxu0 0.0
      %1735 = vmatprep.subr.mxu0 0.0
      %1736 = vmatpush1.msra.mxu0 0.0
      %1737 = vmatprep.subr.mxu0 0.0
      %1738 = vmatpush1.msra.mxu0 0.0
      %1739 = vmatprep.subr.mxu0 0.0
      %1740 = vmatpush1.msra.mxu0 %v1702
      %1741 = vmatprep.subr.mxu0 0.0
      %1742 = vmatpush1.msra.mxu0 %v1700
      %1743 = vmatprep.subr.mxu0 0.0
      %1744 = vmatpush2.msra.mxu0 0.0
      %1745 = vmatprep.subr.mxu0 0.0
      %1746 = vmatpush2.msra.mxu0 0.0
      %1747 = vmatprep.subr.mxu0 0.0
      %1748 = vmatpush2.msra.mxu0 0.0
      %1749 = vmatprep.subr.mxu0 0.0
      %1750 = vmatpush2.msra.mxu0 0.0
      %1751 = vmatprep.subr.mxu0 0.0
      %1752 = vmatpush2.msra.mxu0 0.0
      %1753 = vmatprep.subr.mxu0 0.0
      %1754 = vmatpush2.msra.mxu0 0.0
      %1755 = vmatprep.subr.mxu0 0.0
      %1756 = vmatpush2.msra.mxu0 0.0
      %1757 = vmatprep.subr.mxu0 0.0
      %1758 = vmatpush2.msra.mxu0 0.0
      %1759 = vmatprep.subr.mxu0 0.0
      %1760 = vmatpush2.msra.mxu0 0.0
      %1761 = vmatprep.subr.mxu0 0.0
      %1762 = vmatpush2.msra.mxu0 0.0
      %1763 = vmatprep.subr.mxu0 0.0
      %1764 = vmatpush2.msra.mxu0 0.0
      %1765 = vmatprep.subr.mxu0 0.0
      %1766 = vmatpush2.msra.mxu0 0.0
      %1767 = vmatprep.subr.mxu0 0.0
      %1768 = vmatpush2.msra.mxu0 0.0
      %1769 = vmatprep.subr.mxu0 0.0
      %1770 = vmatpush2.msra.mxu0 0.0
      %1771 = vmatprep.subr.mxu0 0.0
      %1772 = vmatpush2.msra.mxu0 0.0
      %1773 = vmatprep.subr.mxu0 0.0
      %1774 = vmatpush2.msra.mxu0 0.0
      %1775 = vmatprep.mubr.f32.mxu0 0.0
      %1776 = vmatmul.mubr.f32.gmra.mxu0 %v1706
      %v1777 = vpop.f32.mrf.mxu0
      %v1778 = vadd.f32 0.0, %v1777
      %v1779 = vpop.f32.mrf.mxu0
      %1780 = vmatprep.mubr.f32.mxu0 0.0
      %1781 = vmatmul.mubr.f32.gmra.mxu0 %v1709
      %v1782 = vpop.f32.mrf.mxu0
      %v1783 = vadd.f32 0.0, %v1782
      %v1784 = vpop.f32.mrf.mxu0
      %1785 = vdwg.mxu0
      %1786 = vrot.lane.b32.xlu0 %v741, 120
      %v1787 = vpop.permute.xlu0 %1786
      %1788 = vrot.lane.b32.xlu0 %v746, 120
      %v1789 = vpop.permute.xlu0 %1788
      %1790 = vrot.lane.b32.xlu0 %v741, 88
      %v1791 = vpop.permute.xlu0 %1790
      %1792 = vrot.lane.b32.xlu0 %v746, 88
      %v1793 = vpop.permute.xlu0 %1792
      %v1794 = vsel %vm759, %v1787, 0
      %v1796 = vsel %vm759, %v1789, 0
      %v1798 = vsel %vm759, %v1791, 0
      %v1800 = vsel %vm759, %v1793, 0
      %1802 = vmatprep.subr.mxu0 0.0
      %1803 = vmatpush1.xpose.msra.mxu0 0.0
      %1804 = vmatprep.subr.mxu0 0.0
      %1805 = vmatpush1.xpose.msra.mxu0 0.0
      %1806 = vmatprep.subr.mxu0 0.0
      %1807 = vmatpush1.xpose.msra.mxu0 0.0
      %1808 = vmatprep.subr.mxu0 0.0
      %1809 = vmatpush1.xpose.msra.mxu0 0.0
      %1810 = vmatprep.subr.mxu0 0.0
      %1811 = vmatpush1.xpose.msra.mxu0 0.0
      %1812 = vmatprep.subr.mxu0 0.0
      %1813 = vmatpush1.xpose.msra.mxu0 0.0
      %1814 = vmatprep.subr.mxu0 0.0
      %1815 = vmatpush1.xpose.msra.mxu0 0.0
      %1816 = vmatprep.subr.mxu0 0.0
      %1817 = vmatpush1.xpose.msra.mxu0 0.0
      %1818 = vmatprep.subr.mxu0 0.0
      %1819 = vmatpush1.xpose.msra.mxu0 0.0
      %1820 = vmatprep.subr.mxu0 0.0
      %1821 = vmatpush1.xpose.msra.mxu0 0.0
      %1822 = vmatprep.subr.mxu0 0.0
      %1823 = vmatpush1.xpose.msra.mxu0 0.0
      %1824 = vmatprep.subr.mxu0 0.0
      %1825 = vmatpush1.xpose.msra.mxu0 0.0
      %1826 = vmatprep.subr.mxu0 0.0
      %1827 = vmatpush1.xpose.msra.mxu0 0.0
      %1828 = vmatprep.subr.mxu0 0.0
      %1829 = vmatpush1.xpose.msra.mxu0 0.0
      %1830 = vmatprep.subr.mxu0 0.0
      %1831 = vmatpush1.xpose.msra.mxu0 %v1800
      %1832 = vmatprep.subr.mxu0 0.0
      %1833 = vmatpush1.xpose.msra.mxu0 %v1798
      %1834 = vmatprep.subr.mxu0 0.0
      %1835 = vmatpush2.xpose.msra.mxu0 0.0
      %1836 = vmatprep.subr.mxu0 0.0
      %1837 = vmatpush2.xpose.msra.mxu0 0.0
      %1838 = vmatprep.subr.mxu0 0.0
      %1839 = vmatpush2.xpose.msra.mxu0 0.0
      %1840 = vmatprep.subr.mxu0 0.0
      %1841 = vmatpush2.xpose.msra.mxu0 0.0
      %1842 = vmatprep.subr.mxu0 0.0
      %1843 = vmatpush2.xpose.msra.mxu0 0.0
      %1844 = vmatprep.subr.mxu0 0.0
      %1845 = vmatpush2.xpose.msra.mxu0 0.0
      %1846 = vmatprep.subr.mxu0 0.0
      %1847 = vmatpush2.xpose.msra.mxu0 0.0
      %1848 = vmatprep.subr.mxu0 0.0
      %1849 = vmatpush2.xpose.msra.mxu0 0.0
      %1850 = vmatprep.subr.mxu0 0.0
      %1851 = vmatpush2.xpose.msra.mxu0 0.0
      %1852 = vmatprep.subr.mxu0 0.0
      %1853 = vmatpush2.xpose.msra.mxu0 0.0
      %1854 = vmatprep.subr.mxu0 0.0
      %1855 = vmatpush2.xpose.msra.mxu0 0.0
      %1856 = vmatprep.subr.mxu0 0.0
      %1857 = vmatpush2.xpose.msra.mxu0 0.0
      %1858 = vmatprep.subr.mxu0 0.0
      %1859 = vmatpush2.xpose.msra.mxu0 0.0
      %1860 = vmatprep.subr.mxu0 0.0
      %1861 = vmatpush2.xpose.msra.mxu0 0.0
      %1862 = vmatprep.subr.mxu0 0.0
      %1863 = vmatpush2.xpose.msra.mxu0 0.0
      %1864 = vmatprep.subr.mxu0 0.0
      %1865 = vmatpush2.xpose.msra.mxu0 0.0
      %1866 = vmatprep.mubr.f32.mxu0 0.0
      %1867 = vmatmul.mubr.f32.gmra.mxu0 %v1794
      %v1868 = vpop.f32.mrf.mxu0
      %v1869 = vadd.f32 %v1587, %v1868
      %v1870 = vpop.f32.mrf.mxu0
      %1871 = vmatprep.mubr.f32.mxu0 0.0
      %1872 = vmatmul.mubr.f32.gmra.mxu0 %v1796
      %v1873 = vpop.f32.mrf.mxu0
      %v1874 = vadd.f32 %v1587, %v1873
      %v1875 = vpop.f32.mrf.mxu0
      %1876 = vdwg.mxu0
      %v1877 = vsel %vm843, %v1869, -inf
      %1878 = vmax.xlane.f32.xlu0 %v1877
      %v1879 = vpop.xlane.xlu0 %1878
      %v1880 = vsel %vm843, %v1874, -inf
      %1881 = vmax.xlane.f32.xlu0 %v1880
      %v1882 = vpop.xlane.xlu0 %1881
      %v1883 = vsub.f32 %v1869, %v1879
      %v1884 = vsub.f32 %v1874, %v1882
      %v1885 = vmul.f32 %v1883, 1.442695
      %v1886 = vpow.pop %v1885
      %v1887 = vmul.f32 %v1884, 1.442695
      %v1888 = vpow.pop %v1887
      %v1889 = vsel %vm843, %v1886, 0.0
      %1890 = vadd.xlane.f32.xlu0 %v1889
      %v1891 = vpop.xlane.xlu0 %1890
      %v1892 = vsel %vm843, %v1888, 0.0
      %1893 = vadd.xlane.f32.xlu0 %v1892
      %v1894 = vpop.xlane.xlu0 %1893
      %v1895 = vrcp.pop %v1891
      %v1896 = vrcp.pop %v1894
      %v1897 = vmul.f32 %v1886, %v1895
      %v1898 = vmul.f32 %v1888, %v1896
      %1899 = vrot.lane.b32.xlu0 %v741, 56
      %v1900 = vpop.permute.xlu0 %1899
      %1901 = vrot.lane.b32.xlu0 %v746, 56
      %v1902 = vpop.permute.xlu0 %1901
      %v1906 = vsel %vm843, %v1897, 0
      %v1909 = vsel %vm843, %v1898, 0
      %1911 = vmatprep.subr.mxu0 0.0
      %1912 = vmatpush1.msra.mxu0 0.0
      %1913 = vmatprep.subr.mxu0 0.0
      %1914 = vmatpush1.msra.mxu0 0.0
      %1915 = vmatprep.subr.mxu0 0.0
      %1916 = vmatpush1.msra.mxu0 0.0
      %1917 = vmatprep.subr.mxu0 0.0
      %1918 = vmatpush1.msra.mxu0 0.0
      %1919 = vmatprep.subr.mxu0 0.0
      %1920 = vmatpush1.msra.mxu0 0.0
      %1921 = vmatprep.subr.mxu0 0.0
      %1922 = vmatpush1.msra.mxu0 0.0
      %1923 = vmatprep.subr.mxu0 0.0
      %1924 = vmatpush1.msra.mxu0 0.0
      %1925 = vmatprep.subr.mxu0 0.0
      %1926 = vmatpush1.msra.mxu0 0.0
      %1927 = vmatprep.subr.mxu0 0.0
      %1928 = vmatpush1.msra.mxu0 0.0
      %1929 = vmatprep.subr.mxu0 0.0
      %1930 = vmatpush1.msra.mxu0 0.0
      %1931 = vmatprep.subr.mxu0 0.0
      %1932 = vmatpush1.msra.mxu0 0.0
      %1933 = vmatprep.subr.mxu0 0.0
      %1934 = vmatpush1.msra.mxu0 0.0
      %1935 = vmatprep.subr.mxu0 0.0
      %1936 = vmatpush1.msra.mxu0 0.0
      %1937 = vmatprep.subr.mxu0 0.0
      %1938 = vmatpush1.msra.mxu0 0.0
      %1939 = vmatprep.subr.mxu0 0.0
      %1940 = vmatpush1.msra.mxu0 %v1902
      %1941 = vmatprep.subr.mxu0 0.0
      %1942 = vmatpush1.msra.mxu0 %v1900
      %1943 = vmatprep.subr.mxu0 0.0
      %1944 = vmatpush2.msra.mxu0 0.0
      %1945 = vmatprep.subr.mxu0 0.0
      %1946 = vmatpush2.msra.mxu0 0.0
      %1947 = vmatprep.subr.mxu0 0.0
      %1948 = vmatpush2.msra.mxu0 0.0
      %1949 = vmatprep.subr.mxu0 0.0
      %1950 = vmatpush2.msra.mxu0 0.0
      %1951 = vmatprep.subr.mxu0 0.0
      %1952 = vmatpush2.msra.mxu0 0.0
      %1953 = vmatprep.subr.mxu0 0.0
      %1954 = vmatpush2.msra.mxu0 0.0
      %1955 = vmatprep.subr.mxu0 0.0
      %1956 = vmatpush2.msra.mxu0 0.0
      %1957 = vmatprep.subr.mxu0 0.0
      %1958 = vmatpush2.msra.mxu0 0.0
      %1959 = vmatprep.subr.mxu0 0.0
      %1960 = vmatpush2.msra.mxu0 0.0
      %1961 = vmatprep.subr.mxu0 0.0
      %1962 = vmatpush2.msra.mxu0 0.0
      %1963 = vmatprep.subr.mxu0 0.0
      %1964 = vmatpush2.msra.mxu0 0.0
      %1965 = vmatprep.subr.mxu0 0.0
      %1966 = vmatpush2.msra.mxu0 0.0
      %1967 = vmatprep.subr.mxu0 0.0
      %1968 = vmatpush2.msra.mxu0 0.0
      %1969 = vmatprep.subr.mxu0 0.0
      %1970 = vmatpush2.msra.mxu0 0.0
      %1971 = vmatprep.subr.mxu0 0.0
      %1972 = vmatpush2.msra.mxu0 0.0
      %1973 = vmatprep.subr.mxu0 0.0
      %1974 = vmatpush2.msra.mxu0 0.0
      %1975 = vmatprep.mubr.f32.mxu0 0.0
      %1976 = vmatmul.mubr.f32.gmra.mxu0 %v1906
      %v1977 = vpop.f32.mrf.mxu0
      %v1978 = vadd.f32 0.0, %v1977
      %v1979 = vpop.f32.mrf.mxu0
      %1980 = vmatprep.mubr.f32.mxu0 0.0
      %1981 = vmatmul.mubr.f32.gmra.mxu0 %v1909
      %v1982 = vpop.f32.mrf.mxu0
      %v1983 = vadd.f32 0.0, %v1982
      %v1984 = vpop.f32.mrf.mxu0
      %1985 = vdwg.mxu0
      %1986 = vrot.lane.b32.xlu0 %v741, 112
      %v1987 = vpop.permute.xlu0 %1986
      %1988 = vrot.lane.b32.xlu0 %v746, 112
      %v1989 = vpop.permute.xlu0 %1988
      %1990 = vrot.lane.b32.xlu0 %v741, 80
      %v1991 = vpop.permute.xlu0 %1990
      %1992 = vrot.lane.b32.xlu0 %v746, 80
      %v1993 = vpop.permute.xlu0 %1992
      %v1994 = vsel %vm759, %v1987, 0
      %v1996 = vsel %vm759, %v1989, 0
      %v1998 = vsel %vm759, %v1991, 0
      %v2000 = vsel %vm759, %v1993, 0
      %2002 = vmatprep.subr.mxu0 0.0
      %2003 = vmatpush1.xpose.msra.mxu0 0.0
      %2004 = vmatprep.subr.mxu0 0.0
      %2005 = vmatpush1.xpose.msra.mxu0 0.0
      %2006 = vmatprep.subr.mxu0 0.0
      %2007 = vmatpush1.xpose.msra.mxu0 0.0
      %2008 = vmatprep.subr.mxu0 0.0
      %2009 = vmatpush1.xpose.msra.mxu0 0.0
      %2010 = vmatprep.subr.mxu0 0.0
      %2011 = vmatpush1.xpose.msra.mxu0 0.0
      %2012 = vmatprep.subr.mxu0 0.0
      %2013 = vmatpush1.xpose.msra.mxu0 0.0
      %2014 = vmatprep.subr.mxu0 0.0
      %2015 = vmatpush1.xpose.msra.mxu0 0.0
      %2016 = vmatprep.subr.mxu0 0.0
      %2017 = vmatpush1.xpose.msra.mxu0 0.0
      %2018 = vmatprep.subr.mxu0 0.0
      %2019 = vmatpush1.xpose.msra.mxu0 0.0
      %2020 = vmatprep.subr.mxu0 0.0
      %2021 = vmatpush1.xpose.msra.mxu0 0.0
      %2022 = vmatprep.subr.mxu0 0.0
      %2023 = vmatpush1.xpose.msra.mxu0 0.0
      %2024 = vmatprep.subr.mxu0 0.0
      %2025 = vmatpush1.xpose.msra.mxu0 0.0
      %2026 = vmatprep.subr.mxu0 0.0
      %2027 = vmatpush1.xpose.msra.mxu0 0.0
      %2028 = vmatprep.subr.mxu0 0.0
      %2029 = vmatpush1.xpose.msra.mxu0 0.0
      %2030 = vmatprep.subr.mxu0 0.0
      %2031 = vmatpush1.xpose.msra.mxu0 %v2000
      %2032 = vmatprep.subr.mxu0 0.0
      %2033 = vmatpush1.xpose.msra.mxu0 %v1998
      %2034 = vmatprep.subr.mxu0 0.0
      %2035 = vmatpush2.xpose.msra.mxu0 0.0
      %2036 = vmatprep.subr.mxu0 0.0
      %2037 = vmatpush2.xpose.msra.mxu0 0.0
      %2038 = vmatprep.subr.mxu0 0.0
      %2039 = vmatpush2.xpose.msra.mxu0 0.0
      %2040 = vmatprep.subr.mxu0 0.0
      %2041 = vmatpush2.xpose.msra.mxu0 0.0
      %2042 = vmatprep.subr.mxu0 0.0
      %2043 = vmatpush2.xpose.msra.mxu0 0.0
      %2044 = vmatprep.subr.mxu0 0.0
      %2045 = vmatpush2.xpose.msra.mxu0 0.0
      %2046 = vmatprep.subr.mxu0 0.0
      %2047 = vmatpush2.xpose.msra.mxu0 0.0
      %2048 = vmatprep.subr.mxu0 0.0
      %2049 = vmatpush2.xpose.msra.mxu0 0.0
      %2050 = vmatprep.subr.mxu0 0.0
      %2051 = vmatpush2.xpose.msra.mxu0 0.0
      %2052 = vmatprep.subr.mxu0 0.0
      %2053 = vmatpush2.xpose.msra.mxu0 0.0
      %2054 = vmatprep.subr.mxu0 0.0
      %2055 = vmatpush2.xpose.msra.mxu0 0.0
      %2056 = vmatprep.subr.mxu0 0.0
      %2057 = vmatpush2.xpose.msra.mxu0 0.0
      %2058 = vmatprep.subr.mxu0 0.0
      %2059 = vmatpush2.xpose.msra.mxu0 0.0
      %2060 = vmatprep.subr.mxu0 0.0
      %2061 = vmatpush2.xpose.msra.mxu0 0.0
      %2062 = vmatprep.subr.mxu0 0.0
      %2063 = vmatpush2.xpose.msra.mxu0 0.0
      %2064 = vmatprep.subr.mxu0 0.0
      %2065 = vmatpush2.xpose.msra.mxu0 0.0
      %2066 = vmatprep.mubr.f32.mxu0 0.0
      %2067 = vmatmul.mubr.f32.gmra.mxu0 %v1994
      %v2068 = vpop.f32.mrf.mxu0
      %v2069 = vadd.f32 %v1587, %v2068
      %v2070 = vpop.f32.mrf.mxu0
      %2071 = vmatprep.mubr.f32.mxu0 0.0
      %2072 = vmatmul.mubr.f32.gmra.mxu0 %v1996
      %v2073 = vpop.f32.mrf.mxu0
      %v2074 = vadd.f32 %v1587, %v2073
      %v2075 = vpop.f32.mrf.mxu0
      %2076 = vdwg.mxu0
      %v2077 = vsel %vm843, %v2069, -inf
      %2078 = vmax.xlane.f32.xlu0 %v2077
      %v2079 = vpop.xlane.xlu0 %2078
      %v2080 = vsel %vm843, %v2074, -inf
      %2081 = vmax.xlane.f32.xlu0 %v2080
      %v2082 = vpop.xlane.xlu0 %2081
      %v2083 = vsub.f32 %v2069, %v2079
      %v2084 = vsub.f32 %v2074, %v2082
      %v2085 = vmul.f32 %v2083, 1.442695
      %v2086 = vpow.pop %v2085
      %v2087 = vmul.f32 %v2084, 1.442695
      %v2088 = vpow.pop %v2087
      %v2089 = vsel %vm843, %v2086, 0.0
      %2090 = vadd.xlane.f32.xlu0 %v2089
      %v2091 = vpop.xlane.xlu0 %2090
      %v2092 = vsel %vm843, %v2088, 0.0
      %2093 = vadd.xlane.f32.xlu0 %v2092
      %v2094 = vpop.xlane.xlu0 %2093
      %v2095 = vrcp.pop %v2091
      %v2096 = vrcp.pop %v2094
      %v2097 = vmul.f32 %v2086, %v2095
      %v2098 = vmul.f32 %v2088, %v2096
      %2099 = vrot.lane.b32.xlu0 %v741, 48
      %v2100 = vpop.permute.xlu0 %2099
      %2101 = vrot.lane.b32.xlu0 %v746, 48
      %v2102 = vpop.permute.xlu0 %2101
      %v2106 = vsel %vm843, %v2097, 0
      %v2109 = vsel %vm843, %v2098, 0
      %2111 = vmatprep.subr.mxu0 0.0
      %2112 = vmatpush1.msra.mxu0 0.0
      %2113 = vmatprep.subr.mxu0 0.0
      %2114 = vmatpush1.msra.mxu0 0.0
      %2115 = vmatprep.subr.mxu0 0.0
      %2116 = vmatpush1.msra.mxu0 0.0
      %2117 = vmatprep.subr.mxu0 0.0
      %2118 = vmatpush1.msra.mxu0 0.0
      %2119 = vmatprep.subr.mxu0 0.0
      %2120 = vmatpush1.msra.mxu0 0.0
      %2121 = vmatprep.subr.mxu0 0.0
      %2122 = vmatpush1.msra.mxu0 0.0
      %2123 = vmatprep.subr.mxu0 0.0
      %2124 = vmatpush1.msra.mxu0 0.0
      %2125 = vmatprep.subr.mxu0 0.0
      %2126 = vmatpush1.msra.mxu0 0.0
      %2127 = vmatprep.subr.mxu0 0.0
      %2128 = vmatpush1.msra.mxu0 0.0
      %2129 = vmatprep.subr.mxu0 0.0
      %2130 = vmatpush1.msra.mxu0 0.0
      %2131 = vmatprep.subr.mxu0 0.0
      %2132 = vmatpush1.msra.mxu0 0.0
      %2133 = vmatprep.subr.mxu0 0.0
      %2134 = vmatpush1.msra.mxu0 0.0
      %2135 = vmatprep.subr.mxu0 0.0
      %2136 = vmatpush1.msra.mxu0 0.0
      %2137 = vmatprep.subr.mxu0 0.0
      %2138 = vmatpush1.msra.mxu0 0.0
      %2139 = vmatprep.subr.mxu0 0.0
      %2140 = vmatpush1.msra.mxu0 %v2102
      %2141 = vmatprep.subr.mxu0 0.0
      %2142 = vmatpush1.msra.mxu0 %v2100
      %2143 = vmatprep.subr.mxu0 0.0
      %2144 = vmatpush2.msra.mxu0 0.0
      %2145 = vmatprep.subr.mxu0 0.0
      %2146 = vmatpush2.msra.mxu0 0.0
      %2147 = vmatprep.subr.mxu0 0.0
      %2148 = vmatpush2.msra.mxu0 0.0
      %2149 = vmatprep.subr.mxu0 0.0
      %2150 = vmatpush2.msra.mxu0 0.0
      %2151 = vmatprep.subr.mxu0 0.0
      %2152 = vmatpush2.msra.mxu0 0.0
      %2153 = vmatprep.subr.mxu0 0.0
      %2154 = vmatpush2.msra.mxu0 0.0
      %2155 = vmatprep.subr.mxu0 0.0
      %2156 = vmatpush2.msra.mxu0 0.0
      %2157 = vmatprep.subr.mxu0 0.0
      %2158 = vmatpush2.msra.mxu0 0.0
      %2159 = vmatprep.subr.mxu0 0.0
      %2160 = vmatpush2.msra.mxu0 0.0
      %2161 = vmatprep.subr.mxu0 0.0
      %2162 = vmatpush2.msra.mxu0 0.0
      %2163 = vmatprep.subr.mxu0 0.0
      %2164 = vmatpush2.msra.mxu0 0.0
      %2165 = vmatprep.subr.mxu0 0.0
      %2166 = vmatpush2.msra.mxu0 0.0
      %2167 = vmatprep.subr.mxu0 0.0
      %2168 = vmatpush2.msra.mxu0 0.0
      %2169 = vmatprep.subr.mxu0 0.0
      %2170 = vmatpush2.msra.mxu0 0.0
      %2171 = vmatprep.subr.mxu0 0.0
      %2172 = vmatpush2.msra.mxu0 0.0
      %2173 = vmatprep.subr.mxu0 0.0
      %2174 = vmatpush2.msra.mxu0 0.0
      %2175 = vmatprep.mubr.f32.mxu0 0.0
      %2176 = vmatmul.mubr.f32.gmra.mxu0 %v2106
      %v2177 = vpop.f32.mrf.mxu0
      %v2178 = vadd.f32 0.0, %v2177
      %v2179 = vpop.f32.mrf.mxu0
      %2180 = vmatprep.mubr.f32.mxu0 0.0
      %2181 = vmatmul.mubr.f32.gmra.mxu0 %v2109
      %v2182 = vpop.f32.mrf.mxu0
      %v2183 = vadd.f32 0.0, %v2182
      %v2184 = vpop.f32.mrf.mxu0
      %2185 = vdwg.mxu0
      %2186 = vrot.lane.b32.xlu0 %v741, 104
      %v2187 = vpop.permute.xlu0 %2186
      %2188 = vrot.lane.b32.xlu0 %v746, 104
      %v2189 = vpop.permute.xlu0 %2188
      %2190 = vrot.lane.b32.xlu0 %v741, 72
      %v2191 = vpop.permute.xlu0 %2190
      %2192 = vrot.lane.b32.xlu0 %v746, 72
      %v2193 = vpop.permute.xlu0 %2192
      %v2194 = vsel %vm759, %v2187, 0
      %v2196 = vsel %vm759, %v2189, 0
      %v2198 = vsel %vm759, %v2191, 0
      %v2200 = vsel %vm759, %v2193, 0
      %2202 = vmatprep.subr.mxu0 0.0
      %2203 = vmatpush1.xpose.msra.mxu0 0.0
      %2204 = vmatprep.subr.mxu0 0.0
      %2205 = vmatpush1.xpose.msra.mxu0 0.0
      %2206 = vmatprep.subr.mxu0 0.0
      %2207 = vmatpush1.xpose.msra.mxu0 0.0
      %2208 = vmatprep.subr.mxu0 0.0
      %2209 = vmatpush1.xpose.msra.mxu0 0.0
      %2210 = vmatprep.subr.mxu0 0.0
      %2211 = vmatpush1.xpose.msra.mxu0 0.0
      %2212 = vmatprep.subr.mxu0 0.0
      %2213 = vmatpush1.xpose.msra.mxu0 0.0
      %2214 = vmatprep.subr.mxu0 0.0
      %2215 = vmatpush1.xpose.msra.mxu0 0.0
      %2216 = vmatprep.subr.mxu0 0.0
      %2217 = vmatpush1.xpose.msra.mxu0 0.0
      %2218 = vmatprep.subr.mxu0 0.0
      %2219 = vmatpush1.xpose.msra.mxu0 0.0
      %2220 = vmatprep.subr.mxu0 0.0
      %2221 = vmatpush1.xpose.msra.mxu0 0.0
      %2222 = vmatprep.subr.mxu0 0.0
      %2223 = vmatpush1.xpose.msra.mxu0 0.0
      %2224 = vmatprep.subr.mxu0 0.0
      %2225 = vmatpush1.xpose.msra.mxu0 0.0
      %2226 = vmatprep.subr.mxu0 0.0
      %2227 = vmatpush1.xpose.msra.mxu0 0.0
      %2228 = vmatprep.subr.mxu0 0.0
      %2229 = vmatpush1.xpose.msra.mxu0 0.0
      %2230 = vmatprep.subr.mxu0 0.0
      %2231 = vmatpush1.xpose.msra.mxu0 %v2200
      %2232 = vmatprep.subr.mxu0 0.0
      %2233 = vmatpush1.xpose.msra.mxu0 %v2198
      %2234 = vmatprep.subr.mxu0 0.0
      %2235 = vmatpush2.xpose.msra.mxu0 0.0
      %2236 = vmatprep.subr.mxu0 0.0
      %2237 = vmatpush2.xpose.msra.mxu0 0.0
      %2238 = vmatprep.subr.mxu0 0.0
      %2239 = vmatpush2.xpose.msra.mxu0 0.0
      %2240 = vmatprep.subr.mxu0 0.0
      %2241 = vmatpush2.xpose.msra.mxu0 0.0
      %2242 = vmatprep.subr.mxu0 0.0
      %2243 = vmatpush2.xpose.msra.mxu0 0.0
      %2244 = vmatprep.subr.mxu0 0.0
      %2245 = vmatpush2.xpose.msra.mxu0 0.0
      %2246 = vmatprep.subr.mxu0 0.0
      %2247 = vmatpush2.xpose.msra.mxu0 0.0
      %2248 = vmatprep.subr.mxu0 0.0
      %2249 = vmatpush2.xpose.msra.mxu0 0.0
      %2250 = vmatprep.subr.mxu0 0.0
      %2251 = vmatpush2.xpose.msra.mxu0 0.0
      %2252 = vmatprep.subr.mxu0 0.0
      %2253 = vmatpush2.xpose.msra.mxu0 0.0
      %2254 = vmatprep.subr.mxu0 0.0
      %2255 = vmatpush2.xpose.msra.mxu0 0.0
      %2256 = vmatprep.subr.mxu0 0.0
      %2257 = vmatpush2.xpose.msra.mxu0 0.0
      %2258 = vmatprep.subr.mxu0 0.0
      %2259 = vmatpush2.xpose.msra.mxu0 0.0
      %2260 = vmatprep.subr.mxu0 0.0
      %2261 = vmatpush2.xpose.msra.mxu0 0.0
      %2262 = vmatprep.subr.mxu0 0.0
      %2263 = vmatpush2.xpose.msra.mxu0 0.0
      %2264 = vmatprep.subr.mxu0 0.0
      %2265 = vmatpush2.xpose.msra.mxu0 0.0
      %2266 = vmatprep.mubr.f32.mxu0 0.0
      %2267 = vmatmul.mubr.f32.gmra.mxu0 %v2194
      %v2268 = vpop.f32.mrf.mxu0
      %v2269 = vadd.f32 %v1587, %v2268
      %v2270 = vpop.f32.mrf.mxu0
      %2271 = vmatprep.mubr.f32.mxu0 0.0
      %2272 = vmatmul.mubr.f32.gmra.mxu0 %v2196
      %v2273 = vpop.f32.mrf.mxu0
      %v2274 = vadd.f32 %v1587, %v2273
      %v2275 = vpop.f32.mrf.mxu0
      %2276 = vdwg.mxu0
      %v2277 = vsel %vm843, %v2269, -inf
      %2278 = vmax.xlane.f32.xlu0 %v2277
      %v2279 = vpop.xlane.xlu0 %2278
      %v2280 = vsel %vm843, %v2274, -inf
      %2281 = vmax.xlane.f32.xlu0 %v2280
      %v2282 = vpop.xlane.xlu0 %2281
      %v2283 = vsub.f32 %v2269, %v2279
      %v2284 = vsub.f32 %v2274, %v2282
      %v2285 = vmul.f32 %v2283, 1.442695
      %v2286 = vpow.pop %v2285
      %v2287 = vmul.f32 %v2284, 1.442695
      %v2288 = vpow.pop %v2287
      %v2289 = vsel %vm843, %v2286, 0.0
      %2290 = vadd.xlane.f32.xlu0 %v2289
      %v2291 = vpop.xlane.xlu0 %2290
      %v2292 = vsel %vm843, %v2288, 0.0
      %2293 = vadd.xlane.f32.xlu0 %v2292
      %v2294 = vpop.xlane.xlu0 %2293
      %v2295 = vrcp.pop %v2291
      %v2296 = vrcp.pop %v2294
      %v2297 = vmul.f32 %v2286, %v2295
      %v2298 = vmul.f32 %v2288, %v2296
      %2299 = vrot.lane.b32.xlu0 %v741, 40
      %v2300 = vpop.permute.xlu0 %2299
      %2301 = vrot.lane.b32.xlu0 %v746, 40
      %v2302 = vpop.permute.xlu0 %2301
      %v2306 = vsel %vm843, %v2297, 0
      %v2309 = vsel %vm843, %v2298, 0
      %2311 = vmatprep.subr.mxu0 0.0
      %2312 = vmatpush1.msra.mxu0 0.0
      %2313 = vmatprep.subr.mxu0 0.0
      %2314 = vmatpush1.msra.mxu0 0.0
      %2315 = vmatprep.subr.mxu0 0.0
      %2316 = vmatpush1.msra.mxu0 0.0
      %2317 = vmatprep.subr.mxu0 0.0
      %2318 = vmatpush1.msra.mxu0 0.0
      %2319 = vmatprep.subr.mxu0 0.0
      %2320 = vmatpush1.msra.mxu0 0.0
      %2321 = vmatprep.subr.mxu0 0.0
      %2322 = vmatpush1.msra.mxu0 0.0
      %2323 = vmatprep.subr.mxu0 0.0
      %2324 = vmatpush1.msra.mxu0 0.0
      %2325 = vmatprep.subr.mxu0 0.0
      %2326 = vmatpush1.msra.mxu0 0.0
      %2327 = vmatprep.subr.mxu0 0.0
      %2328 = vmatpush1.msra.mxu0 0.0
      %2329 = vmatprep.subr.mxu0 0.0
      %2330 = vmatpush1.msra.mxu0 0.0
      %2331 = vmatprep.subr.mxu0 0.0
      %2332 = vmatpush1.msra.mxu0 0.0
      %2333 = vmatprep.subr.mxu0 0.0
      %2334 = vmatpush1.msra.mxu0 0.0
      %2335 = vmatprep.subr.mxu0 0.0
      %2336 = vmatpush1.msra.mxu0 0.0
      %2337 = vmatprep.subr.mxu0 0.0
      %2338 = vmatpush1.msra.mxu0 0.0
      %2339 = vmatprep.subr.mxu0 0.0
      %2340 = vmatpush1.msra.mxu0 %v2302
      %2341 = vmatprep.subr.mxu0 0.0
      %2342 = vmatpush1.msra.mxu0 %v2300
      %2343 = vmatprep.subr.mxu0 0.0
      %2344 = vmatpush2.msra.mxu0 0.0
      %2345 = vmatprep.subr.mxu0 0.0
      %2346 = vmatpush2.msra.mxu0 0.0
      %2347 = vmatprep.subr.mxu0 0.0
      %2348 = vmatpush2.msra.mxu0 0.0
      %2349 = vmatprep.subr.mxu0 0.0
      %2350 = vmatpush2.msra.mxu0 0.0
      %2351 = vmatprep.subr.mxu0 0.0
      %2352 = vmatpush2.msra.mxu0 0.0
      %2353 = vmatprep.subr.mxu0 0.0
      %2354 = vmatpush2.msra.mxu0 0.0
      %2355 = vmatprep.subr.mxu0 0.0
      %2356 = vmatpush2.msra.mxu0 0.0
      %2357 = vmatprep.subr.mxu0 0.0
      %2358 = vmatpush2.msra.mxu0 0.0
      %2359 = vmatprep.subr.mxu0 0.0
      %2360 = vmatpush2.msra.mxu0 0.0
      %2361 = vmatprep.subr.mxu0 0.0
      %2362 = vmatpush2.msra.mxu0 0.0
      %2363 = vmatprep.subr.mxu0 0.0
      %2364 = vmatpush2.msra.mxu0 0.0
      %2365 = vmatprep.subr.mxu0 0.0
      %2366 = vmatpush2.msra.mxu0 0.0
      %2367 = vmatprep.subr.mxu0 0.0
      %2368 = vmatpush2.msra.mxu0 0.0
      %2369 = vmatprep.subr.mxu0 0.0
      %2370 = vmatpush2.msra.mxu0 0.0
      %2371 = vmatprep.subr.mxu0 0.0
      %2372 = vmatpush2.msra.mxu0 0.0
      %2373 = vmatprep.subr.mxu0 0.0
      %2374 = vmatpush2.msra.mxu0 0.0
      %2375 = vmatprep.mubr.f32.mxu0 0.0
      %2376 = vmatmul.mubr.f32.gmra.mxu0 %v2306
      %v2377 = vpop.f32.mrf.mxu0
      %v2378 = vadd.f32 0.0, %v2377
      %v2379 = vpop.f32.mrf.mxu0
      %2380 = vmatprep.mubr.f32.mxu0 0.0
      %2381 = vmatmul.mubr.f32.gmra.mxu0 %v2309
      %v2382 = vpop.f32.mrf.mxu0
      %v2383 = vadd.f32 0.0, %v2382
      %v2384 = vpop.f32.mrf.mxu0
      %2385 = vdwg.mxu0
      %2388 = vrot.lane.b32.xlu0 %v1978, 8
      %v2389 = vpop.permute.xlu0 %2388
      %2390 = vrot.lane.b32.xlu0 %v1983, 8
      %v2391 = vpop.permute.xlu0 %2390
      %2396 = vrot.lane.b32.xlu0 %v2178, 16
      %v2397 = vpop.permute.xlu0 %2396
      %2398 = vrot.lane.b32.xlu0 %v2183, 16
      %v2399 = vpop.permute.xlu0 %2398
      %2404 = vrot.lane.b32.xlu0 %v2378, 24
      %v2405 = vpop.permute.xlu0 %2404
      %2406 = vrot.lane.b32.xlu0 %v2383, 24
      %v2407 = vpop.permute.xlu0 %2406
      %v2410 = vsel %vm759, %v1778, %v2389
      %v2411 = vsel %vm759, %v1783, %v2391
      %v2412 = vsel %vm843, %v2410, %v2397
      %v2413 = vsel %vm843, %v2411, %v2399
      %v2414 = vsel %vm1581, %v2412, %v2405
      %v2415 = vsel %vm1581, %v2413, %v2407
      %v2416 = vld [vmem:[%s530] sm:$0xff]
      %v2417 = vld [vmem:[%s530 + $0x8] sm:$0xff]
      %v2418 = vld [vmem:[%s530 + $0x10] sm:$0xff]
      %v2419 = vld [vmem:[%s530 + $0x18] sm:$0xff]
      %v2420 = vlaneseq
      %v2421 = vshrl.u32 %v2420, 7
      %v2422 = vsub.s32 0, %v2421
      %v2423 = vrot.slane %v640, %v2422
      %v2425 = vsel %vm562, %v1582, 0
      %v2428 = vsel %vm562, %v1583, 0
      %v2431 = vsel %vm562, %v2414, 0
      %v2434 = vsel %vm562, %v2415, 0
      %2436 = vmatprep.subr.mxu0 0.0
      %2437 = vmatpush1.msra.mxu0 0.0
      %2438 = vmatprep.subr.mxu0 0.0
      %2439 = vmatpush1.msra.mxu0 0.0
      %2440 = vmatprep.subr.mxu0 0.0
      %2441 = vmatpush1.msra.mxu0 0.0
      %2442 = vmatprep.subr.mxu0 0.0
      %2443 = vmatpush1.msra.mxu0 0.0
      %2444 = vmatprep.subr.mxu0 0.0
      %2445 = vmatpush1.msra.mxu0 0.0
      %2446 = vmatprep.subr.mxu0 0.0
      %2447 = vmatpush1.msra.mxu0 0.0
      %2448 = vmatprep.subr.mxu0 0.0
      %2449 = vmatpush1.msra.mxu0 0.0
      %2450 = vmatprep.subr.mxu0 0.0
      %2451 = vmatpush1.msra.mxu0 0.0
      %2452 = vmatprep.subr.mxu0 0.0
      %2453 = vmatpush1.msra.mxu0 0.0
      %2454 = vmatprep.subr.mxu0 0.0
      %2455 = vmatpush1.msra.mxu0 0.0
      %2456 = vmatprep.subr.mxu0 0.0
      %2457 = vmatpush1.msra.mxu0 0.0
      %2458 = vmatprep.subr.mxu0 0.0
      %2459 = vmatpush1.msra.mxu0 0.0
      %2460 = vmatprep.subr.mxu0 0.0
      %2461 = vmatpush1.msra.mxu0 %v2419
      %2462 = vmatprep.subr.mxu0 0.0
      %2463 = vmatpush1.msra.mxu0 %v2418
      %2464 = vmatprep.subr.mxu0 0.0
      %2465 = vmatpush1.msra.mxu0 %v2417
      %2466 = vmatprep.subr.mxu0 0.0
      %2467 = vmatpush1.msra.mxu0 %v2416
      %2468 = vmatprep.subr.mxu0 0.0
      %2469 = vmatpush2.msra.mxu0 0.0
      %2470 = vmatprep.subr.mxu0 0.0
      %2471 = vmatpush2.msra.mxu0 0.0
      %2472 = vmatprep.subr.mxu0 0.0
      %2473 = vmatpush2.msra.mxu0 0.0
      %2474 = vmatprep.subr.mxu0 0.0
      %2475 = vmatpush2.msra.mxu0 0.0
      %2476 = vmatprep.subr.mxu0 0.0
      %2477 = vmatpush2.msra.mxu0 0.0
      %2478 = vmatprep.subr.mxu0 0.0
      %2479 = vmatpush2.msra.mxu0 0.0
      %2480 = vmatprep.subr.mxu0 0.0
      %2481 = vmatpush2.msra.mxu0 0.0
      %2482 = vmatprep.subr.mxu0 0.0
      %2483 = vmatpush2.msra.mxu0 0.0
      %2484 = vmatprep.subr.mxu0 0.0
      %2485 = vmatpush2.msra.mxu0 0.0
      %2486 = vmatprep.subr.mxu0 0.0
      %2487 = vmatpush2.msra.mxu0 0.0
      %2488 = vmatprep.subr.mxu0 0.0
      %2489 = vmatpush2.msra.mxu0 0.0
      %2490 = vmatprep.subr.mxu0 0.0
      %2491 = vmatpush2.msra.mxu0 0.0
      %2492 = vmatprep.subr.mxu0 0.0
      %2493 = vmatpush2.msra.mxu0 0.0
      %2494 = vmatprep.subr.mxu0 0.0
      %2495 = vmatpush2.msra.mxu0 0.0
      %2496 = vmatprep.subr.mxu0 0.0
      %2497 = vmatpush2.msra.mxu0 0.0
      %2498 = vmatprep.subr.mxu0 0.0
      %2499 = vmatpush2.msra.mxu0 0.0
      %2500 = vmatprep.mubr.f32.mxu0 0.0
      %2501 = vmatmul.mubr.f32.gmra.mxu0 %v2425
      %v2502 = vpop.f32.mrf.mxu0
      %v2503 = vadd.f32 %v2423, %v2502
      %v2504 = vpop.f32.mrf.mxu0
      %2505 = vmatprep.mubr.f32.mxu0 0.0
      %2506 = vmatmul.mubr.f32.gmra.mxu0 %v2428
      %v2507 = vpop.f32.mrf.mxu0
      %v2508 = vadd.f32 %v2423, %v2507
      %v2509 = vpop.f32.mrf.mxu0
      %2510 = vmatprep.mubr.f32.mxu0 0.0
      %2511 = vmatmul.mubr.f32.gmra.mxu0 %v2431
      %v2512 = vpop.f32.mrf.mxu0
      %v2513 = vadd.f32 %v2423, %v2512
      %v2514 = vpop.f32.mrf.mxu0
      %2515 = vmatprep.mubr.f32.mxu0 0.0
      %2516 = vmatmul.mubr.f32.gmra.mxu0 %v2434
      %v2517 = vpop.f32.mrf.mxu0
      %v2518 = vadd.f32 %v2423, %v2517
      %v2519 = vpop.f32.mrf.mxu0
      %2520 = vdwg.mxu0
      %v2521 = vadd.f32 %v636, %v2503
      %v2522 = vadd.f32 %v637, %v2508
      %v2523 = vadd.f32 %v638, %v2513
      %v2524 = vadd.f32 %v639, %v2518
      %v2525 = vsel %vm562, %v2521, 0.0
      %2526 = vadd.xlane.f32.xlu0 %v2525
      %v2527 = vpop.xlane.xlu0 %2526
      %v2528 = vsel %vm562, %v2522, 0.0
      %2529 = vadd.xlane.f32.xlu0 %v2528
      %v2530 = vpop.xlane.xlu0 %2529
      %v2531 = vsel %vm562, %v2523, 0.0
      %2532 = vadd.xlane.f32.xlu0 %v2531
      %v2533 = vpop.xlane.xlu0 %2532
      %v2534 = vsel %vm562, %v2524, 0.0
      %2535 = vadd.xlane.f32.xlu0 %v2534
      %v2536 = vpop.xlane.xlu0 %2535
      %v2537 = vmul.f32 %v2527, %v575
      %v2538 = vmul.f32 %v2530, %v575
      %v2539 = vmul.f32 %v2533, %v575
      %v2540 = vmul.f32 %v2536, %v575
      %v2541 = vsub.f32 %v2521, %v2537
      %v2542 = vsub.f32 %v2522, %v2538
      %v2543 = vsub.f32 %v2523, %v2539
      %v2544 = vsub.f32 %v2524, %v2540
      %v2545 = vmul.f32 %v2541, %v2541
      %v2546 = vmul.f32 %v2542, %v2542
      %v2547 = vmul.f32 %v2543, %v2543
      %v2548 = vmul.f32 %v2544, %v2544
      %v2549 = vsel %vm562, %v2545, 0.0
      %2550 = vadd.xlane.f32.xlu0 %v2549
      %v2551 = vpop.xlane.xlu0 %2550
      %v2552 = vsel %vm562, %v2546, 0.0
      %2553 = vadd.xlane.f32.xlu0 %v2552
      %v2554 = vpop.xlane.xlu0 %2553
      %v2555 = vsel %vm562, %v2547, 0.0
      %2556 = vadd.xlane.f32.xlu0 %v2555
      %v2557 = vpop.xlane.xlu0 %2556
      %v2558 = vsel %vm562, %v2548, 0.0
      %2559 = vadd.xlane.f32.xlu0 %v2558
      %v2560 = vpop.xlane.xlu0 %2559
      %v2561 = vmul.f32 %v2551, %v575
      %v2562 = vmul.f32 %v2554, %v575
      %v2563 = vmul.f32 %v2557, %v575
      %v2564 = vmul.f32 %v2560, %v575
      %v2565 = vadd.f32 %v2561, 1e-05
      %v2566 = vadd.f32 %v2562, 1e-05
      %v2567 = vadd.f32 %v2563, 1e-05
      %v2568 = vadd.f32 %v2564, 1e-05
      %v2569 = vrsqrt.pop %v2565
      %v2570 = vrsqrt.pop %v2566
      %v2571 = vrsqrt.pop %v2567
      %v2572 = vrsqrt.pop %v2568
      %v2573 = vmul.f32 %v2541, %v2569
      %v2574 = vmul.f32 %v2542, %v2570
      %v2575 = vmul.f32 %v2543, %v2571
      %v2576 = vmul.f32 %v2544, %v2572
      %v2577 = vlaneseq
      %v2578 = vshrl.u32 %v2577, 7
      %v2579 = vsub.s32 1, %v2578
      %v2580 = vrot.slane %v640, %v2579
      %v2581 = vmul.f32 %v2573, %v2580
      %v2582 = vmul.f32 %v2574, %v2580
      %v2583 = vmul.f32 %v2575, %v2580
      %v2584 = vmul.f32 %v2576, %v2580
      %v2585 = vlaneseq
      %v2586 = vshrl.u32 %v2585, 7
      %v2587 = vsub.s32 2, %v2586
      %v2588 = vrot.slane %v640, %v2587
      %v2589 = vadd.f32 %v2581, %v2588
      %v2590 = vadd.f32 %v2582, %v2588
      %v2591 = vadd.f32 %v2583, %v2588
      %v2592 = vadd.f32 %v2584, %v2588
      %v2593 = vld [vmem:[%s535] sm:$0xff]
      %v2594 = vld [vmem:[%s535 + $0x8] sm:$0xff]
      %v2595 = vld [vmem:[%s535 + $0x10] sm:$0xff]
      %v2596 = vld [vmem:[%s535 + $0x18] sm:$0xff]
      %v2597 = vld [vmem:[%s539] sm:$0x1]
      %v2599 = vlaneseq
      %v2600 = vshrl.u32 %v2599, 7
      %v2601 = vsub.s32 0, %v2600
      %v2602 = vrot.slane %v2597, %v2601
      %v2605 = vsel %vm562, %v2589, 0
      %v2608 = vsel %vm562, %v2590, 0
      %v2611 = vsel %vm562, %v2591, 0
      %v2614 = vsel %vm562, %v2592, 0
      %2616 = vmatprep.subr.mxu0 0.0
      %2617 = vmatpush1.msra.mxu0 0.0
      %2618 = vmatprep.subr.mxu0 0.0
      %2619 = vmatpush1.msra.mxu0 0.0
      %2620 = vmatprep.subr.mxu0 0.0
      %2621 = vmatpush1.msra.mxu0 0.0
      %2622 = vmatprep.subr.mxu0 0.0
      %2623 = vmatpush1.msra.mxu0 0.0
      %2624 = vmatprep.subr.mxu0 0.0
      %2625 = vmatpush1.msra.mxu0 0.0
      %2626 = vmatprep.subr.mxu0 0.0
      %2627 = vmatpush1.msra.mxu0 0.0
      %2628 = vmatprep.subr.mxu0 0.0
      %2629 = vmatpush1.msra.mxu0 0.0
      %2630 = vmatprep.subr.mxu0 0.0
      %2631 = vmatpush1.msra.mxu0 0.0
      %2632 = vmatprep.subr.mxu0 0.0
      %2633 = vmatpush1.msra.mxu0 0.0
      %2634 = vmatprep.subr.mxu0 0.0
      %2635 = vmatpush1.msra.mxu0 0.0
      %2636 = vmatprep.subr.mxu0 0.0
      %2637 = vmatpush1.msra.mxu0 0.0
      %2638 = vmatprep.subr.mxu0 0.0
      %2639 = vmatpush1.msra.mxu0 0.0
      %2640 = vmatprep.subr.mxu0 0.0
      %2641 = vmatpush1.msra.mxu0 %v2596
      %2642 = vmatprep.subr.mxu0 0.0
      %2643 = vmatpush1.msra.mxu0 %v2595
      %2644 = vmatprep.subr.mxu0 0.0
      %2645 = vmatpush1.msra.mxu0 %v2594
      %2646 = vmatprep.subr.mxu0 0.0
      %2647 = vmatpush1.msra.mxu0 %v2593
      %2648 = vmatprep.subr.mxu0 0.0
      %2649 = vmatpush2.msra.mxu0 0.0
      %2650 = vmatprep.subr.mxu0 0.0
      %2651 = vmatpush2.msra.mxu0 0.0
      %2652 = vmatprep.subr.mxu0 0.0
      %2653 = vmatpush2.msra.mxu0 0.0
      %2654 = vmatprep.subr.mxu0 0.0
      %2655 = vmatpush2.msra.mxu0 0.0
      %2656 = vmatprep.subr.mxu0 0.0
      %2657 = vmatpush2.msra.mxu0 0.0
      %2658 = vmatprep.subr.mxu0 0.0
      %2659 = vmatpush2.msra.mxu0 0.0
      %2660 = vmatprep.subr.mxu0 0.0
      %2661 = vmatpush2.msra.mxu0 0.0
      %2662 = vmatprep.subr.mxu0 0.0
      %2663 = vmatpush2.msra.mxu0 0.0
      %2664 = vmatprep.subr.mxu0 0.0
      %2665 = vmatpush2.msra.mxu0 0.0
      %2666 = vmatprep.subr.mxu0 0.0
      %2667 = vmatpush2.msra.mxu0 0.0
      %2668 = vmatprep.subr.mxu0 0.0
      %2669 = vmatpush2.msra.mxu0 0.0
      %2670 = vmatprep.subr.mxu0 0.0
      %2671 = vmatpush2.msra.mxu0 0.0
      %2672 = vmatprep.subr.mxu0 0.0
      %2673 = vmatpush2.msra.mxu0 0.0
      %2674 = vmatprep.subr.mxu0 0.0
      %2675 = vmatpush2.msra.mxu0 0.0
      %2676 = vmatprep.subr.mxu0 0.0
      %2677 = vmatpush2.msra.mxu0 0.0
      %2678 = vmatprep.subr.mxu0 0.0
      %2679 = vmatpush2.msra.mxu0 0.0
      %2680 = vmatprep.mubr.f32.mxu0 0.0
      %2681 = vmatmul.mubr.f32.gmra.mxu0 %v2605
      %v2682 = vpop.f32.mrf.mxu0
      %v2683 = vadd.f32 %v2602, %v2682
      %v2684 = vpop.f32.mrf.mxu0
      %2685 = vmatprep.mubr.f32.mxu0 0.0
      %2686 = vmatmul.mubr.f32.gmra.mxu0 %v2608
      %v2687 = vpop.f32.mrf.mxu0
      %v2688 = vadd.f32 %v2602, %v2687
      %v2689 = vpop.f32.mrf.mxu0
      %2690 = vmatprep.mubr.f32.mxu0 0.0
      %2691 = vmatmul.mubr.f32.gmra.mxu0 %v2611
      %v2692 = vpop.f32.mrf.mxu0
      %v2693 = vadd.f32 %v2602, %v2692
      %v2694 = vpop.f32.mrf.mxu0
      %2695 = vmatprep.mubr.f32.mxu0 0.0
      %2696 = vmatmul.mubr.f32.gmra.mxu0 %v2614
      %v2697 = vpop.f32.mrf.mxu0
      %v2698 = vadd.f32 %v2602, %v2697
      %v2699 = vpop.f32.mrf.mxu0
      %2700 = vdwg.mxu0
      %v2701 = vmax.f32 %v2683, 0.0
      %v2702 = vmax.f32 %v2688, 0.0
      %v2703 = vmax.f32 %v2693, 0.0
      %v2704 = vmax.f32 %v2698, 0.0
      %v2705 = vld [vmem:[%s544] sm:$0xff]
      %v2706 = vld [vmem:[%s544 + $0x8] sm:$0xff]
      %v2707 = vld [vmem:[%s544 + $0x10] sm:$0xff]
      %v2708 = vld [vmem:[%s544 + $0x18] sm:$0xff]
      %v2709 = vld [vmem:[%s544 + $0x20] sm:$0xff]
      %v2710 = vld [vmem:[%s544 + $0x28] sm:$0xff]
      %v2711 = vld [vmem:[%s544 + $0x30] sm:$0xff]
      %v2712 = vld [vmem:[%s544 + $0x38] sm:$0xff]
      %v2713 = vlaneseq
      %v2714 = vshrl.u32 %v2713, 7
      %v2715 = vsub.s32 3, %v2714
      %v2716 = vrot.slane %v640, %v2715
      %vm2717 = vcmask 523264
      %v2719 = vsel %vm2717, %v2701, 0
      %v2722 = vsel %vm2717, %v2702, 0
      %v2725 = vsel %vm2717, %v2703, 0
      %v2728 = vsel %vm2717, %v2704, 0
      %2730 = vmatprep.subr.mxu0 0.0
      %2731 = vmatpush1.msra.mxu0 0.0
      %2732 = vmatprep.subr.mxu0 0.0
      %2733 = vmatpush1.msra.mxu0 0.0
      %2734 = vmatprep.subr.mxu0 0.0
      %2735 = vmatpush1.msra.mxu0 0.0
      %2736 = vmatprep.subr.mxu0 0.0
      %2737 = vmatpush1.msra.mxu0 0.0
      %2738 = vmatprep.subr.mxu0 0.0
      %2739 = vmatpush1.msra.mxu0 0.0
      %2740 = vmatprep.subr.mxu0 0.0
      %2741 = vmatpush1.msra.mxu0 0.0
      %2742 = vmatprep.subr.mxu0 0.0
      %2743 = vmatpush1.msra.mxu0 0.0
      %2744 = vmatprep.subr.mxu0 0.0
      %2745 = vmatpush1.msra.mxu0 0.0
      %2746 = vmatprep.subr.mxu0 0.0
      %2747 = vmatpush1.msra.mxu0 %v2712
      %2748 = vmatprep.subr.mxu0 0.0
      %2749 = vmatpush1.msra.mxu0 %v2711
      %2750 = vmatprep.subr.mxu0 0.0
      %2751 = vmatpush1.msra.mxu0 %v2710
      %2752 = vmatprep.subr.mxu0 0.0
      %2753 = vmatpush1.msra.mxu0 %v2709
      %2754 = vmatprep.subr.mxu0 0.0
      %2755 = vmatpush1.msra.mxu0 %v2708
      %2756 = vmatprep.subr.mxu0 0.0
      %2757 = vmatpush1.msra.mxu0 %v2707
      %2758 = vmatprep.subr.mxu0 0.0
      %2759 = vmatpush1.msra.mxu0 %v2706
      %2760 = vmatprep.subr.mxu0 0.0
      %2761 = vmatpush1.msra.mxu0 %v2705
      %2762 = vmatprep.subr.mxu0 0.0
      %2763 = vmatpush2.msra.mxu0 0.0
      %2764 = vmatprep.subr.mxu0 0.0
      %2765 = vmatpush2.msra.mxu0 0.0
      %2766 = vmatprep.subr.mxu0 0.0
      %2767 = vmatpush2.msra.mxu0 0.0
      %2768 = vmatprep.subr.mxu0 0.0
      %2769 = vmatpush2.msra.mxu0 0.0
      %2770 = vmatprep.subr.mxu0 0.0
      %2771 = vmatpush2.msra.mxu0 0.0
      %2772 = vmatprep.subr.mxu0 0.0
      %2773 = vmatpush2.msra.mxu0 0.0
      %2774 = vmatprep.subr.mxu0 0.0
      %2775 = vmatpush2.msra.mxu0 0.0
      %2776 = vmatprep.subr.mxu0 0.0
      %2777 = vmatpush2.msra.mxu0 0.0
      %2778 = vmatprep.subr.mxu0 0.0
      %2779 = vmatpush2.msra.mxu0 0.0
      %2780 = vmatprep.subr.mxu0 0.0
      %2781 = vmatpush2.msra.mxu0 0.0
      %2782 = vmatprep.subr.mxu0 0.0
      %2783 = vmatpush2.msra.mxu0 0.0
      %2784 = vmatprep.subr.mxu0 0.0
      %2785 = vmatpush2.msra.mxu0 0.0
      %2786 = vmatprep.subr.mxu0 0.0
      %2787 = vmatpush2.msra.mxu0 0.0
      %2788 = vmatprep.subr.mxu0 0.0
      %2789 = vmatpush2.msra.mxu0 0.0
      %2790 = vmatprep.subr.mxu0 0.0
      %2791 = vmatpush2.msra.mxu0 0.0
      %2792 = vmatprep.subr.mxu0 0.0
      %2793 = vmatpush2.msra.mxu0 0.0
      %2794 = vmatprep.mubr.f32.mxu0 0.0
      %2795 = vmatmul.mubr.f32.gmra.mxu0 %v2719
      %v2796 = vpop.f32.mrf.mxu0
      %v2797 = vadd.f32 %v2716, %v2796
      %v2798 = vpop.f32.mrf.mxu0
      %2799 = vmatprep.mubr.f32.mxu0 0.0
      %2800 = vmatmul.mubr.f32.gmra.mxu0 %v2722
      %v2801 = vpop.f32.mrf.mxu0
      %v2802 = vadd.f32 %v2716, %v2801
      %v2803 = vpop.f32.mrf.mxu0
      %2804 = vmatprep.mubr.f32.mxu0 0.0
      %2805 = vmatmul.mubr.f32.gmra.mxu0 %v2725
      %v2806 = vpop.f32.mrf.mxu0
      %v2807 = vadd.f32 %v2716, %v2806
      %v2808 = vpop.f32.mrf.mxu0
      %2809 = vmatprep.mubr.f32.mxu0 0.0
      %2810 = vmatmul.mubr.f32.gmra.mxu0 %v2728
      %v2811 = vpop.f32.mrf.mxu0
      %v2812 = vadd.f32 %v2716, %v2811
      %v2813 = vpop.f32.mrf.mxu0
      %2814 = vdwg.mxu0
      %v2815 = vadd.f32 %v2589, %v2797
      %v2816 = vadd.f32 %v2590, %v2802
      %v2817 = vadd.f32 %v2591, %v2807
      %v2818 = vadd.f32 %v2592, %v2812
      %v2819 = vsel %vm562, %v2815, 0.0
      %2820 = vadd.xlane.f32.xlu0 %v2819
      %v2821 = vpop.xlane.xlu0 %2820
      %v2822 = vsel %vm562, %v2816, 0.0
      %2823 = vadd.xlane.f32.xlu0 %v2822
      %v2824 = vpop.xlane.xlu0 %2823
      %v2825 = vsel %vm562, %v2817, 0.0
      %2826 = vadd.xlane.f32.xlu0 %v2825
      %v2827 = vpop.xlane.xlu0 %2826
      %v2828 = vsel %vm562, %v2818, 0.0
      %2829 = vadd.xlane.f32.xlu0 %v2828
      %v2830 = vpop.xlane.xlu0 %2829
      %v2831 = vmul.f32 %v2821, %v575
      %v2832 = vmul.f32 %v2824, %v575
      %v2833 = vmul.f32 %v2827, %v575
      %v2834 = vmul.f32 %v2830, %v575
      %v2835 = vsub.f32 %v2815, %v2831
      %v2836 = vsub.f32 %v2816, %v2832
      %v2837 = vsub.f32 %v2817, %v2833
      %v2838 = vsub.f32 %v2818, %v2834
      %v2839 = vmul.f32 %v2835, %v2835
      %v2840 = vmul.f32 %v2836, %v2836
      %v2841 = vmul.f32 %v2837, %v2837
      %v2842 = vmul.f32 %v2838, %v2838
      %v2843 = vsel %vm562, %v2839, 0.0
      %2844 = vadd.xlane.f32.xlu0 %v2843
      %v2845 = vpop.xlane.xlu0 %2844
      %v2846 = vsel %vm562, %v2840, 0.0
      %2847 = vadd.xlane.f32.xlu0 %v2846
      %v2848 = vpop.xlane.xlu0 %2847
      %v2849 = vsel %vm562, %v2841, 0.0
      %2850 = vadd.xlane.f32.xlu0 %v2849
      %v2851 = vpop.xlane.xlu0 %2850
      %v2852 = vsel %vm562, %v2842, 0.0
      %2853 = vadd.xlane.f32.xlu0 %v2852
      %v2854 = vpop.xlane.xlu0 %2853
      %v2855 = vmul.f32 %v2845, %v575
      %v2856 = vmul.f32 %v2848, %v575
      %v2857 = vmul.f32 %v2851, %v575
      %v2858 = vmul.f32 %v2854, %v575
      %v2859 = vadd.f32 %v2855, 1e-05
      %v2860 = vadd.f32 %v2856, 1e-05
      %v2861 = vadd.f32 %v2857, 1e-05
      %v2862 = vadd.f32 %v2858, 1e-05
      %v2863 = vrsqrt.pop %v2859
      %v2864 = vrsqrt.pop %v2860
      %v2865 = vrsqrt.pop %v2861
      %v2866 = vrsqrt.pop %v2862
      %v2867 = vmul.f32 %v2835, %v2863
      %v2868 = vmul.f32 %v2836, %v2864
      %v2869 = vmul.f32 %v2837, %v2865
      %v2870 = vmul.f32 %v2838, %v2866
      %v2871 = vlaneseq
      %v2872 = vshrl.u32 %v2871, 7
      %v2873 = vsub.s32 4, %v2872
      %v2874 = vrot.slane %v640, %v2873
      %v2875 = vmul.f32 %v2867, %v2874
      %v2876 = vmul.f32 %v2868, %v2874
      %v2877 = vmul.f32 %v2869, %v2874
      %v2878 = vmul.f32 %v2870, %v2874
      %v2879 = vlaneseq
      %v2880 = vshrl.u32 %v2879, 7
      %v2881 = vsub.s32 5, %v2880
      %v2882 = vrot.slane %v640, %v2881
      %v2883 = vadd.f32 %v2875, %v2882
      %v2884 = vadd.f32 %v2876, %v2882
      %v2885 = vadd.f32 %v2877, %v2882
      %v2886 = vadd.f32 %v2878, %v2882
      %s2887 = scalar_lea.vmem %s549, 8
      %v2888 = vld [vmem:[%s2887] sm:$0x3f]
      %s2889 = scalar_lea.vmem %s521, 32
      %v2890 = vld [vmem:[%s2889] sm:$0xff]
      %v2891 = vld [vmem:[%s2889 + $0x8] sm:$0xff]
      %v2892 = vld [vmem:[%s2889 + $0x10] sm:$0xff]
      %v2893 = vld [vmem:[%s2889 + $0x18] sm:$0xff]
      %s2894 = scalar_lea.vmem %s525, 1
      %v2895 = vld [vmem:[%s2894] sm:$0x1]
      %v2897 = vlaneseq
      %v2898 = vshrl.u32 %v2897, 7
      %v2899 = vsub.s32 0, %v2898
      %v2900 = vrot.slane %v2895, %v2899
      %v2903 = vsel %vm562, %v2883, 0
      %v2906 = vsel %vm562, %v2884, 0
      %v2909 = vsel %vm562, %v2885, 0
      %v2912 = vsel %vm562, %v2886, 0
      %2914 = vmatprep.subr.mxu0 0.0
      %2915 = vmatpush1.msra.mxu0 0.0
      %2916 = vmatprep.subr.mxu0 0.0
      %2917 = vmatpush1.msra.mxu0 0.0
      %2918 = vmatprep.subr.mxu0 0.0
      %2919 = vmatpush1.msra.mxu0 0.0
      %2920 = vmatprep.subr.mxu0 0.0
      %2921 = vmatpush1.msra.mxu0 0.0
      %2922 = vmatprep.subr.mxu0 0.0
      %2923 = vmatpush1.msra.mxu0 0.0
      %2924 = vmatprep.subr.mxu0 0.0
      %2925 = vmatpush1.msra.mxu0 0.0
      %2926 = vmatprep.subr.mxu0 0.0
      %2927 = vmatpush1.msra.mxu0 0.0
      %2928 = vmatprep.subr.mxu0 0.0
      %2929 = vmatpush1.msra.mxu0 0.0
      %2930 = vmatprep.subr.mxu0 0.0
      %2931 = vmatpush1.msra.mxu0 0.0
      %2932 = vmatprep.subr.mxu0 0.0
      %2933 = vmatpush1.msra.mxu0 0.0
      %2934 = vmatprep.subr.mxu0 0.0
      %2935 = vmatpush1.msra.mxu0 0.0
      %2936 = vmatprep.subr.mxu0 0.0
      %2937 = vmatpush1.msra.mxu0 0.0
      %2938 = vmatprep.subr.mxu0 0.0
      %2939 = vmatpush1.msra.mxu0 %v2893
      %2940 = vmatprep.subr.mxu0 0.0
      %2941 = vmatpush1.msra.mxu0 %v2892
      %2942 = vmatprep.subr.mxu0 0.0
      %2943 = vmatpush1.msra.mxu0 %v2891
      %2944 = vmatprep.subr.mxu0 0.0
      %2945 = vmatpush1.msra.mxu0 %v2890
      %2946 = vmatprep.subr.mxu0 0.0
      %2947 = vmatpush2.msra.mxu0 0.0
      %2948 = vmatprep.subr.mxu0 0.0
      %2949 = vmatpush2.msra.mxu0 0.0
      %2950 = vmatprep.subr.mxu0 0.0
      %2951 = vmatpush2.msra.mxu0 0.0
      %2952 = vmatprep.subr.mxu0 0.0
      %2953 = vmatpush2.msra.mxu0 0.0
      %2954 = vmatprep.subr.mxu0 0.0
      %2955 = vmatpush2.msra.mxu0 0.0
      %2956 = vmatprep.subr.mxu0 0.0
      %2957 = vmatpush2.msra.mxu0 0.0
      %2958 = vmatprep.subr.mxu0 0.0
      %2959 = vmatpush2.msra.mxu0 0.0
      %2960 = vmatprep.subr.mxu0 0.0
      %2961 = vmatpush2.msra.mxu0 0.0
      %2962 = vmatprep.subr.mxu0 0.0
      %2963 = vmatpush2.msra.mxu0 0.0
      %2964 = vmatprep.subr.mxu0 0.0
      %2965 = vmatpush2.msra.mxu0 0.0
      %2966 = vmatprep.subr.mxu0 0.0
      %2967 = vmatpush2.msra.mxu0 0.0
      %2968 = vmatprep.subr.mxu0 0.0
      %2969 = vmatpush2.msra.mxu0 0.0
      %2970 = vmatprep.subr.mxu0 0.0
      %2971 = vmatpush2.msra.mxu0 0.0
      %2972 = vmatprep.subr.mxu0 0.0
      %2973 = vmatpush2.msra.mxu0 0.0
      %2974 = vmatprep.subr.mxu0 0.0
      %2975 = vmatpush2.msra.mxu0 0.0
      %2976 = vmatprep.subr.mxu0 0.0
      %2977 = vmatpush2.msra.mxu0 0.0
      %2978 = vmatprep.mubr.f32.mxu0 0.0
      %2979 = vmatmul.mubr.f32.gmra.mxu0 %v2903
      %v2980 = vpop.f32.mrf.mxu0
      %v2981 = vadd.f32 %v2900, %v2980
      %v2982 = vpop.f32.mrf.mxu0
      %2983 = vmatprep.mubr.f32.mxu0 0.0
      %2984 = vmatmul.mubr.f32.gmra.mxu0 %v2906
      %v2985 = vpop.f32.mrf.mxu0
      %v2986 = vadd.f32 %v2900, %v2985
      %v2987 = vpop.f32.mrf.mxu0
      %2988 = vmatprep.mubr.f32.mxu0 0.0
      %2989 = vmatmul.mubr.f32.gmra.mxu0 %v2909
      %v2990 = vpop.f32.mrf.mxu0
      %v2991 = vadd.f32 %v2900, %v2990
      %v2992 = vpop.f32.mrf.mxu0
      %2993 = vmatprep.mubr.f32.mxu0 0.0
      %2994 = vmatmul.mubr.f32.gmra.mxu0 %v2912
      %v2995 = vpop.f32.mrf.mxu0
      %v2996 = vadd.f32 %v2900, %v2995
      %v2997 = vpop.f32.mrf.mxu0
      %2998 = vdwg.mxu0
      %3001 = vrot.lane.b32.xlu0 %v2981, 96
      %v3002 = vpop.permute.xlu0 %3001
      %3003 = vrot.lane.b32.xlu0 %v2986, 96
      %v3004 = vpop.permute.xlu0 %3003
      %v3005 = vsel %vm759, %v2981, 0
      %v3007 = vsel %vm759, %v2986, 0
      %v3009 = vsel %vm759, %v3002, 0
      %v3011 = vsel %vm759, %v3004, 0
      %3013 = vmatprep.subr.mxu0 0.0
      %3014 = vmatpush1.xpose.msra.mxu0 0.0
      %3015 = vmatprep.subr.mxu0 0.0
      %3016 = vmatpush1.xpose.msra.mxu0 0.0
      %3017 = vmatprep.subr.mxu0 0.0
      %3018 = vmatpush1.xpose.msra.mxu0 0.0
      %3019 = vmatprep.subr.mxu0 0.0
      %3020 = vmatpush1.xpose.msra.mxu0 0.0
      %3021 = vmatprep.subr.mxu0 0.0
      %3022 = vmatpush1.xpose.msra.mxu0 0.0
      %3023 = vmatprep.subr.mxu0 0.0
      %3024 = vmatpush1.xpose.msra.mxu0 0.0
      %3025 = vmatprep.subr.mxu0 0.0
      %3026 = vmatpush1.xpose.msra.mxu0 0.0
      %3027 = vmatprep.subr.mxu0 0.0
      %3028 = vmatpush1.xpose.msra.mxu0 0.0
      %3029 = vmatprep.subr.mxu0 0.0
      %3030 = vmatpush1.xpose.msra.mxu0 0.0
      %3031 = vmatprep.subr.mxu0 0.0
      %3032 = vmatpush1.xpose.msra.mxu0 0.0
      %3033 = vmatprep.subr.mxu0 0.0
      %3034 = vmatpush1.xpose.msra.mxu0 0.0
      %3035 = vmatprep.subr.mxu0 0.0
      %3036 = vmatpush1.xpose.msra.mxu0 0.0
      %3037 = vmatprep.subr.mxu0 0.0
      %3038 = vmatpush1.xpose.msra.mxu0 0.0
      %3039 = vmatprep.subr.mxu0 0.0
      %3040 = vmatpush1.xpose.msra.mxu0 0.0
      %3041 = vmatprep.subr.mxu0 0.0
      %3042 = vmatpush1.xpose.msra.mxu0 %v3011
      %3043 = vmatprep.subr.mxu0 0.0
      %3044 = vmatpush1.xpose.msra.mxu0 %v3009
      %3045 = vmatprep.subr.mxu0 0.0
      %3046 = vmatpush2.xpose.msra.mxu0 0.0
      %3047 = vmatprep.subr.mxu0 0.0
      %3048 = vmatpush2.xpose.msra.mxu0 0.0
      %3049 = vmatprep.subr.mxu0 0.0
      %3050 = vmatpush2.xpose.msra.mxu0 0.0
      %3051 = vmatprep.subr.mxu0 0.0
      %3052 = vmatpush2.xpose.msra.mxu0 0.0
      %3053 = vmatprep.subr.mxu0 0.0
      %3054 = vmatpush2.xpose.msra.mxu0 0.0
      %3055 = vmatprep.subr.mxu0 0.0
      %3056 = vmatpush2.xpose.msra.mxu0 0.0
      %3057 = vmatprep.subr.mxu0 0.0
      %3058 = vmatpush2.xpose.msra.mxu0 0.0
      %3059 = vmatprep.subr.mxu0 0.0
      %3060 = vmatpush2.xpose.msra.mxu0 0.0
      %3061 = vmatprep.subr.mxu0 0.0
      %3062 = vmatpush2.xpose.msra.mxu0 0.0
      %3063 = vmatprep.subr.mxu0 0.0
      %3064 = vmatpush2.xpose.msra.mxu0 0.0
      %3065 = vmatprep.subr.mxu0 0.0
      %3066 = vmatpush2.xpose.msra.mxu0 0.0
      %3067 = vmatprep.subr.mxu0 0.0
      %3068 = vmatpush2.xpose.msra.mxu0 0.0
      %3069 = vmatprep.subr.mxu0 0.0
      %3070 = vmatpush2.xpose.msra.mxu0 0.0
      %3071 = vmatprep.subr.mxu0 0.0
      %3072 = vmatpush2.xpose.msra.mxu0 0.0
      %3073 = vmatprep.subr.mxu0 0.0
      %3074 = vmatpush2.xpose.msra.mxu0 0.0
      %3075 = vmatprep.subr.mxu0 0.0
      %3076 = vmatpush2.xpose.msra.mxu0 0.0
      %3077 = vmatprep.mubr.f32.mxu0 0.0
      %3078 = vmatmul.mubr.f32.gmra.mxu0 %v3005
      %v3079 = vpop.f32.mrf.mxu0
      %v3080 = vadd.f32 %v752, %v3079
      %v3081 = vpop.f32.mrf.mxu0
      %3082 = vmatprep.mubr.f32.mxu0 0.0
      %3083 = vmatmul.mubr.f32.gmra.mxu0 %v3007
      %v3084 = vpop.f32.mrf.mxu0
      %v3085 = vadd.f32 %v752, %v3084
      %v3086 = vpop.f32.mrf.mxu0
      %3087 = vdwg.mxu0
      %v3088 = vsel %vm843, %v3080, -inf
      %3089 = vmax.xlane.f32.xlu0 %v3088
      %v3090 = vpop.xlane.xlu0 %3089
      %v3091 = vsel %vm843, %v3085, -inf
      %3092 = vmax.xlane.f32.xlu0 %v3091
      %v3093 = vpop.xlane.xlu0 %3092
      %v3094 = vsub.f32 %v3080, %v3090
      %v3095 = vsub.f32 %v3085, %v3093
      %v3096 = vmul.f32 %v3094, 1.442695
      %v3097 = vpow.pop %v3096
      %v3098 = vmul.f32 %v3095, 1.442695
      %v3099 = vpow.pop %v3098
      %v3100 = vsel %vm843, %v3097, 0.0
      %3101 = vadd.xlane.f32.xlu0 %v3100
      %v3102 = vpop.xlane.xlu0 %3101
      %v3103 = vsel %vm843, %v3099, 0.0
      %3104 = vadd.xlane.f32.xlu0 %v3103
      %v3105 = vpop.xlane.xlu0 %3104
      %v3106 = vrcp.pop %v3102
      %v3107 = vrcp.pop %v3105
      %v3108 = vmul.f32 %v3097, %v3106
      %v3109 = vmul.f32 %v3099, %v3107
      %3110 = vrot.lane.b32.xlu0 %v2981, 64
      %v3111 = vpop.permute.xlu0 %3110
      %3112 = vrot.lane.b32.xlu0 %v2986, 64
      %v3113 = vpop.permute.xlu0 %3112
      %v3117 = vsel %vm843, %v3108, 0
      %v3120 = vsel %vm843, %v3109, 0
      %3122 = vmatprep.subr.mxu0 0.0
      %3123 = vmatpush1.msra.mxu0 0.0
      %3124 = vmatprep.subr.mxu0 0.0
      %3125 = vmatpush1.msra.mxu0 0.0
      %3126 = vmatprep.subr.mxu0 0.0
      %3127 = vmatpush1.msra.mxu0 0.0
      %3128 = vmatprep.subr.mxu0 0.0
      %3129 = vmatpush1.msra.mxu0 0.0
      %3130 = vmatprep.subr.mxu0 0.0
      %3131 = vmatpush1.msra.mxu0 0.0
      %3132 = vmatprep.subr.mxu0 0.0
      %3133 = vmatpush1.msra.mxu0 0.0
      %3134 = vmatprep.subr.mxu0 0.0
      %3135 = vmatpush1.msra.mxu0 0.0
      %3136 = vmatprep.subr.mxu0 0.0
      %3137 = vmatpush1.msra.mxu0 0.0
      %3138 = vmatprep.subr.mxu0 0.0
      %3139 = vmatpush1.msra.mxu0 0.0
      %3140 = vmatprep.subr.mxu0 0.0
      %3141 = vmatpush1.msra.mxu0 0.0
      %3142 = vmatprep.subr.mxu0 0.0
      %3143 = vmatpush1.msra.mxu0 0.0
      %3144 = vmatprep.subr.mxu0 0.0
      %3145 = vmatpush1.msra.mxu0 0.0
      %3146 = vmatprep.subr.mxu0 0.0
      %3147 = vmatpush1.msra.mxu0 0.0
      %3148 = vmatprep.subr.mxu0 0.0
      %3149 = vmatpush1.msra.mxu0 0.0
      %3150 = vmatprep.subr.mxu0 0.0
      %3151 = vmatpush1.msra.mxu0 %v3113
      %3152 = vmatprep.subr.mxu0 0.0
      %3153 = vmatpush1.msra.mxu0 %v3111
      %3154 = vmatprep.subr.mxu0 0.0
      %3155 = vmatpush2.msra.mxu0 0.0
      %3156 = vmatprep.subr.mxu0 0.0
      %3157 = vmatpush2.msra.mxu0 0.0
      %3158 = vmatprep.subr.mxu0 0.0
      %3159 = vmatpush2.msra.mxu0 0.0
      %3160 = vmatprep.subr.mxu0 0.0
      %3161 = vmatpush2.msra.mxu0 0.0
      %3162 = vmatprep.subr.mxu0 0.0
      %3163 = vmatpush2.msra.mxu0 0.0
      %3164 = vmatprep.subr.mxu0 0.0
      %3165 = vmatpush2.msra.mxu0 0.0
      %3166 = vmatprep.subr.mxu0 0.0
      %3167 = vmatpush2.msra.mxu0 0.0
      %3168 = vmatprep.subr.mxu0 0.0
      %3169 = vmatpush2.msra.mxu0 0.0
      %3170 = vmatprep.subr.mxu0 0.0
      %3171 = vmatpush2.msra.mxu0 0.0
      %3172 = vmatprep.subr.mxu0 0.0
      %3173 = vmatpush2.msra.mxu0 0.0
      %3174 = vmatprep.subr.mxu0 0.0
      %3175 = vmatpush2.msra.mxu0 0.0
      %3176 = vmatprep.subr.mxu0 0.0
      %3177 = vmatpush2.msra.mxu0 0.0
      %3178 = vmatprep.subr.mxu0 0.0
      %3179 = vmatpush2.msra.mxu0 0.0
      %3180 = vmatprep.subr.mxu0 0.0
      %3181 = vmatpush2.msra.mxu0 0.0
      %3182 = vmatprep.subr.mxu0 0.0
      %3183 = vmatpush2.msra.mxu0 0.0
      %3184 = vmatprep.subr.mxu0 0.0
      %3185 = vmatpush2.msra.mxu0 0.0
      %3186 = vmatprep.mubr.f32.mxu0 0.0
      %3187 = vmatmul.mubr.f32.gmra.mxu0 %v3117
      %v3188 = vpop.f32.mrf.mxu0
      %v3189 = vadd.f32 0.0, %v3188
      %v3190 = vpop.f32.mrf.mxu0
      %3191 = vmatprep.mubr.f32.mxu0 0.0
      %3192 = vmatmul.mubr.f32.gmra.mxu0 %v3120
      %v3193 = vpop.f32.mrf.mxu0
      %v3194 = vadd.f32 0.0, %v3193
      %v3195 = vpop.f32.mrf.mxu0
      %3196 = vdwg.mxu0
      %3197 = vrot.lane.b32.xlu0 %v2981, 120
      %v3198 = vpop.permute.xlu0 %3197
      %3199 = vrot.lane.b32.xlu0 %v2986, 120
      %v3200 = vpop.permute.xlu0 %3199
      %3201 = vrot.lane.b32.xlu0 %v2981, 88
      %v3202 = vpop.permute.xlu0 %3201
      %3203 = vrot.lane.b32.xlu0 %v2986, 88
      %v3204 = vpop.permute.xlu0 %3203
      %v3205 = vsel %vm759, %v3198, 0
      %v3207 = vsel %vm759, %v3200, 0
      %v3209 = vsel %vm759, %v3202, 0
      %v3211 = vsel %vm759, %v3204, 0
      %3213 = vmatprep.subr.mxu0 0.0
      %3214 = vmatpush1.xpose.msra.mxu0 0.0
      %3215 = vmatprep.subr.mxu0 0.0
      %3216 = vmatpush1.xpose.msra.mxu0 0.0
      %3217 = vmatprep.subr.mxu0 0.0
      %3218 = vmatpush1.xpose.msra.mxu0 0.0
      %3219 = vmatprep.subr.mxu0 0.0
      %3220 = vmatpush1.xpose.msra.mxu0 0.0
      %3221 = vmatprep.subr.mxu0 0.0
      %3222 = vmatpush1.xpose.msra.mxu0 0.0
      %3223 = vmatprep.subr.mxu0 0.0
      %3224 = vmatpush1.xpose.msra.mxu0 0.0
      %3225 = vmatprep.subr.mxu0 0.0
      %3226 = vmatpush1.xpose.msra.mxu0 0.0
      %3227 = vmatprep.subr.mxu0 0.0
      %3228 = vmatpush1.xpose.msra.mxu0 0.0
      %3229 = vmatprep.subr.mxu0 0.0
      %3230 = vmatpush1.xpose.msra.mxu0 0.0
      %3231 = vmatprep.subr.mxu0 0.0
      %3232 = vmatpush1.xpose.msra.mxu0 0.0
      %3233 = vmatprep.subr.mxu0 0.0
      %3234 = vmatpush1.xpose.msra.mxu0 0.0
      %3235 = vmatprep.subr.mxu0 0.0
      %3236 = vmatpush1.xpose.msra.mxu0 0.0
      %3237 = vmatprep.subr.mxu0 0.0
      %3238 = vmatpush1.xpose.msra.mxu0 0.0
      %3239 = vmatprep.subr.mxu0 0.0
      %3240 = vmatpush1.xpose.msra.mxu0 0.0
      %3241 = vmatprep.subr.mxu0 0.0
      %3242 = vmatpush1.xpose.msra.mxu0 %v3211
      %3243 = vmatprep.subr.mxu0 0.0
      %3244 = vmatpush1.xpose.msra.mxu0 %v3209
      %3245 = vmatprep.subr.mxu0 0.0
      %3246 = vmatpush2.xpose.msra.mxu0 0.0
      %3247 = vmatprep.subr.mxu0 0.0
      %3248 = vmatpush2.xpose.msra.mxu0 0.0
      %3249 = vmatprep.subr.mxu0 0.0
      %3250 = vmatpush2.xpose.msra.mxu0 0.0
      %3251 = vmatprep.subr.mxu0 0.0
      %3252 = vmatpush2.xpose.msra.mxu0 0.0
      %3253 = vmatprep.subr.mxu0 0.0
      %3254 = vmatpush2.xpose.msra.mxu0 0.0
      %3255 = vmatprep.subr.mxu0 0.0
      %3256 = vmatpush2.xpose.msra.mxu0 0.0
      %3257 = vmatprep.subr.mxu0 0.0
      %3258 = vmatpush2.xpose.msra.mxu0 0.0
      %3259 = vmatprep.subr.mxu0 0.0
      %3260 = vmatpush2.xpose.msra.mxu0 0.0
      %3261 = vmatprep.subr.mxu0 0.0
      %3262 = vmatpush2.xpose.msra.mxu0 0.0
      %3263 = vmatprep.subr.mxu0 0.0
      %3264 = vmatpush2.xpose.msra.mxu0 0.0
      %3265 = vmatprep.subr.mxu0 0.0
      %3266 = vmatpush2.xpose.msra.mxu0 0.0
      %3267 = vmatprep.subr.mxu0 0.0
      %3268 = vmatpush2.xpose.msra.mxu0 0.0
      %3269 = vmatprep.subr.mxu0 0.0
      %3270 = vmatpush2.xpose.msra.mxu0 0.0
      %3271 = vmatprep.subr.mxu0 0.0
      %3272 = vmatpush2.xpose.msra.mxu0 0.0
      %3273 = vmatprep.subr.mxu0 0.0
      %3274 = vmatpush2.xpose.msra.mxu0 0.0
      %3275 = vmatprep.subr.mxu0 0.0
      %3276 = vmatpush2.xpose.msra.mxu0 0.0
      %3277 = vmatprep.mubr.f32.mxu0 0.0
      %3278 = vmatmul.mubr.f32.gmra.mxu0 %v3205
      %v3279 = vpop.f32.mrf.mxu0
      %v3280 = vadd.f32 %v752, %v3279
      %v3281 = vpop.f32.mrf.mxu0
      %3282 = vmatprep.mubr.f32.mxu0 0.0
      %3283 = vmatmul.mubr.f32.gmra.mxu0 %v3207
      %v3284 = vpop.f32.mrf.mxu0
      %v3285 = vadd.f32 %v752, %v3284
      %v3286 = vpop.f32.mrf.mxu0
      %3287 = vdwg.mxu0
      %v3288 = vsel %vm843, %v3280, -inf
      %3289 = vmax.xlane.f32.xlu0 %v3288
      %v3290 = vpop.xlane.xlu0 %3289
      %v3291 = vsel %vm843, %v3285, -inf
      %3292 = vmax.xlane.f32.xlu0 %v3291
      %v3293 = vpop.xlane.xlu0 %3292
      %v3294 = vsub.f32 %v3280, %v3290
      %v3295 = vsub.f32 %v3285, %v3293
      %v3296 = vmul.f32 %v3294, 1.442695
      %v3297 = vpow.pop %v3296
      %v3298 = vmul.f32 %v3295, 1.442695
      %v3299 = vpow.pop %v3298
      %v3300 = vsel %vm843, %v3297, 0.0
      %3301 = vadd.xlane.f32.xlu0 %v3300
      %v3302 = vpop.xlane.xlu0 %3301
      %v3303 = vsel %vm843, %v3299, 0.0
      %3304 = vadd.xlane.f32.xlu0 %v3303
      %v3305 = vpop.xlane.xlu0 %3304
      %v3306 = vrcp.pop %v3302
      %v3307 = vrcp.pop %v3305
      %v3308 = vmul.f32 %v3297, %v3306
      %v3309 = vmul.f32 %v3299, %v3307
      %3310 = vrot.lane.b32.xlu0 %v2981, 56
      %v3311 = vpop.permute.xlu0 %3310
      %3312 = vrot.lane.b32.xlu0 %v2986, 56
      %v3313 = vpop.permute.xlu0 %3312
      %v3317 = vsel %vm843, %v3308, 0
      %v3320 = vsel %vm843, %v3309, 0
      %3322 = vmatprep.subr.mxu0 0.0
      %3323 = vmatpush1.msra.mxu0 0.0
      %3324 = vmatprep.subr.mxu0 0.0
      %3325 = vmatpush1.msra.mxu0 0.0
      %3326 = vmatprep.subr.mxu0 0.0
      %3327 = vmatpush1.msra.mxu0 0.0
      %3328 = vmatprep.subr.mxu0 0.0
      %3329 = vmatpush1.msra.mxu0 0.0
      %3330 = vmatprep.subr.mxu0 0.0
      %3331 = vmatpush1.msra.mxu0 0.0
      %3332 = vmatprep.subr.mxu0 0.0
      %3333 = vmatpush1.msra.mxu0 0.0
      %3334 = vmatprep.subr.mxu0 0.0
      %3335 = vmatpush1.msra.mxu0 0.0
      %3336 = vmatprep.subr.mxu0 0.0
      %3337 = vmatpush1.msra.mxu0 0.0
      %3338 = vmatprep.subr.mxu0 0.0
      %3339 = vmatpush1.msra.mxu0 0.0
      %3340 = vmatprep.subr.mxu0 0.0
      %3341 = vmatpush1.msra.mxu0 0.0
      %3342 = vmatprep.subr.mxu0 0.0
      %3343 = vmatpush1.msra.mxu0 0.0
      %3344 = vmatprep.subr.mxu0 0.0
      %3345 = vmatpush1.msra.mxu0 0.0
      %3346 = vmatprep.subr.mxu0 0.0
      %3347 = vmatpush1.msra.mxu0 0.0
      %3348 = vmatprep.subr.mxu0 0.0
      %3349 = vmatpush1.msra.mxu0 0.0
      %3350 = vmatprep.subr.mxu0 0.0
      %3351 = vmatpush1.msra.mxu0 %v3313
      %3352 = vmatprep.subr.mxu0 0.0
      %3353 = vmatpush1.msra.mxu0 %v3311
      %3354 = vmatprep.subr.mxu0 0.0
      %3355 = vmatpush2.msra.mxu0 0.0
      %3356 = vmatprep.subr.mxu0 0.0
      %3357 = vmatpush2.msra.mxu0 0.0
      %3358 = vmatprep.subr.mxu0 0.0
      %3359 = vmatpush2.msra.mxu0 0.0
      %3360 = vmatprep.subr.mxu0 0.0
      %3361 = vmatpush2.msra.mxu0 0.0
      %3362 = vmatprep.subr.mxu0 0.0
      %3363 = vmatpush2.msra.mxu0 0.0
      %3364 = vmatprep.subr.mxu0 0.0
      %3365 = vmatpush2.msra.mxu0 0.0
      %3366 = vmatprep.subr.mxu0 0.0
      %3367 = vmatpush2.msra.mxu0 0.0
      %3368 = vmatprep.subr.mxu0 0.0
      %3369 = vmatpush2.msra.mxu0 0.0
      %3370 = vmatprep.subr.mxu0 0.0
      %3371 = vmatpush2.msra.mxu0 0.0
      %3372 = vmatprep.subr.mxu0 0.0
      %3373 = vmatpush2.msra.mxu0 0.0
      %3374 = vmatprep.subr.mxu0 0.0
      %3375 = vmatpush2.msra.mxu0 0.0
      %3376 = vmatprep.subr.mxu0 0.0
      %3377 = vmatpush2.msra.mxu0 0.0
      %3378 = vmatprep.subr.mxu0 0.0
      %3379 = vmatpush2.msra.mxu0 0.0
      %3380 = vmatprep.subr.mxu0 0.0
      %3381 = vmatpush2.msra.mxu0 0.0
      %3382 = vmatprep.subr.mxu0 0.0
      %3383 = vmatpush2.msra.mxu0 0.0
      %3384 = vmatprep.subr.mxu0 0.0
      %3385 = vmatpush2.msra.mxu0 0.0
      %3386 = vmatprep.mubr.f32.mxu0 0.0
      %3387 = vmatmul.mubr.f32.gmra.mxu0 %v3317
      %v3388 = vpop.f32.mrf.mxu0
      %v3389 = vadd.f32 0.0, %v3388
      %v3390 = vpop.f32.mrf.mxu0
      %3391 = vmatprep.mubr.f32.mxu0 0.0
      %3392 = vmatmul.mubr.f32.gmra.mxu0 %v3320
      %v3393 = vpop.f32.mrf.mxu0
      %v3394 = vadd.f32 0.0, %v3393
      %v3395 = vpop.f32.mrf.mxu0
      %3396 = vdwg.mxu0
      %3397 = vrot.lane.b32.xlu0 %v2981, 112
      %v3398 = vpop.permute.xlu0 %3397
      %3399 = vrot.lane.b32.xlu0 %v2986, 112
      %v3400 = vpop.permute.xlu0 %3399
      %3401 = vrot.lane.b32.xlu0 %v2981, 80
      %v3402 = vpop.permute.xlu0 %3401
      %3403 = vrot.lane.b32.xlu0 %v2986, 80
      %v3404 = vpop.permute.xlu0 %3403
      %v3405 = vsel %vm759, %v3398, 0
      %v3407 = vsel %vm759, %v3400, 0
      %v3409 = vsel %vm759, %v3402, 0
      %v3411 = vsel %vm759, %v3404, 0
      %3413 = vmatprep.subr.mxu0 0.0
      %3414 = vmatpush1.xpose.msra.mxu0 0.0
      %3415 = vmatprep.subr.mxu0 0.0
      %3416 = vmatpush1.xpose.msra.mxu0 0.0
      %3417 = vmatprep.subr.mxu0 0.0
      %3418 = vmatpush1.xpose.msra.mxu0 0.0
      %3419 = vmatprep.subr.mxu0 0.0
      %3420 = vmatpush1.xpose.msra.mxu0 0.0
      %3421 = vmatprep.subr.mxu0 0.0
      %3422 = vmatpush1.xpose.msra.mxu0 0.0
      %3423 = vmatprep.subr.mxu0 0.0
      %3424 = vmatpush1.xpose.msra.mxu0 0.0
      %3425 = vmatprep.subr.mxu0 0.0
      %3426 = vmatpush1.xpose.msra.mxu0 0.0
      %3427 = vmatprep.subr.mxu0 0.0
      %3428 = vmatpush1.xpose.msra.mxu0 0.0
      %3429 = vmatprep.subr.mxu0 0.0
      %3430 = vmatpush1.xpose.msra.mxu0 0.0
      %3431 = vmatprep.subr.mxu0 0.0
      %3432 = vmatpush1.xpose.msra.mxu0 0.0
      %3433 = vmatprep.subr.mxu0 0.0
      %3434 = vmatpush1.xpose.msra.mxu0 0.0
      %3435 = vmatprep.subr.mxu0 0.0
      %3436 = vmatpush1.xpose.msra.mxu0 0.0
      %3437 = vmatprep.subr.mxu0 0.0
      %3438 = vmatpush1.xpose.msra.mxu0 0.0
      %3439 = vmatprep.subr.mxu0 0.0
      %3440 = vmatpush1.xpose.msra.mxu0 0.0
      %3441 = vmatprep.subr.mxu0 0.0
      %3442 = vmatpush1.xpose.msra.mxu0 %v3411
      %3443 = vmatprep.subr.mxu0 0.0
      %3444 = vmatpush1.xpose.msra.mxu0 %v3409
      %3445 = vmatprep.subr.mxu0 0.0
      %3446 = vmatpush2.xpose.msra.mxu0 0.0
      %3447 = vmatprep.subr.mxu0 0.0
      %3448 = vmatpush2.xpose.msra.mxu0 0.0
      %3449 = vmatprep.subr.mxu0 0.0
      %3450 = vmatpush2.xpose.msra.mxu0 0.0
      %3451 = vmatprep.subr.mxu0 0.0
      %3452 = vmatpush2.xpose.msra.mxu0 0.0
      %3453 = vmatprep.subr.mxu0 0.0
      %3454 = vmatpush2.xpose.msra.mxu0 0.0
      %3455 = vmatprep.subr.mxu0 0.0
      %3456 = vmatpush2.xpose.msra.mxu0 0.0
      %3457 = vmatprep.subr.mxu0 0.0
      %3458 = vmatpush2.xpose.msra.mxu0 0.0
      %3459 = vmatprep.subr.mxu0 0.0
      %3460 = vmatpush2.xpose.msra.mxu0 0.0
      %3461 = vmatprep.subr.mxu0 0.0
      %3462 = vmatpush2.xpose.msra.mxu0 0.0
      %3463 = vmatprep.subr.mxu0 0.0
      %3464 = vmatpush2.xpose.msra.mxu0 0.0
      %3465 = vmatprep.subr.mxu0 0.0
      %3466 = vmatpush2.xpose.msra.mxu0 0.0
      %3467 = vmatprep.subr.mxu0 0.0
      %3468 = vmatpush2.xpose.msra.mxu0 0.0
      %3469 = vmatprep.subr.mxu0 0.0
      %3470 = vmatpush2.xpose.msra.mxu0 0.0
      %3471 = vmatprep.subr.mxu0 0.0
      %3472 = vmatpush2.xpose.msra.mxu0 0.0
      %3473 = vmatprep.subr.mxu0 0.0
      %3474 = vmatpush2.xpose.msra.mxu0 0.0
      %3475 = vmatprep.subr.mxu0 0.0
      %3476 = vmatpush2.xpose.msra.mxu0 0.0
      %3477 = vmatprep.mubr.f32.mxu0 0.0
      %3478 = vmatmul.mubr.f32.gmra.mxu0 %v3405
      %v3479 = vpop.f32.mrf.mxu0
      %v3480 = vadd.f32 %v752, %v3479
      %v3481 = vpop.f32.mrf.mxu0
      %3482 = vmatprep.mubr.f32.mxu0 0.0
      %3483 = vmatmul.mubr.f32.gmra.mxu0 %v3407
      %v3484 = vpop.f32.mrf.mxu0
      %v3485 = vadd.f32 %v752, %v3484
      %v3486 = vpop.f32.mrf.mxu0
      %3487 = vdwg.mxu0
      %v3488 = vsel %vm843, %v3480, -inf
      %3489 = vmax.xlane.f32.xlu0 %v3488
      %v3490 = vpop.xlane.xlu0 %3489
      %v3491 = vsel %vm843, %v3485, -inf
      %3492 = vmax.xlane.f32.xlu0 %v3491
      %v3493 = vpop.xlane.xlu0 %3492
      %v3494 = vsub.f32 %v3480, %v3490
      %v3495 = vsub.f32 %v3485, %v3493
      %v3496 = vmul.f32 %v3494, 1.442695
      %v3497 = vpow.pop %v3496
      %v3498 = vmul.f32 %v3495, 1.442695
      %v3499 = vpow.pop %v3498
      %v3500 = vsel %vm843, %v3497, 0.0
      %3501 = vadd.xlane.f32.xlu0 %v3500
      %v3502 = vpop.xlane.xlu0 %3501
      %v3503 = vsel %vm843, %v3499, 0.0
      %3504 = vadd.xlane.f32.xlu0 %v3503
      %v3505 = vpop.xlane.xlu0 %3504
      %v3506 = vrcp.pop %v3502
      %v3507 = vrcp.pop %v3505
      %v3508 = vmul.f32 %v3497, %v3506
      %v3509 = vmul.f32 %v3499, %v3507
      %3510 = vrot.lane.b32.xlu0 %v2981, 48
      %v3511 = vpop.permute.xlu0 %3510
      %3512 = vrot.lane.b32.xlu0 %v2986, 48
      %v3513 = vpop.permute.xlu0 %3512
      %v3517 = vsel %vm843, %v3508, 0
      %v3520 = vsel %vm843, %v3509, 0
      %3522 = vmatprep.subr.mxu0 0.0
      %3523 = vmatpush1.msra.mxu0 0.0
      %3524 = vmatprep.subr.mxu0 0.0
      %3525 = vmatpush1.msra.mxu0 0.0
      %3526 = vmatprep.subr.mxu0 0.0
      %3527 = vmatpush1.msra.mxu0 0.0
      %3528 = vmatprep.subr.mxu0 0.0
      %3529 = vmatpush1.msra.mxu0 0.0
      %3530 = vmatprep.subr.mxu0 0.0
      %3531 = vmatpush1.msra.mxu0 0.0
      %3532 = vmatprep.subr.mxu0 0.0
      %3533 = vmatpush1.msra.mxu0 0.0
      %3534 = vmatprep.subr.mxu0 0.0
      %3535 = vmatpush1.msra.mxu0 0.0
      %3536 = vmatprep.subr.mxu0 0.0
      %3537 = vmatpush1.msra.mxu0 0.0
      %3538 = vmatprep.subr.mxu0 0.0
      %3539 = vmatpush1.msra.mxu0 0.0
      %3540 = vmatprep.subr.mxu0 0.0
      %3541 = vmatpush1.msra.mxu0 0.0
      %3542 = vmatprep.subr.mxu0 0.0
      %3543 = vmatpush1.msra.mxu0 0.0
      %3544 = vmatprep.subr.mxu0 0.0
      %3545 = vmatpush1.msra.mxu0 0.0
      %3546 = vmatprep.subr.mxu0 0.0
      %3547 = vmatpush1.msra.mxu0 0.0
      %3548 = vmatprep.subr.mxu0 0.0
      %3549 = vmatpush1.msra.mxu0 0.0
      %3550 = vmatprep.subr.mxu0 0.0
      %3551 = vmatpush1.msra.mxu0 %v3513
      %3552 = vmatprep.subr.mxu0 0.0
      %3553 = vmatpush1.msra.mxu0 %v3511
      %3554 = vmatprep.subr.mxu0 0.0
      %3555 = vmatpush2.msra.mxu0 0.0
      %3556 = vmatprep.subr.mxu0 0.0
      %3557 = vmatpush2.msra.mxu0 0.0
      %3558 = vmatprep.subr.mxu0 0.0
      %3559 = vmatpush2.msra.mxu0 0.0
      %3560 = vmatprep.subr.mxu0 0.0
      %3561 = vmatpush2.msra.mxu0 0.0
      %3562 = vmatprep.subr.mxu0 0.0
      %3563 = vmatpush2.msra.mxu0 0.0
      %3564 = vmatprep.subr.mxu0 0.0
      %3565 = vmatpush2.msra.mxu0 0.0
      %3566 = vmatprep.subr.mxu0 0.0
      %3567 = vmatpush2.msra.mxu0 0.0
      %3568 = vmatprep.subr.mxu0 0.0
      %3569 = vmatpush2.msra.mxu0 0.0
      %3570 = vmatprep.subr.mxu0 0.0
      %3571 = vmatpush2.msra.mxu0 0.0
      %3572 = vmatprep.subr.mxu0 0.0
      %3573 = vmatpush2.msra.mxu0 0.0
      %3574 = vmatprep.subr.mxu0 0.0
      %3575 = vmatpush2.msra.mxu0 0.0
      %3576 = vmatprep.subr.mxu0 0.0
      %3577 = vmatpush2.msra.mxu0 0.0
      %3578 = vmatprep.subr.mxu0 0.0
      %3579 = vmatpush2.msra.mxu0 0.0
      %3580 = vmatprep.subr.mxu0 0.0
      %3581 = vmatpush2.msra.mxu0 0.0
      %3582 = vmatprep.subr.mxu0 0.0
      %3583 = vmatpush2.msra.mxu0 0.0
      %3584 = vmatprep.subr.mxu0 0.0
      %3585 = vmatpush2.msra.mxu0 0.0
      %3586 = vmatprep.mubr.f32.mxu0 0.0
      %3587 = vmatmul.mubr.f32.gmra.mxu0 %v3517
      %v3588 = vpop.f32.mrf.mxu0
      %v3589 = vadd.f32 0.0, %v3588
      %v3590 = vpop.f32.mrf.mxu0
      %3591 = vmatprep.mubr.f32.mxu0 0.0
      %3592 = vmatmul.mubr.f32.gmra.mxu0 %v3520
      %v3593 = vpop.f32.mrf.mxu0
      %v3594 = vadd.f32 0.0, %v3593
      %v3595 = vpop.f32.mrf.mxu0
      %3596 = vdwg.mxu0
      %3597 = vrot.lane.b32.xlu0 %v2981, 104
      %v3598 = vpop.permute.xlu0 %3597
      %3599 = vrot.lane.b32.xlu0 %v2986, 104
      %v3600 = vpop.permute.xlu0 %3599
      %3601 = vrot.lane.b32.xlu0 %v2981, 72
      %v3602 = vpop.permute.xlu0 %3601
      %3603 = vrot.lane.b32.xlu0 %v2986, 72
      %v3604 = vpop.permute.xlu0 %3603
      %v3605 = vsel %vm759, %v3598, 0
      %v3607 = vsel %vm759, %v3600, 0
      %v3609 = vsel %vm759, %v3602, 0
      %v3611 = vsel %vm759, %v3604, 0
      %3613 = vmatprep.subr.mxu0 0.0
      %3614 = vmatpush1.xpose.msra.mxu0 0.0
      %3615 = vmatprep.subr.mxu0 0.0
      %3616 = vmatpush1.xpose.msra.mxu0 0.0
      %3617 = vmatprep.subr.mxu0 0.0
      %3618 = vmatpush1.xpose.msra.mxu0 0.0
      %3619 = vmatprep.subr.mxu0 0.0
      %3620 = vmatpush1.xpose.msra.mxu0 0.0
      %3621 = vmatprep.subr.mxu0 0.0
      %3622 = vmatpush1.xpose.msra.mxu0 0.0
      %3623 = vmatprep.subr.mxu0 0.0
      %3624 = vmatpush1.xpose.msra.mxu0 0.0
      %3625 = vmatprep.subr.mxu0 0.0
      %3626 = vmatpush1.xpose.msra.mxu0 0.0
      %3627 = vmatprep.subr.mxu0 0.0
      %3628 = vmatpush1.xpose.msra.mxu0 0.0
      %3629 = vmatprep.subr.mxu0 0.0
      %3630 = vmatpush1.xpose.msra.mxu0 0.0
      %3631 = vmatprep.subr.mxu0 0.0
      %3632 = vmatpush1.xpose.msra.mxu0 0.0
      %3633 = vmatprep.subr.mxu0 0.0
      %3634 = vmatpush1.xpose.msra.mxu0 0.0
      %3635 = vmatprep.subr.mxu0 0.0
      %3636 = vmatpush1.xpose.msra.mxu0 0.0
      %3637 = vmatprep.subr.mxu0 0.0
      %3638 = vmatpush1.xpose.msra.mxu0 0.0
      %3639 = vmatprep.subr.mxu0 0.0
      %3640 = vmatpush1.xpose.msra.mxu0 0.0
      %3641 = vmatprep.subr.mxu0 0.0
      %3642 = vmatpush1.xpose.msra.mxu0 %v3611
      %3643 = vmatprep.subr.mxu0 0.0
      %3644 = vmatpush1.xpose.msra.mxu0 %v3609
      %3645 = vmatprep.subr.mxu0 0.0
      %3646 = vmatpush2.xpose.msra.mxu0 0.0
      %3647 = vmatprep.subr.mxu0 0.0
      %3648 = vmatpush2.xpose.msra.mxu0 0.0
      %3649 = vmatprep.subr.mxu0 0.0
      %3650 = vmatpush2.xpose.msra.mxu0 0.0
      %3651 = vmatprep.subr.mxu0 0.0
      %3652 = vmatpush2.xpose.msra.mxu0 0.0
      %3653 = vmatprep.subr.mxu0 0.0
      %3654 = vmatpush2.xpose.msra.mxu0 0.0
      %3655 = vmatprep.subr.mxu0 0.0
      %3656 = vmatpush2.xpose.msra.mxu0 0.0
      %3657 = vmatprep.subr.mxu0 0.0
      %3658 = vmatpush2.xpose.msra.mxu0 0.0
      %3659 = vmatprep.subr.mxu0 0.0
      %3660 = vmatpush2.xpose.msra.mxu0 0.0
      %3661 = vmatprep.subr.mxu0 0.0
      %3662 = vmatpush2.xpose.msra.mxu0 0.0
      %3663 = vmatprep.subr.mxu0 0.0
      %3664 = vmatpush2.xpose.msra.mxu0 0.0
      %3665 = vmatprep.subr.mxu0 0.0
      %3666 = vmatpush2.xpose.msra.mxu0 0.0
      %3667 = vmatprep.subr.mxu0 0.0
      %3668 = vmatpush2.xpose.msra.mxu0 0.0
      %3669 = vmatprep.subr.mxu0 0.0
      %3670 = vmatpush2.xpose.msra.mxu0 0.0
      %3671 = vmatprep.subr.mxu0 0.0
      %3672 = vmatpush2.xpose.msra.mxu0 0.0
      %3673 = vmatprep.subr.mxu0 0.0
      %3674 = vmatpush2.xpose.msra.mxu0 0.0
      %3675 = vmatprep.subr.mxu0 0.0
      %3676 = vmatpush2.xpose.msra.mxu0 0.0
      %3677 = vmatprep.mubr.f32.mxu0 0.0
      %3678 = vmatmul.mubr.f32.gmra.mxu0 %v3605
      %v3679 = vpop.f32.mrf.mxu0
      %v3680 = vadd.f32 %v752, %v3679
      %v3681 = vpop.f32.mrf.mxu0
      %3682 = vmatprep.mubr.f32.mxu0 0.0
      %3683 = vmatmul.mubr.f32.gmra.mxu0 %v3607
      %v3684 = vpop.f32.mrf.mxu0
      %v3685 = vadd.f32 %v752, %v3684
      %v3686 = vpop.f32.mrf.mxu0
      %3687 = vdwg.mxu0
      %v3688 = vsel %vm843, %v3680, -inf
      %3689 = vmax.xlane.f32.xlu0 %v3688
      %v3690 = vpop.xlane.xlu0 %3689
      %v3691 = vsel %vm843, %v3685, -inf
      %3692 = vmax.xlane.f32.xlu0 %v3691
      %v3693 = vpop.xlane.xlu0 %3692
      %v3694 = vsub.f32 %v3680, %v3690
      %v3695 = vsub.f32 %v3685, %v3693
      %v3696 = vmul.f32 %v3694, 1.442695
      %v3697 = vpow.pop %v3696
      %v3698 = vmul.f32 %v3695, 1.442695
      %v3699 = vpow.pop %v3698
      %v3700 = vsel %vm843, %v3697, 0.0
      %3701 = vadd.xlane.f32.xlu0 %v3700
      %v3702 = vpop.xlane.xlu0 %3701
      %v3703 = vsel %vm843, %v3699, 0.0
      %3704 = vadd.xlane.f32.xlu0 %v3703
      %v3705 = vpop.xlane.xlu0 %3704
      %v3706 = vrcp.pop %v3702
      %v3707 = vrcp.pop %v3705
      %v3708 = vmul.f32 %v3697, %v3706
      %v3709 = vmul.f32 %v3699, %v3707
      %3710 = vrot.lane.b32.xlu0 %v2981, 40
      %v3711 = vpop.permute.xlu0 %3710
      %3712 = vrot.lane.b32.xlu0 %v2986, 40
      %v3713 = vpop.permute.xlu0 %3712
      %v3717 = vsel %vm843, %v3708, 0
      %v3720 = vsel %vm843, %v3709, 0
      %3722 = vmatprep.subr.mxu0 0.0
      %3723 = vmatpush1.msra.mxu0 0.0
      %3724 = vmatprep.subr.mxu0 0.0
      %3725 = vmatpush1.msra.mxu0 0.0
      %3726 = vmatprep.subr.mxu0 0.0
      %3727 = vmatpush1.msra.mxu0 0.0
      %3728 = vmatprep.subr.mxu0 0.0
      %3729 = vmatpush1.msra.mxu0 0.0
      %3730 = vmatprep.subr.mxu0 0.0
      %3731 = vmatpush1.msra.mxu0 0.0
      %3732 = vmatprep.subr.mxu0 0.0
      %3733 = vmatpush1.msra.mxu0 0.0
      %3734 = vmatprep.subr.mxu0 0.0
      %3735 = vmatpush1.msra.mxu0 0.0
      %3736 = vmatprep.subr.mxu0 0.0
      %3737 = vmatpush1.msra.mxu0 0.0
      %3738 = vmatprep.subr.mxu0 0.0
      %3739 = vmatpush1.msra.mxu0 0.0
      %3740 = vmatprep.subr.mxu0 0.0
      %3741 = vmatpush1.msra.mxu0 0.0
      %3742 = vmatprep.subr.mxu0 0.0
      %3743 = vmatpush1.msra.mxu0 0.0
      %3744 = vmatprep.subr.mxu0 0.0
      %3745 = vmatpush1.msra.mxu0 0.0
      %3746 = vmatprep.subr.mxu0 0.0
      %3747 = vmatpush1.msra.mxu0 0.0
      %3748 = vmatprep.subr.mxu0 0.0
      %3749 = vmatpush1.msra.mxu0 0.0
      %3750 = vmatprep.subr.mxu0 0.0
      %3751 = vmatpush1.msra.mxu0 %v3713
      %3752 = vmatprep.subr.mxu0 0.0
      %3753 = vmatpush1.msra.mxu0 %v3711
      %3754 = vmatprep.subr.mxu0 0.0
      %3755 = vmatpush2.msra.mxu0 0.0
      %3756 = vmatprep.subr.mxu0 0.0
      %3757 = vmatpush2.msra.mxu0 0.0
      %3758 = vmatprep.subr.mxu0 0.0
      %3759 = vmatpush2.msra.mxu0 0.0
      %3760 = vmatprep.subr.mxu0 0.0
      %3761 = vmatpush2.msra.mxu0 0.0
      %3762 = vmatprep.subr.mxu0 0.0
      %3763 = vmatpush2.msra.mxu0 0.0
      %3764 = vmatprep.subr.mxu0 0.0
      %3765 = vmatpush2.msra.mxu0 0.0
      %3766 = vmatprep.subr.mxu0 0.0
      %3767 = vmatpush2.msra.mxu0 0.0
      %3768 = vmatprep.subr.mxu0 0.0
      %3769 = vmatpush2.msra.mxu0 0.0
      %3770 = vmatprep.subr.mxu0 0.0
      %3771 = vmatpush2.msra.mxu0 0.0
      %3772 = vmatprep.subr.mxu0 0.0
      %3773 = vmatpush2.msra.mxu0 0.0
      %3774 = vmatprep.subr.mxu0 0.0
      %3775 = vmatpush2.msra.mxu0 0.0
      %3776 = vmatprep.subr.mxu0 0.0
      %3777 = vmatpush2.msra.mxu0 0.0
      %3778 = vmatprep.subr.mxu0 0.0
      %3779 = vmatpush2.msra.mxu0 0.0
      %3780 = vmatprep.subr.mxu0 0.0
      %3781 = vmatpush2.msra.mxu0 0.0
      %3782 = vmatprep.subr.mxu0 0.0
      %3783 = vmatpush2.msra.mxu0 0.0
      %3784 = vmatprep.subr.mxu0 0.0
      %3785 = vmatpush2.msra.mxu0 0.0
      %3786 = vmatprep.mubr.f32.mxu0 0.0
      %3787 = vmatmul.mubr.f32.gmra.mxu0 %v3717
      %v3788 = vpop.f32.mrf.mxu0
      %v3789 = vadd.f32 0.0, %v3788
      %v3790 = vpop.f32.mrf.mxu0
      %3791 = vmatprep.mubr.f32.mxu0 0.0
      %3792 = vmatmul.mubr.f32.gmra.mxu0 %v3720
      %v3793 = vpop.f32.mrf.mxu0
      %v3794 = vadd.f32 0.0, %v3793
      %v3795 = vpop.f32.mrf.mxu0
      %3796 = vdwg.mxu0
      %3799 = vrot.lane.b32.xlu0 %v3389, 8
      %v3800 = vpop.permute.xlu0 %3799
      %3801 = vrot.lane.b32.xlu0 %v3394, 8
      %v3802 = vpop.permute.xlu0 %3801
      %3807 = vrot.lane.b32.xlu0 %v3589, 16
      %v3808 = vpop.permute.xlu0 %3807
      %3809 = vrot.lane.b32.xlu0 %v3594, 16
      %v3810 = vpop.permute.xlu0 %3809
      %3815 = vrot.lane.b32.xlu0 %v3789, 24
      %v3816 = vpop.permute.xlu0 %3815
      %3817 = vrot.lane.b32.xlu0 %v3794, 24
      %v3818 = vpop.permute.xlu0 %3817
      %v3821 = vsel %vm759, %v3189, %v3800
      %v3822 = vsel %vm759, %v3194, %v3802
      %v3823 = vsel %vm843, %v3821, %v3808
      %v3824 = vsel %vm843, %v3822, %v3810
      %v3825 = vsel %vm1581, %v3823, %v3816
      %v3826 = vsel %vm1581, %v3824, %v3818
      %3829 = vrot.lane.b32.xlu0 %v2991, 96
      %v3830 = vpop.permute.xlu0 %3829
      %3831 = vrot.lane.b32.xlu0 %v2996, 96
      %v3832 = vpop.permute.xlu0 %3831
      %v3833 = vsel %vm759, %v2991, 0
      %v3835 = vsel %vm759, %v2996, 0
      %v3837 = vsel %vm759, %v3830, 0
      %v3839 = vsel %vm759, %v3832, 0
      %3841 = vmatprep.subr.mxu0 0.0
      %3842 = vmatpush1.xpose.msra.mxu0 0.0
      %3843 = vmatprep.subr.mxu0 0.0
      %3844 = vmatpush1.xpose.msra.mxu0 0.0
      %3845 = vmatprep.subr.mxu0 0.0
      %3846 = vmatpush1.xpose.msra.mxu0 0.0
      %3847 = vmatprep.subr.mxu0 0.0
      %3848 = vmatpush1.xpose.msra.mxu0 0.0
      %3849 = vmatprep.subr.mxu0 0.0
      %3850 = vmatpush1.xpose.msra.mxu0 0.0
      %3851 = vmatprep.subr.mxu0 0.0
      %3852 = vmatpush1.xpose.msra.mxu0 0.0
      %3853 = vmatprep.subr.mxu0 0.0
      %3854 = vmatpush1.xpose.msra.mxu0 0.0
      %3855 = vmatprep.subr.mxu0 0.0
      %3856 = vmatpush1.xpose.msra.mxu0 0.0
      %3857 = vmatprep.subr.mxu0 0.0
      %3858 = vmatpush1.xpose.msra.mxu0 0.0
      %3859 = vmatprep.subr.mxu0 0.0
      %3860 = vmatpush1.xpose.msra.mxu0 0.0
      %3861 = vmatprep.subr.mxu0 0.0
      %3862 = vmatpush1.xpose.msra.mxu0 0.0
      %3863 = vmatprep.subr.mxu0 0.0
      %3864 = vmatpush1.xpose.msra.mxu0 0.0
      %3865 = vmatprep.subr.mxu0 0.0
      %3866 = vmatpush1.xpose.msra.mxu0 0.0
      %3867 = vmatprep.subr.mxu0 0.0
      %3868 = vmatpush1.xpose.msra.mxu0 0.0
      %3869 = vmatprep.subr.mxu0 0.0
      %3870 = vmatpush1.xpose.msra.mxu0 %v3839
      %3871 = vmatprep.subr.mxu0 0.0
      %3872 = vmatpush1.xpose.msra.mxu0 %v3837
      %3873 = vmatprep.subr.mxu0 0.0
      %3874 = vmatpush2.xpose.msra.mxu0 0.0
      %3875 = vmatprep.subr.mxu0 0.0
      %3876 = vmatpush2.xpose.msra.mxu0 0.0
      %3877 = vmatprep.subr.mxu0 0.0
      %3878 = vmatpush2.xpose.msra.mxu0 0.0
      %3879 = vmatprep.subr.mxu0 0.0
      %3880 = vmatpush2.xpose.msra.mxu0 0.0
      %3881 = vmatprep.subr.mxu0 0.0
      %3882 = vmatpush2.xpose.msra.mxu0 0.0
      %3883 = vmatprep.subr.mxu0 0.0
      %3884 = vmatpush2.xpose.msra.mxu0 0.0
      %3885 = vmatprep.subr.mxu0 0.0
      %3886 = vmatpush2.xpose.msra.mxu0 0.0
      %3887 = vmatprep.subr.mxu0 0.0
      %3888 = vmatpush2.xpose.msra.mxu0 0.0
      %3889 = vmatprep.subr.mxu0 0.0
      %3890 = vmatpush2.xpose.msra.mxu0 0.0
      %3891 = vmatprep.subr.mxu0 0.0
      %3892 = vmatpush2.xpose.msra.mxu0 0.0
      %3893 = vmatprep.subr.mxu0 0.0
      %3894 = vmatpush2.xpose.msra.mxu0 0.0
      %3895 = vmatprep.subr.mxu0 0.0
      %3896 = vmatpush2.xpose.msra.mxu0 0.0
      %3897 = vmatprep.subr.mxu0 0.0
      %3898 = vmatpush2.xpose.msra.mxu0 0.0
      %3899 = vmatprep.subr.mxu0 0.0
      %3900 = vmatpush2.xpose.msra.mxu0 0.0
      %3901 = vmatprep.subr.mxu0 0.0
      %3902 = vmatpush2.xpose.msra.mxu0 0.0
      %3903 = vmatprep.subr.mxu0 0.0
      %3904 = vmatpush2.xpose.msra.mxu0 0.0
      %3905 = vmatprep.mubr.f32.mxu0 0.0
      %3906 = vmatmul.mubr.f32.gmra.mxu0 %v3833
      %v3907 = vpop.f32.mrf.mxu0
      %v3908 = vadd.f32 %v1587, %v3907
      %v3909 = vpop.f32.mrf.mxu0
      %3910 = vmatprep.mubr.f32.mxu0 0.0
      %3911 = vmatmul.mubr.f32.gmra.mxu0 %v3835
      %v3912 = vpop.f32.mrf.mxu0
      %v3913 = vadd.f32 %v1587, %v3912
      %v3914 = vpop.f32.mrf.mxu0
      %3915 = vdwg.mxu0
      %v3916 = vsel %vm843, %v3908, -inf
      %3917 = vmax.xlane.f32.xlu0 %v3916
      %v3918 = vpop.xlane.xlu0 %3917
      %v3919 = vsel %vm843, %v3913, -inf
      %3920 = vmax.xlane.f32.xlu0 %v3919
      %v3921 = vpop.xlane.xlu0 %3920
      %v3922 = vsub.f32 %v3908, %v3918
      %v3923 = vsub.f32 %v3913, %v3921
      %v3924 = vmul.f32 %v3922, 1.442695
      %v3925 = vpow.pop %v3924
      %v3926 = vmul.f32 %v3923, 1.442695
      %v3927 = vpow.pop %v3926
      %v3928 = vsel %vm843, %v3925, 0.0
      %3929 = vadd.xlane.f32.xlu0 %v3928
      %v3930 = vpop.xlane.xlu0 %3929
      %v3931 = vsel %vm843, %v3927, 0.0
      %3932 = vadd.xlane.f32.xlu0 %v3931
      %v3933 = vpop.xlane.xlu0 %3932
      %v3934 = vrcp.pop %v3930
      %v3935 = vrcp.pop %v3933
      %v3936 = vmul.f32 %v3925, %v3934
      %v3937 = vmul.f32 %v3927, %v3935
      %3938 = vrot.lane.b32.xlu0 %v2991, 64
      %v3939 = vpop.permute.xlu0 %3938
      %3940 = vrot.lane.b32.xlu0 %v2996, 64
      %v3941 = vpop.permute.xlu0 %3940
      %v3945 = vsel %vm843, %v3936, 0
      %v3948 = vsel %vm843, %v3937, 0
      %3950 = vmatprep.subr.mxu0 0.0
      %3951 = vmatpush1.msra.mxu0 0.0
      %3952 = vmatprep.subr.mxu0 0.0
      %3953 = vmatpush1.msra.mxu0 0.0
      %3954 = vmatprep.subr.mxu0 0.0
      %3955 = vmatpush1.msra.mxu0 0.0
      %3956 = vmatprep.subr.mxu0 0.0
      %3957 = vmatpush1.msra.mxu0 0.0
      %3958 = vmatprep.subr.mxu0 0.0
      %3959 = vmatpush1.msra.mxu0 0.0
      %3960 = vmatprep.subr.mxu0 0.0
      %3961 = vmatpush1.msra.mxu0 0.0
      %3962 = vmatprep.subr.mxu0 0.0
      %3963 = vmatpush1.msra.mxu0 0.0
      %3964 = vmatprep.subr.mxu0 0.0
      %3965 = vmatpush1.msra.mxu0 0.0
      %3966 = vmatprep.subr.mxu0 0.0
      %3967 = vmatpush1.msra.mxu0 0.0
      %3968 = vmatprep.subr.mxu0 0.0
      %3969 = vmatpush1.msra.mxu0 0.0
      %3970 = vmatprep.subr.mxu0 0.0
      %3971 = vmatpush1.msra.mxu0 0.0
      %3972 = vmatprep.subr.mxu0 0.0
      %3973 = vmatpush1.msra.mxu0 0.0
      %3974 = vmatprep.subr.mxu0 0.0
      %3975 = vmatpush1.msra.mxu0 0.0
      %3976 = vmatprep.subr.mxu0 0.0
      %3977 = vmatpush1.msra.mxu0 0.0
      %3978 = vmatprep.subr.mxu0 0.0
      %3979 = vmatpush1.msra.mxu0 %v3941
      %3980 = vmatprep.subr.mxu0 0.0
      %3981 = vmatpush1.msra.mxu0 %v3939
      %3982 = vmatprep.subr.mxu0 0.0
      %3983 = vmatpush2.msra.mxu0 0.0
      %3984 = vmatprep.subr.mxu0 0.0
      %3985 = vmatpush2.msra.mxu0 0.0
      %3986 = vmatprep.subr.mxu0 0.0
      %3987 = vmatpush2.msra.mxu0 0.0
      %3988 = vmatprep.subr.mxu0 0.0
      %3989 = vmatpush2.msra.mxu0 0.0
      %3990 = vmatprep.subr.mxu0 0.0
      %3991 = vmatpush2.msra.mxu0 0.0
      %3992 = vmatprep.subr.mxu0 0.0
      %3993 = vmatpush2.msra.mxu0 0.0
      %3994 = vmatprep.subr.mxu0 0.0
      %3995 = vmatpush2.msra.mxu0 0.0
      %3996 = vmatprep.subr.mxu0 0.0
      %3997 = vmatpush2.msra.mxu0 0.0
      %3998 = vmatprep.subr.mxu0 0.0
      %3999 = vmatpush2.msra.mxu0 0.0
      %4000 = vmatprep.subr.mxu0 0.0
      %4001 = vmatpush2.msra.mxu0 0.0
      %4002 = vmatprep.subr.mxu0 0.0
      %4003 = vmatpush2.msra.mxu0 0.0
      %4004 = vmatprep.subr.mxu0 0.0
      %4005 = vmatpush2.msra.mxu0 0.0
      %4006 = vmatprep.subr.mxu0 0.0
      %4007 = vmatpush2.msra.mxu0 0.0
      %4008 = vmatprep.subr.mxu0 0.0
      %4009 = vmatpush2.msra.mxu0 0.0
      %4010 = vmatprep.subr.mxu0 0.0
      %4011 = vmatpush2.msra.mxu0 0.0
      %4012 = vmatprep.subr.mxu0 0.0
      %4013 = vmatpush2.msra.mxu0 0.0
      %4014 = vmatprep.mubr.f32.mxu0 0.0
      %4015 = vmatmul.mubr.f32.gmra.mxu0 %v3945
      %v4016 = vpop.f32.mrf.mxu0
      %v4017 = vadd.f32 0.0, %v4016
      %v4018 = vpop.f32.mrf.mxu0
      %4019 = vmatprep.mubr.f32.mxu0 0.0
      %4020 = vmatmul.mubr.f32.gmra.mxu0 %v3948
      %v4021 = vpop.f32.mrf.mxu0
      %v4022 = vadd.f32 0.0, %v4021
      %v4023 = vpop.f32.mrf.mxu0
      %4024 = vdwg.mxu0
      %4025 = vrot.lane.b32.xlu0 %v2991, 120
      %v4026 = vpop.permute.xlu0 %4025
      %4027 = vrot.lane.b32.xlu0 %v2996, 120
      %v4028 = vpop.permute.xlu0 %4027
      %4029 = vrot.lane.b32.xlu0 %v2991, 88
      %v4030 = vpop.permute.xlu0 %4029
      %4031 = vrot.lane.b32.xlu0 %v2996, 88
      %v4032 = vpop.permute.xlu0 %4031
      %v4033 = vsel %vm759, %v4026, 0
      %v4035 = vsel %vm759, %v4028, 0
      %v4037 = vsel %vm759, %v4030, 0
      %v4039 = vsel %vm759, %v4032, 0
      %4041 = vmatprep.subr.mxu0 0.0
      %4042 = vmatpush1.xpose.msra.mxu0 0.0
      %4043 = vmatprep.subr.mxu0 0.0
      %4044 = vmatpush1.xpose.msra.mxu0 0.0
      %4045 = vmatprep.subr.mxu0 0.0
      %4046 = vmatpush1.xpose.msra.mxu0 0.0
      %4047 = vmatprep.subr.mxu0 0.0
      %4048 = vmatpush1.xpose.msra.mxu0 0.0
      %4049 = vmatprep.subr.mxu0 0.0
      %4050 = vmatpush1.xpose.msra.mxu0 0.0
      %4051 = vmatprep.subr.mxu0 0.0
      %4052 = vmatpush1.xpose.msra.mxu0 0.0
      %4053 = vmatprep.subr.mxu0 0.0
      %4054 = vmatpush1.xpose.msra.mxu0 0.0
      %4055 = vmatprep.subr.mxu0 0.0
      %4056 = vmatpush1.xpose.msra.mxu0 0.0
      %4057 = vmatprep.subr.mxu0 0.0
      %4058 = vmatpush1.xpose.msra.mxu0 0.0
      %4059 = vmatprep.subr.mxu0 0.0
      %4060 = vmatpush1.xpose.msra.mxu0 0.0
      %4061 = vmatprep.subr.mxu0 0.0
      %4062 = vmatpush1.xpose.msra.mxu0 0.0
      %4063 = vmatprep.subr.mxu0 0.0
      %4064 = vmatpush1.xpose.msra.mxu0 0.0
      %4065 = vmatprep.subr.mxu0 0.0
      %4066 = vmatpush1.xpose.msra.mxu0 0.0
      %4067 = vmatprep.subr.mxu0 0.0
      %4068 = vmatpush1.xpose.msra.mxu0 0.0
      %4069 = vmatprep.subr.mxu0 0.0
      %4070 = vmatpush1.xpose.msra.mxu0 %v4039
      %4071 = vmatprep.subr.mxu0 0.0
      %4072 = vmatpush1.xpose.msra.mxu0 %v4037
      %4073 = vmatprep.subr.mxu0 0.0
      %4074 = vmatpush2.xpose.msra.mxu0 0.0
      %4075 = vmatprep.subr.mxu0 0.0
      %4076 = vmatpush2.xpose.msra.mxu0 0.0
      %4077 = vmatprep.subr.mxu0 0.0
      %4078 = vmatpush2.xpose.msra.mxu0 0.0
      %4079 = vmatprep.subr.mxu0 0.0
      %4080 = vmatpush2.xpose.msra.mxu0 0.0
      %4081 = vmatprep.subr.mxu0 0.0
      %4082 = vmatpush2.xpose.msra.mxu0 0.0
      %4083 = vmatprep.subr.mxu0 0.0
      %4084 = vmatpush2.xpose.msra.mxu0 0.0
      %4085 = vmatprep.subr.mxu0 0.0
      %4086 = vmatpush2.xpose.msra.mxu0 0.0
      %4087 = vmatprep.subr.mxu0 0.0
      %4088 = vmatpush2.xpose.msra.mxu0 0.0
      %4089 = vmatprep.subr.mxu0 0.0
      %4090 = vmatpush2.xpose.msra.mxu0 0.0
      %4091 = vmatprep.subr.mxu0 0.0
      %4092 = vmatpush2.xpose.msra.mxu0 0.0
      %4093 = vmatprep.subr.mxu0 0.0
      %4094 = vmatpush2.xpose.msra.mxu0 0.0
      %4095 = vmatprep.subr.mxu0 0.0
      %4096 = vmatpush2.xpose.msra.mxu0 0.0
      %4097 = vmatprep.subr.mxu0 0.0
      %4098 = vmatpush2.xpose.msra.mxu0 0.0
      %4099 = vmatprep.subr.mxu0 0.0
      %4100 = vmatpush2.xpose.msra.mxu0 0.0
      %4101 = vmatprep.subr.mxu0 0.0
      %4102 = vmatpush2.xpose.msra.mxu0 0.0
      %4103 = vmatprep.subr.mxu0 0.0
      %4104 = vmatpush2.xpose.msra.mxu0 0.0
      %4105 = vmatprep.mubr.f32.mxu0 0.0
      %4106 = vmatmul.mubr.f32.gmra.mxu0 %v4033
      %v4107 = vpop.f32.mrf.mxu0
      %v4108 = vadd.f32 %v1587, %v4107
      %v4109 = vpop.f32.mrf.mxu0
      %4110 = vmatprep.mubr.f32.mxu0 0.0
      %4111 = vmatmul.mubr.f32.gmra.mxu0 %v4035
      %v4112 = vpop.f32.mrf.mxu0
      %v4113 = vadd.f32 %v1587, %v4112
      %v4114 = vpop.f32.mrf.mxu0
      %4115 = vdwg.mxu0
      %v4116 = vsel %vm843, %v4108, -inf
      %4117 = vmax.xlane.f32.xlu0 %v4116
      %v4118 = vpop.xlane.xlu0 %4117
      %v4119 = vsel %vm843, %v4113, -inf
      %4120 = vmax.xlane.f32.xlu0 %v4119
      %v4121 = vpop.xlane.xlu0 %4120
      %v4122 = vsub.f32 %v4108, %v4118
      %v4123 = vsub.f32 %v4113, %v4121
      %v4124 = vmul.f32 %v4122, 1.442695
      %v4125 = vpow.pop %v4124
      %v4126 = vmul.f32 %v4123, 1.442695
      %v4127 = vpow.pop %v4126
      %v4128 = vsel %vm843, %v4125, 0.0
      %4129 = vadd.xlane.f32.xlu0 %v4128
      %v4130 = vpop.xlane.xlu0 %4129
      %v4131 = vsel %vm843, %v4127, 0.0
      %4132 = vadd.xlane.f32.xlu0 %v4131
      %v4133 = vpop.xlane.xlu0 %4132
      %v4134 = vrcp.pop %v4130
      %v4135 = vrcp.pop %v4133
      %v4136 = vmul.f32 %v4125, %v4134
      %v4137 = vmul.f32 %v4127, %v4135
      %4138 = vrot.lane.b32.xlu0 %v2991, 56
      %v4139 = vpop.permute.xlu0 %4138
      %4140 = vrot.lane.b32.xlu0 %v2996, 56
      %v4141 = vpop.permute.xlu0 %4140
      %v4145 = vsel %vm843, %v4136, 0
      %v4148 = vsel %vm843, %v4137, 0
      %4150 = vmatprep.subr.mxu0 0.0
      %4151 = vmatpush1.msra.mxu0 0.0
      %4152 = vmatprep.subr.mxu0 0.0
      %4153 = vmatpush1.msra.mxu0 0.0
      %4154 = vmatprep.subr.mxu0 0.0
      %4155 = vmatpush1.msra.mxu0 0.0
      %4156 = vmatprep.subr.mxu0 0.0
      %4157 = vmatpush1.msra.mxu0 0.0
      %4158 = vmatprep.subr.mxu0 0.0
      %4159 = vmatpush1.msra.mxu0 0.0
      %4160 = vmatprep.subr.mxu0 0.0
      %4161 = vmatpush1.msra.mxu0 0.0
      %4162 = vmatprep.subr.mxu0 0.0
      %4163 = vmatpush1.msra.mxu0 0.0
      %4164 = vmatprep.subr.mxu0 0.0
      %4165 = vmatpush1.msra.mxu0 0.0
      %4166 = vmatprep.subr.mxu0 0.0
      %4167 = vmatpush1.msra.mxu0 0.0
      %4168 = vmatprep.subr.mxu0 0.0
      %4169 = vmatpush1.msra.mxu0 0.0
      %4170 = vmatprep.subr.mxu0 0.0
      %4171 = vmatpush1.msra.mxu0 0.0
      %4172 = vmatprep.subr.mxu0 0.0
      %4173 = vmatpush1.msra.mxu0 0.0
      %4174 = vmatprep.subr.mxu0 0.0
      %4175 = vmatpush1.msra.mxu0 0.0
      %4176 = vmatprep.subr.mxu0 0.0
      %4177 = vmatpush1.msra.mxu0 0.0
      %4178 = vmatprep.subr.mxu0 0.0
      %4179 = vmatpush1.msra.mxu0 %v4141
      %4180 = vmatprep.subr.mxu0 0.0
      %4181 = vmatpush1.msra.mxu0 %v4139
      %4182 = vmatprep.subr.mxu0 0.0
      %4183 = vmatpush2.msra.mxu0 0.0
      %4184 = vmatprep.subr.mxu0 0.0
      %4185 = vmatpush2.msra.mxu0 0.0
      %4186 = vmatprep.subr.mxu0 0.0
      %4187 = vmatpush2.msra.mxu0 0.0
      %4188 = vmatprep.subr.mxu0 0.0
      %4189 = vmatpush2.msra.mxu0 0.0
      %4190 = vmatprep.subr.mxu0 0.0
      %4191 = vmatpush2.msra.mxu0 0.0
      %4192 = vmatprep.subr.mxu0 0.0
      %4193 = vmatpush2.msra.mxu0 0.0
      %4194 = vmatprep.subr.mxu0 0.0
      %4195 = vmatpush2.msra.mxu0 0.0
      %4196 = vmatprep.subr.mxu0 0.0
      %4197 = vmatpush2.msra.mxu0 0.0
      %4198 = vmatprep.subr.mxu0 0.0
      %4199 = vmatpush2.msra.mxu0 0.0
      %4200 = vmatprep.subr.mxu0 0.0
      %4201 = vmatpush2.msra.mxu0 0.0
      %4202 = vmatprep.subr.mxu0 0.0
      %4203 = vmatpush2.msra.mxu0 0.0
      %4204 = vmatprep.subr.mxu0 0.0
      %4205 = vmatpush2.msra.mxu0 0.0
      %4206 = vmatprep.subr.mxu0 0.0
      %4207 = vmatpush2.msra.mxu0 0.0
      %4208 = vmatprep.subr.mxu0 0.0
      %4209 = vmatpush2.msra.mxu0 0.0
      %4210 = vmatprep.subr.mxu0 0.0
      %4211 = vmatpush2.msra.mxu0 0.0
      %4212 = vmatprep.subr.mxu0 0.0
      %4213 = vmatpush2.msra.mxu0 0.0
      %4214 = vmatprep.mubr.f32.mxu0 0.0
      %4215 = vmatmul.mubr.f32.gmra.mxu0 %v4145
      %v4216 = vpop.f32.mrf.mxu0
      %v4217 = vadd.f32 0.0, %v4216
      %v4218 = vpop.f32.mrf.mxu0
      %4219 = vmatprep.mubr.f32.mxu0 0.0
      %4220 = vmatmul.mubr.f32.gmra.mxu0 %v4148
      %v4221 = vpop.f32.mrf.mxu0
      %v4222 = vadd.f32 0.0, %v4221
      %v4223 = vpop.f32.mrf.mxu0
      %4224 = vdwg.mxu0
      %4225 = vrot.lane.b32.xlu0 %v2991, 112
      %v4226 = vpop.permute.xlu0 %4225
      %4227 = vrot.lane.b32.xlu0 %v2996, 112
      %v4228 = vpop.permute.xlu0 %4227
      %4229 = vrot.lane.b32.xlu0 %v2991, 80
      %v4230 = vpop.permute.xlu0 %4229
      %4231 = vrot.lane.b32.xlu0 %v2996, 80
      %v4232 = vpop.permute.xlu0 %4231
      %v4233 = vsel %vm759, %v4226, 0
      %v4235 = vsel %vm759, %v4228, 0
      %v4237 = vsel %vm759, %v4230, 0
      %v4239 = vsel %vm759, %v4232, 0
      %4241 = vmatprep.subr.mxu0 0.0
      %4242 = vmatpush1.xpose.msra.mxu0 0.0
      %4243 = vmatprep.subr.mxu0 0.0
      %4244 = vmatpush1.xpose.msra.mxu0 0.0
      %4245 = vmatprep.subr.mxu0 0.0
      %4246 = vmatpush1.xpose.msra.mxu0 0.0
      %4247 = vmatprep.subr.mxu0 0.0
      %4248 = vmatpush1.xpose.msra.mxu0 0.0
      %4249 = vmatprep.subr.mxu0 0.0
      %4250 = vmatpush1.xpose.msra.mxu0 0.0
      %4251 = vmatprep.subr.mxu0 0.0
      %4252 = vmatpush1.xpose.msra.mxu0 0.0
      %4253 = vmatprep.subr.mxu0 0.0
      %4254 = vmatpush1.xpose.msra.mxu0 0.0
      %4255 = vmatprep.subr.mxu0 0.0
      %4256 = vmatpush1.xpose.msra.mxu0 0.0
      %4257 = vmatprep.subr.mxu0 0.0
      %4258 = vmatpush1.xpose.msra.mxu0 0.0
      %4259 = vmatprep.subr.mxu0 0.0
      %4260 = vmatpush1.xpose.msra.mxu0 0.0
      %4261 = vmatprep.subr.mxu0 0.0
      %4262 = vmatpush1.xpose.msra.mxu0 0.0
      %4263 = vmatprep.subr.mxu0 0.0
      %4264 = vmatpush1.xpose.msra.mxu0 0.0
      %4265 = vmatprep.subr.mxu0 0.0
      %4266 = vmatpush1.xpose.msra.mxu0 0.0
      %4267 = vmatprep.subr.mxu0 0.0
      %4268 = vmatpush1.xpose.msra.mxu0 0.0
      %4269 = vmatprep.subr.mxu0 0.0
      %4270 = vmatpush1.xpose.msra.mxu0 %v4239
      %4271 = vmatprep.subr.mxu0 0.0
      %4272 = vmatpush1.xpose.msra.mxu0 %v4237
      %4273 = vmatprep.subr.mxu0 0.0
      %4274 = vmatpush2.xpose.msra.mxu0 0.0
      %4275 = vmatprep.subr.mxu0 0.0
      %4276 = vmatpush2.xpose.msra.mxu0 0.0
      %4277 = vmatprep.subr.mxu0 0.0
      %4278 = vmatpush2.xpose.msra.mxu0 0.0
      %4279 = vmatprep.subr.mxu0 0.0
      %4280 = vmatpush2.xpose.msra.mxu0 0.0
      %4281 = vmatprep.subr.mxu0 0.0
      %4282 = vmatpush2.xpose.msra.mxu0 0.0
      %4283 = vmatprep.subr.mxu0 0.0
      %4284 = vmatpush2.xpose.msra.mxu0 0.0
      %4285 = vmatprep.subr.mxu0 0.0
      %4286 = vmatpush2.xpose.msra.mxu0 0.0
      %4287 = vmatprep.subr.mxu0 0.0
      %4288 = vmatpush2.xpose.msra.mxu0 0.0
      %4289 = vmatprep.subr.mxu0 0.0
      %4290 = vmatpush2.xpose.msra.mxu0 0.0
      %4291 = vmatprep.subr.mxu0 0.0
      %4292 = vmatpush2.xpose.msra.mxu0 0.0
      %4293 = vmatprep.subr.mxu0 0.0
      %4294 = vmatpush2.xpose.msra.mxu0 0.0
      %4295 = vmatprep.subr.mxu0 0.0
      %4296 = vmatpush2.xpose.msra.mxu0 0.0
      %4297 = vmatprep.subr.mxu0 0.0
      %4298 = vmatpush2.xpose.msra.mxu0 0.0
      %4299 = vmatprep.subr.mxu0 0.0
      %4300 = vmatpush2.xpose.msra.mxu0 0.0
      %4301 = vmatprep.subr.mxu0 0.0
      %4302 = vmatpush2.xpose.msra.mxu0 0.0
      %4303 = vmatprep.subr.mxu0 0.0
      %4304 = vmatpush2.xpose.msra.mxu0 0.0
      %4305 = vmatprep.mubr.f32.mxu0 0.0
      %4306 = vmatmul.mubr.f32.gmra.mxu0 %v4233
      %v4307 = vpop.f32.mrf.mxu0
      %v4308 = vadd.f32 %v1587, %v4307
      %v4309 = vpop.f32.mrf.mxu0
      %4310 = vmatprep.mubr.f32.mxu0 0.0
      %4311 = vmatmul.mubr.f32.gmra.mxu0 %v4235
      %v4312 = vpop.f32.mrf.mxu0
      %v4313 = vadd.f32 %v1587, %v4312
      %v4314 = vpop.f32.mrf.mxu0
      %4315 = vdwg.mxu0
      %v4316 = vsel %vm843, %v4308, -inf
      %4317 = vmax.xlane.f32.xlu0 %v4316
      %v4318 = vpop.xlane.xlu0 %4317
      %v4319 = vsel %vm843, %v4313, -inf
      %4320 = vmax.xlane.f32.xlu0 %v4319
      %v4321 = vpop.xlane.xlu0 %4320
      %v4322 = vsub.f32 %v4308, %v4318
      %v4323 = vsub.f32 %v4313, %v4321
      %v4324 = vmul.f32 %v4322, 1.442695
      %v4325 = vpow.pop %v4324
      %v4326 = vmul.f32 %v4323, 1.442695
      %v4327 = vpow.pop %v4326
      %v4328 = vsel %vm843, %v4325, 0.0
      %4329 = vadd.xlane.f32.xlu0 %v4328
      %v4330 = vpop.xlane.xlu0 %4329
      %v4331 = vsel %vm843, %v4327, 0.0
      %4332 = vadd.xlane.f32.xlu0 %v4331
      %v4333 = vpop.xlane.xlu0 %4332
      %v4334 = vrcp.pop %v4330
      %v4335 = vrcp.pop %v4333
      %v4336 = vmul.f32 %v4325, %v4334
      %v4337 = vmul.f32 %v4327, %v4335
      %4338 = vrot.lane.b32.xlu0 %v2991, 48
      %v4339 = vpop.permute.xlu0 %4338
      %4340 = vrot.lane.b32.xlu0 %v2996, 48
      %v4341 = vpop.permute.xlu0 %4340
      %v4345 = vsel %vm843, %v4336, 0
      %v4348 = vsel %vm843, %v4337, 0
      %4350 = vmatprep.subr.mxu0 0.0
      %4351 = vmatpush1.msra.mxu0 0.0
      %4352 = vmatprep.subr.mxu0 0.0
      %4353 = vmatpush1.msra.mxu0 0.0
      %4354 = vmatprep.subr.mxu0 0.0
      %4355 = vmatpush1.msra.mxu0 0.0
      %4356 = vmatprep.subr.mxu0 0.0
      %4357 = vmatpush1.msra.mxu0 0.0
      %4358 = vmatprep.subr.mxu0 0.0
      %4359 = vmatpush1.msra.mxu0 0.0
      %4360 = vmatprep.subr.mxu0 0.0
      %4361 = vmatpush1.msra.mxu0 0.0
      %4362 = vmatprep.subr.mxu0 0.0
      %4363 = vmatpush1.msra.mxu0 0.0
      %4364 = vmatprep.subr.mxu0 0.0
      %4365 = vmatpush1.msra.mxu0 0.0
      %4366 = vmatprep.subr.mxu0 0.0
      %4367 = vmatpush1.msra.mxu0 0.0
      %4368 = vmatprep.subr.mxu0 0.0
      %4369 = vmatpush1.msra.mxu0 0.0
      %4370 = vmatprep.subr.mxu0 0.0
      %4371 = vmatpush1.msra.mxu0 0.0
      %4372 = vmatprep.subr.mxu0 0.0
      %4373 = vmatpush1.msra.mxu0 0.0
      %4374 = vmatprep.subr.mxu0 0.0
      %4375 = vmatpush1.msra.mxu0 0.0
      %4376 = vmatprep.subr.mxu0 0.0
      %4377 = vmatpush1.msra.mxu0 0.0
      %4378 = vmatprep.subr.mxu0 0.0
      %4379 = vmatpush1.msra.mxu0 %v4341
      %4380 = vmatprep.subr.mxu0 0.0
      %4381 = vmatpush1.msra.mxu0 %v4339
      %4382 = vmatprep.subr.mxu0 0.0
      %4383 = vmatpush2.msra.mxu0 0.0
      %4384 = vmatprep.subr.mxu0 0.0
      %4385 = vmatpush2.msra.mxu0 0.0
      %4386 = vmatprep.subr.mxu0 0.0
      %4387 = vmatpush2.msra.mxu0 0.0
      %4388 = vmatprep.subr.mxu0 0.0
      %4389 = vmatpush2.msra.mxu0 0.0
      %4390 = vmatprep.subr.mxu0 0.0
      %4391 = vmatpush2.msra.mxu0 0.0
      %4392 = vmatprep.subr.mxu0 0.0
      %4393 = vmatpush2.msra.mxu0 0.0
      %4394 = vmatprep.subr.mxu0 0.0
      %4395 = vmatpush2.msra.mxu0 0.0
      %4396 = vmatprep.subr.mxu0 0.0
      %4397 = vmatpush2.msra.mxu0 0.0
      %4398 = vmatprep.subr.mxu0 0.0
      %4399 = vmatpush2.msra.mxu0 0.0
      %4400 = vmatprep.subr.mxu0 0.0
      %4401 = vmatpush2.msra.mxu0 0.0
      %4402 = vmatprep.subr.mxu0 0.0
      %4403 = vmatpush2.msra.mxu0 0.0
      %4404 = vmatprep.subr.mxu0 0.0
      %4405 = vmatpush2.msra.mxu0 0.0
      %4406 = vmatprep.subr.mxu0 0.0
      %4407 = vmatpush2.msra.mxu0 0.0
      %4408 = vmatprep.subr.mxu0 0.0
      %4409 = vmatpush2.msra.mxu0 0.0
      %4410 = vmatprep.subr.mxu0 0.0
      %4411 = vmatpush2.msra.mxu0 0.0
      %4412 = vmatprep.subr.mxu0 0.0
      %4413 = vmatpush2.msra.mxu0 0.0
      %4414 = vmatprep.mubr.f32.mxu0 0.0
      %4415 = vmatmul.mubr.f32.gmra.mxu0 %v4345
      %v4416 = vpop.f32.mrf.mxu0
      %v4417 = vadd.f32 0.0, %v4416
      %v4418 = vpop.f32.mrf.mxu0
      %4419 = vmatprep.mubr.f32.mxu0 0.0
      %4420 = vmatmul.mubr.f32.gmra.mxu0 %v4348
      %v4421 = vpop.f32.mrf.mxu0
      %v4422 = vadd.f32 0.0, %v4421
      %v4423 = vpop.f32.mrf.mxu0
      %4424 = vdwg.mxu0
      %4425 = vrot.lane.b32.xlu0 %v2991, 104
      %v4426 = vpop.permute.xlu0 %4425
      %4427 = vrot.lane.b32.xlu0 %v2996, 104
      %v4428 = vpop.permute.xlu0 %4427
      %4429 = vrot.lane.b32.xlu0 %v2991, 72
      %v4430 = vpop.permute.xlu0 %4429
      %4431 = vrot.lane.b32.xlu0 %v2996, 72
      %v4432 = vpop.permute.xlu0 %4431
      %v4433 = vsel %vm759, %v4426, 0
      %v4435 = vsel %vm759, %v4428, 0
      %v4437 = vsel %vm759, %v4430, 0
      %v4439 = vsel %vm759, %v4432, 0
      %4441 = vmatprep.subr.mxu0 0.0
      %4442 = vmatpush1.xpose.msra.mxu0 0.0
      %4443 = vmatprep.subr.mxu0 0.0
      %4444 = vmatpush1.xpose.msra.mxu0 0.0
      %4445 = vmatprep.subr.mxu0 0.0
      %4446 = vmatpush1.xpose.msra.mxu0 0.0
      %4447 = vmatprep.subr.mxu0 0.0
      %4448 = vmatpush1.xpose.msra.mxu0 0.0
      %4449 = vmatprep.subr.mxu0 0.0
      %4450 = vmatpush1.xpose.msra.mxu0 0.0
      %4451 = vmatprep.subr.mxu0 0.0
      %4452 = vmatpush1.xpose.msra.mxu0 0.0
      %4453 = vmatprep.subr.mxu0 0.0
      %4454 = vmatpush1.xpose.msra.mxu0 0.0
      %4455 = vmatprep.subr.mxu0 0.0
      %4456 = vmatpush1.xpose.msra.mxu0 0.0
      %4457 = vmatprep.subr.mxu0 0.0
      %4458 = vmatpush1.xpose.msra.mxu0 0.0
      %4459 = vmatprep.subr.mxu0 0.0
      %4460 = vmatpush1.xpose.msra.mxu0 0.0
      %4461 = vmatprep.subr.mxu0 0.0
      %4462 = vmatpush1.xpose.msra.mxu0 0.0
      %4463 = vmatprep.subr.mxu0 0.0
      %4464 = vmatpush1.xpose.msra.mxu0 0.0
      %4465 = vmatprep.subr.mxu0 0.0
      %4466 = vmatpush1.xpose.msra.mxu0 0.0
      %4467 = vmatprep.subr.mxu0 0.0
      %4468 = vmatpush1.xpose.msra.mxu0 0.0
      %4469 = vmatprep.subr.mxu0 0.0
      %4470 = vmatpush1.xpose.msra.mxu0 %v4439
      %4471 = vmatprep.subr.mxu0 0.0
      %4472 = vmatpush1.xpose.msra.mxu0 %v4437
      %4473 = vmatprep.subr.mxu0 0.0
      %4474 = vmatpush2.xpose.msra.mxu0 0.0
      %4475 = vmatprep.subr.mxu0 0.0
      %4476 = vmatpush2.xpose.msra.mxu0 0.0
      %4477 = vmatprep.subr.mxu0 0.0
      %4478 = vmatpush2.xpose.msra.mxu0 0.0
      %4479 = vmatprep.subr.mxu0 0.0
      %4480 = vmatpush2.xpose.msra.mxu0 0.0
      %4481 = vmatprep.subr.mxu0 0.0
      %4482 = vmatpush2.xpose.msra.mxu0 0.0
      %4483 = vmatprep.subr.mxu0 0.0
      %4484 = vmatpush2.xpose.msra.mxu0 0.0
      %4485 = vmatprep.subr.mxu0 0.0
      %4486 = vmatpush2.xpose.msra.mxu0 0.0
      %4487 = vmatprep.subr.mxu0 0.0
      %4488 = vmatpush2.xpose.msra.mxu0 0.0
      %4489 = vmatprep.subr.mxu0 0.0
      %4490 = vmatpush2.xpose.msra.mxu0 0.0
      %4491 = vmatprep.subr.mxu0 0.0
      %4492 = vmatpush2.xpose.msra.mxu0 0.0
      %4493 = vmatprep.subr.mxu0 0.0
      %4494 = vmatpush2.xpose.msra.mxu0 0.0
      %4495 = vmatprep.subr.mxu0 0.0
      %4496 = vmatpush2.xpose.msra.mxu0 0.0
      %4497 = vmatprep.subr.mxu0 0.0
      %4498 = vmatpush2.xpose.msra.mxu0 0.0
      %4499 = vmatprep.subr.mxu0 0.0
      %4500 = vmatpush2.xpose.msra.mxu0 0.0
      %4501 = vmatprep.subr.mxu0 0.0
      %4502 = vmatpush2.xpose.msra.mxu0 0.0
      %4503 = vmatprep.subr.mxu0 0.0
      %4504 = vmatpush2.xpose.msra.mxu0 0.0
      %4505 = vmatprep.mubr.f32.mxu0 0.0
      %4506 = vmatmul.mubr.f32.gmra.mxu0 %v4433
      %v4507 = vpop.f32.mrf.mxu0
      %v4508 = vadd.f32 %v1587, %v4507
      %v4509 = vpop.f32.mrf.mxu0
      %4510 = vmatprep.mubr.f32.mxu0 0.0
      %4511 = vmatmul.mubr.f32.gmra.mxu0 %v4435
      %v4512 = vpop.f32.mrf.mxu0
      %v4513 = vadd.f32 %v1587, %v4512
      %v4514 = vpop.f32.mrf.mxu0
      %4515 = vdwg.mxu0
      %v4516 = vsel %vm843, %v4508, -inf
      %4517 = vmax.xlane.f32.xlu0 %v4516
      %v4518 = vpop.xlane.xlu0 %4517
      %v4519 = vsel %vm843, %v4513, -inf
      %4520 = vmax.xlane.f32.xlu0 %v4519
      %v4521 = vpop.xlane.xlu0 %4520
      %v4522 = vsub.f32 %v4508, %v4518
      %v4523 = vsub.f32 %v4513, %v4521
      %v4524 = vmul.f32 %v4522, 1.442695
      %v4525 = vpow.pop %v4524
      %v4526 = vmul.f32 %v4523, 1.442695
      %v4527 = vpow.pop %v4526
      %v4528 = vsel %vm843, %v4525, 0.0
      %4529 = vadd.xlane.f32.xlu0 %v4528
      %v4530 = vpop.xlane.xlu0 %4529
      %v4531 = vsel %vm843, %v4527, 0.0
      %4532 = vadd.xlane.f32.xlu0 %v4531
      %v4533 = vpop.xlane.xlu0 %4532
      %v4534 = vrcp.pop %v4530
      %v4535 = vrcp.pop %v4533
      %v4536 = vmul.f32 %v4525, %v4534
      %v4537 = vmul.f32 %v4527, %v4535
      %4538 = vrot.lane.b32.xlu0 %v2991, 40
      %v4539 = vpop.permute.xlu0 %4538
      %4540 = vrot.lane.b32.xlu0 %v2996, 40
      %v4541 = vpop.permute.xlu0 %4540
      %v4545 = vsel %vm843, %v4536, 0
      %v4548 = vsel %vm843, %v4537, 0
      %4550 = vmatprep.subr.mxu0 0.0
      %4551 = vmatpush1.msra.mxu0 0.0
      %4552 = vmatprep.subr.mxu0 0.0
      %4553 = vmatpush1.msra.mxu0 0.0
      %4554 = vmatprep.subr.mxu0 0.0
      %4555 = vmatpush1.msra.mxu0 0.0
      %4556 = vmatprep.subr.mxu0 0.0
      %4557 = vmatpush1.msra.mxu0 0.0
      %4558 = vmatprep.subr.mxu0 0.0
      %4559 = vmatpush1.msra.mxu0 0.0
      %4560 = vmatprep.subr.mxu0 0.0
      %4561 = vmatpush1.msra.mxu0 0.0
      %4562 = vmatprep.subr.mxu0 0.0
      %4563 = vmatpush1.msra.mxu0 0.0
      %4564 = vmatprep.subr.mxu0 0.0
      %4565 = vmatpush1.msra.mxu0 0.0
      %4566 = vmatprep.subr.mxu0 0.0
      %4567 = vmatpush1.msra.mxu0 0.0
      %4568 = vmatprep.subr.mxu0 0.0
      %4569 = vmatpush1.msra.mxu0 0.0
      %4570 = vmatprep.subr.mxu0 0.0
      %4571 = vmatpush1.msra.mxu0 0.0
      %4572 = vmatprep.subr.mxu0 0.0
      %4573 = vmatpush1.msra.mxu0 0.0
      %4574 = vmatprep.subr.mxu0 0.0
      %4575 = vmatpush1.msra.mxu0 0.0
      %4576 = vmatprep.subr.mxu0 0.0
      %4577 = vmatpush1.msra.mxu0 0.0
      %4578 = vmatprep.subr.mxu0 0.0
      %4579 = vmatpush1.msra.mxu0 %v4541
      %4580 = vmatprep.subr.mxu0 0.0
      %4581 = vmatpush1.msra.mxu0 %v4539
      %4582 = vmatprep.subr.mxu0 0.0
      %4583 = vmatpush2.msra.mxu0 0.0
      %4584 = vmatprep.subr.mxu0 0.0
      %4585 = vmatpush2.msra.mxu0 0.0
      %4586 = vmatprep.subr.mxu0 0.0
      %4587 = vmatpush2.msra.mxu0 0.0
      %4588 = vmatprep.subr.mxu0 0.0
      %4589 = vmatpush2.msra.mxu0 0.0
      %4590 = vmatprep.subr.mxu0 0.0
      %4591 = vmatpush2.msra.mxu0 0.0
      %4592 = vmatprep.subr.mxu0 0.0
      %4593 = vmatpush2.msra.mxu0 0.0
      %4594 = vmatprep.subr.mxu0 0.0
      %4595 = vmatpush2.msra.mxu0 0.0
      %4596 = vmatprep.subr.mxu0 0.0
      %4597 = vmatpush2.msra.mxu0 0.0
      %4598 = vmatprep.subr.mxu0 0.0
      %4599 = vmatpush2.msra.mxu0 0.0
      %4600 = vmatprep.subr.mxu0 0.0
      %4601 = vmatpush2.msra.mxu0 0.0
      %4602 = vmatprep.subr.mxu0 0.0
      %4603 = vmatpush2.msra.mxu0 0.0
      %4604 = vmatprep.subr.mxu0 0.0
      %4605 = vmatpush2.msra.mxu0 0.0
      %4606 = vmatprep.subr.mxu0 0.0
      %4607 = vmatpush2.msra.mxu0 0.0
      %4608 = vmatprep.subr.mxu0 0.0
      %4609 = vmatpush2.msra.mxu0 0.0
      %4610 = vmatprep.subr.mxu0 0.0
      %4611 = vmatpush2.msra.mxu0 0.0
      %4612 = vmatprep.subr.mxu0 0.0
      %4613 = vmatpush2.msra.mxu0 0.0
      %4614 = vmatprep.mubr.f32.mxu0 0.0
      %4615 = vmatmul.mubr.f32.gmra.mxu0 %v4545
      %v4616 = vpop.f32.mrf.mxu0
      %v4617 = vadd.f32 0.0, %v4616
      %v4618 = vpop.f32.mrf.mxu0
      %4619 = vmatprep.mubr.f32.mxu0 0.0
      %4620 = vmatmul.mubr.f32.gmra.mxu0 %v4548
      %v4621 = vpop.f32.mrf.mxu0
      %v4622 = vadd.f32 0.0, %v4621
      %v4623 = vpop.f32.mrf.mxu0
      %4624 = vdwg.mxu0
      %4627 = vrot.lane.b32.xlu0 %v4217, 8
      %v4628 = vpop.permute.xlu0 %4627
      %4629 = vrot.lane.b32.xlu0 %v4222, 8
      %v4630 = vpop.permute.xlu0 %4629
      %4635 = vrot.lane.b32.xlu0 %v4417, 16
      %v4636 = vpop.permute.xlu0 %4635
      %4637 = vrot.lane.b32.xlu0 %v4422, 16
      %v4638 = vpop.permute.xlu0 %4637
      %4643 = vrot.lane.b32.xlu0 %v4617, 24
      %v4644 = vpop.permute.xlu0 %4643
      %4645 = vrot.lane.b32.xlu0 %v4622, 24
      %v4646 = vpop.permute.xlu0 %4645
      %v4649 = vsel %vm759, %v4017, %v4628
      %v4650 = vsel %vm759, %v4022, %v4630
      %v4651 = vsel %vm843, %v4649, %v4636
      %v4652 = vsel %vm843, %v4650, %v4638
      %v4653 = vsel %vm1581, %v4651, %v4644
      %v4654 = vsel %vm1581, %v4652, %v4646
      %s4655 = scalar_lea.vmem %s530, 32
      %v4656 = vld [vmem:[%s4655] sm:$0xff]
      %v4657 = vld [vmem:[%s4655 + $0x8] sm:$0xff]
      %v4658 = vld [vmem:[%s4655 + $0x10] sm:$0xff]
      %v4659 = vld [vmem:[%s4655 + $0x18] sm:$0xff]
      %v4660 = vlaneseq
      %v4661 = vshrl.u32 %v4660, 7
      %v4662 = vsub.s32 0, %v4661
      %v4663 = vrot.slane %v2888, %v4662
      %v4665 = vsel %vm562, %v3825, 0
      %v4668 = vsel %vm562, %v3826, 0
      %v4671 = vsel %vm562, %v4653, 0
      %v4674 = vsel %vm562, %v4654, 0
      %4676 = vmatprep.subr.mxu0 0.0
      %4677 = vmatpush1.msra.mxu0 0.0
      %4678 = vmatprep.subr.mxu0 0.0
      %4679 = vmatpush1.msra.mxu0 0.0
      %4680 = vmatprep.subr.mxu0 0.0
      %4681 = vmatpush1.msra.mxu0 0.0
      %4682 = vmatprep.subr.mxu0 0.0
      %4683 = vmatpush1.msra.mxu0 0.0
      %4684 = vmatprep.subr.mxu0 0.0
      %4685 = vmatpush1.msra.mxu0 0.0
      %4686 = vmatprep.subr.mxu0 0.0
      %4687 = vmatpush1.msra.mxu0 0.0
      %4688 = vmatprep.subr.mxu0 0.0
      %4689 = vmatpush1.msra.mxu0 0.0
      %4690 = vmatprep.subr.mxu0 0.0
      %4691 = vmatpush1.msra.mxu0 0.0
      %4692 = vmatprep.subr.mxu0 0.0
      %4693 = vmatpush1.msra.mxu0 0.0
      %4694 = vmatprep.subr.mxu0 0.0
      %4695 = vmatpush1.msra.mxu0 0.0
      %4696 = vmatprep.subr.mxu0 0.0
      %4697 = vmatpush1.msra.mxu0 0.0
      %4698 = vmatprep.subr.mxu0 0.0
      %4699 = vmatpush1.msra.mxu0 0.0
      %4700 = vmatprep.subr.mxu0 0.0
      %4701 = vmatpush1.msra.mxu0 %v4659
      %4702 = vmatprep.subr.mxu0 0.0
      %4703 = vmatpush1.msra.mxu0 %v4658
      %4704 = vmatprep.subr.mxu0 0.0
      %4705 = vmatpush1.msra.mxu0 %v4657
      %4706 = vmatprep.subr.mxu0 0.0
      %4707 = vmatpush1.msra.mxu0 %v4656
      %4708 = vmatprep.subr.mxu0 0.0
      %4709 = vmatpush2.msra.mxu0 0.0
      %4710 = vmatprep.subr.mxu0 0.0
      %4711 = vmatpush2.msra.mxu0 0.0
      %4712 = vmatprep.subr.mxu0 0.0
      %4713 = vmatpush2.msra.mxu0 0.0
      %4714 = vmatprep.subr.mxu0 0.0
      %4715 = vmatpush2.msra.mxu0 0.0
      %4716 = vmatprep.subr.mxu0 0.0
      %4717 = vmatpush2.msra.mxu0 0.0
      %4718 = vmatprep.subr.mxu0 0.0
      %4719 = vmatpush2.msra.mxu0 0.0
      %4720 = vmatprep.subr.mxu0 0.0
      %4721 = vmatpush2.msra.mxu0 0.0
      %4722 = vmatprep.subr.mxu0 0.0
      %4723 = vmatpush2.msra.mxu0 0.0
      %4724 = vmatprep.subr.mxu0 0.0
      %4725 = vmatpush2.msra.mxu0 0.0
      %4726 = vmatprep.subr.mxu0 0.0
      %4727 = vmatpush2.msra.mxu0 0.0
      %4728 = vmatprep.subr.mxu0 0.0
      %4729 = vmatpush2.msra.mxu0 0.0
      %4730 = vmatprep.subr.mxu0 0.0
      %4731 = vmatpush2.msra.mxu0 0.0
      %4732 = vmatprep.subr.mxu0 0.0
      %4733 = vmatpush2.msra.mxu0 0.0
      %4734 = vmatprep.subr.mxu0 0.0
      %4735 = vmatpush2.msra.mxu0 0.0
      %4736 = vmatprep.subr.mxu0 0.0
      %4737 = vmatpush2.msra.mxu0 0.0
      %4738 = vmatprep.subr.mxu0 0.0
      %4739 = vmatpush2.msra.mxu0 0.0
      %4740 = vmatprep.mubr.f32.mxu0 0.0
      %4741 = vmatmul.mubr.f32.gmra.mxu0 %v4665
      %v4742 = vpop.f32.mrf.mxu0
      %v4743 = vadd.f32 %v4663, %v4742
      %v4744 = vpop.f32.mrf.mxu0
      %4745 = vmatprep.mubr.f32.mxu0 0.0
      %4746 = vmatmul.mubr.f32.gmra.mxu0 %v4668
      %v4747 = vpop.f32.mrf.mxu0
      %v4748 = vadd.f32 %v4663, %v4747
      %v4749 = vpop.f32.mrf.mxu0
      %4750 = vmatprep.mubr.f32.mxu0 0.0
      %4751 = vmatmul.mubr.f32.gmra.mxu0 %v4671
      %v4752 = vpop.f32.mrf.mxu0
      %v4753 = vadd.f32 %v4663, %v4752
      %v4754 = vpop.f32.mrf.mxu0
      %4755 = vmatprep.mubr.f32.mxu0 0.0
      %4756 = vmatmul.mubr.f32.gmra.mxu0 %v4674
      %v4757 = vpop.f32.mrf.mxu0
      %v4758 = vadd.f32 %v4663, %v4757
      %v4759 = vpop.f32.mrf.mxu0
      %4760 = vdwg.mxu0
      %v4761 = vadd.f32 %v2883, %v4743
      %v4762 = vadd.f32 %v2884, %v4748
      %v4763 = vadd.f32 %v2885, %v4753
      %v4764 = vadd.f32 %v2886, %v4758
      %v4765 = vsel %vm562, %v4761, 0.0
      %4766 = vadd.xlane.f32.xlu0 %v4765
      %v4767 = vpop.xlane.xlu0 %4766
      %v4768 = vsel %vm562, %v4762, 0.0
      %4769 = vadd.xlane.f32.xlu0 %v4768
      %v4770 = vpop.xlane.xlu0 %4769
      %v4771 = vsel %vm562, %v4763, 0.0
      %4772 = vadd.xlane.f32.xlu0 %v4771
      %v4773 = vpop.xlane.xlu0 %4772
      %v4774 = vsel %vm562, %v4764, 0.0
      %4775 = vadd.xlane.f32.xlu0 %v4774
      %v4776 = vpop.xlane.xlu0 %4775
      %v4777 = vmul.f32 %v4767, %v575
      %v4778 = vmul.f32 %v4770, %v575
      %v4779 = vmul.f32 %v4773, %v575
      %v4780 = vmul.f32 %v4776, %v575
      %v4781 = vsub.f32 %v4761, %v4777
      %v4782 = vsub.f32 %v4762, %v4778
      %v4783 = vsub.f32 %v4763, %v4779
      %v4784 = vsub.f32 %v4764, %v4780
      %v4785 = vmul.f32 %v4781, %v4781
      %v4786 = vmul.f32 %v4782, %v4782
      %v4787 = vmul.f32 %v4783, %v4783
      %v4788 = vmul.f32 %v4784, %v4784
      %v4789 = vsel %vm562, %v4785, 0.0
      %4790 = vadd.xlane.f32.xlu0 %v4789
      %v4791 = vpop.xlane.xlu0 %4790
      %v4792 = vsel %vm562, %v4786, 0.0
      %4793 = vadd.xlane.f32.xlu0 %v4792
      %v4794 = vpop.xlane.xlu0 %4793
      %v4795 = vsel %vm562, %v4787, 0.0
      %4796 = vadd.xlane.f32.xlu0 %v4795
      %v4797 = vpop.xlane.xlu0 %4796
      %v4798 = vsel %vm562, %v4788, 0.0
      %4799 = vadd.xlane.f32.xlu0 %v4798
      %v4800 = vpop.xlane.xlu0 %4799
      %v4801 = vmul.f32 %v4791, %v575
      %v4802 = vmul.f32 %v4794, %v575
      %v4803 = vmul.f32 %v4797, %v575
      %v4804 = vmul.f32 %v4800, %v575
      %v4805 = vadd.f32 %v4801, 1e-05
      %v4806 = vadd.f32 %v4802, 1e-05
      %v4807 = vadd.f32 %v4803, 1e-05
      %v4808 = vadd.f32 %v4804, 1e-05
      %v4809 = vrsqrt.pop %v4805
      %v4810 = vrsqrt.pop %v4806
      %v4811 = vrsqrt.pop %v4807
      %v4812 = vrsqrt.pop %v4808
      %v4813 = vmul.f32 %v4781, %v4809
      %v4814 = vmul.f32 %v4782, %v4810
      %v4815 = vmul.f32 %v4783, %v4811
      %v4816 = vmul.f32 %v4784, %v4812
      %v4817 = vlaneseq
      %v4818 = vshrl.u32 %v4817, 7
      %v4819 = vsub.s32 1, %v4818
      %v4820 = vrot.slane %v2888, %v4819
      %v4821 = vmul.f32 %v4813, %v4820
      %v4822 = vmul.f32 %v4814, %v4820
      %v4823 = vmul.f32 %v4815, %v4820
      %v4824 = vmul.f32 %v4816, %v4820
      %v4825 = vlaneseq
      %v4826 = vshrl.u32 %v4825, 7
      %v4827 = vsub.s32 2, %v4826
      %v4828 = vrot.slane %v2888, %v4827
      %v4829 = vadd.f32 %v4821, %v4828
      %v4830 = vadd.f32 %v4822, %v4828
      %v4831 = vadd.f32 %v4823, %v4828
      %v4832 = vadd.f32 %v4824, %v4828
      %s4833 = scalar_lea.vmem %s535, 32
      %v4834 = vld [vmem:[%s4833] sm:$0xff]
      %v4835 = vld [vmem:[%s4833 + $0x8] sm:$0xff]
      %v4836 = vld [vmem:[%s4833 + $0x10] sm:$0xff]
      %v4837 = vld [vmem:[%s4833 + $0x18] sm:$0xff]
      %s4838 = scalar_lea.vmem %s539, 1
      %v4839 = vld [vmem:[%s4838] sm:$0x1]
      %v4841 = vlaneseq
      %v4842 = vshrl.u32 %v4841, 7
      %v4843 = vsub.s32 0, %v4842
      %v4844 = vrot.slane %v4839, %v4843
      %v4847 = vsel %vm562, %v4829, 0
      %v4850 = vsel %vm562, %v4830, 0
      %v4853 = vsel %vm562, %v4831, 0
      %v4856 = vsel %vm562, %v4832, 0
      %4858 = vmatprep.subr.mxu0 0.0
      %4859 = vmatpush1.msra.mxu0 0.0
      %4860 = vmatprep.subr.mxu0 0.0
      %4861 = vmatpush1.msra.mxu0 0.0
      %4862 = vmatprep.subr.mxu0 0.0
      %4863 = vmatpush1.msra.mxu0 0.0
      %4864 = vmatprep.subr.mxu0 0.0
      %4865 = vmatpush1.msra.mxu0 0.0
      %4866 = vmatprep.subr.mxu0 0.0
      %4867 = vmatpush1.msra.mxu0 0.0
      %4868 = vmatprep.subr.mxu0 0.0
      %4869 = vmatpush1.msra.mxu0 0.0
      %4870 = vmatprep.subr.mxu0 0.0
      %4871 = vmatpush1.msra.mxu0 0.0
      %4872 = vmatprep.subr.mxu0 0.0
      %4873 = vmatpush1.msra.mxu0 0.0
      %4874 = vmatprep.subr.mxu0 0.0
      %4875 = vmatpush1.msra.mxu0 0.0
      %4876 = vmatprep.subr.mxu0 0.0
      %4877 = vmatpush1.msra.mxu0 0.0
      %4878 = vmatprep.subr.mxu0 0.0
      %4879 = vmatpush1.msra.mxu0 0.0
      %4880 = vmatprep.subr.mxu0 0.0
      %4881 = vmatpush1.msra.mxu0 0.0
      %4882 = vmatprep.subr.mxu0 0.0
      %4883 = vmatpush1.msra.mxu0 %v4837
      %4884 = vmatprep.subr.mxu0 0.0
      %4885 = vmatpush1.msra.mxu0 %v4836
      %4886 = vmatprep.subr.mxu0 0.0
      %4887 = vmatpush1.msra.mxu0 %v4835
      %4888 = vmatprep.subr.mxu0 0.0
      %4889 = vmatpush1.msra.mxu0 %v4834
      %4890 = vmatprep.subr.mxu0 0.0
      %4891 = vmatpush2.msra.mxu0 0.0
      %4892 = vmatprep.subr.mxu0 0.0
      %4893 = vmatpush2.msra.mxu0 0.0
      %4894 = vmatprep.subr.mxu0 0.0
      %4895 = vmatpush2.msra.mxu0 0.0
      %4896 = vmatprep.subr.mxu0 0.0
      %4897 = vmatpush2.msra.mxu0 0.0
      %4898 = vmatprep.subr.mxu0 0.0
      %4899 = vmatpush2.msra.mxu0 0.0
      %4900 = vmatprep.subr.mxu0 0.0
      %4901 = vmatpush2.msra.mxu0 0.0
      %4902 = vmatprep.subr.mxu0 0.0
      %4903 = vmatpush2.msra.mxu0 0.0
      %4904 = vmatprep.subr.mxu0 0.0
      %4905 = vmatpush2.msra.mxu0 0.0
      %4906 = vmatprep.subr.mxu0 0.0
      %4907 = vmatpush2.msra.mxu0 0.0
      %4908 = vmatprep.subr.mxu0 0.0
      %4909 = vmatpush2.msra.mxu0 0.0
      %4910 = vmatprep.subr.mxu0 0.0
      %4911 = vmatpush2.msra.mxu0 0.0
      %4912 = vmatprep.subr.mxu0 0.0
      %4913 = vmatpush2.msra.mxu0 0.0
      %4914 = vmatprep.subr.mxu0 0.0
      %4915 = vmatpush2.msra.mxu0 0.0
      %4916 = vmatprep.subr.mxu0 0.0
      %4917 = vmatpush2.msra.mxu0 0.0
      %4918 = vmatprep.subr.mxu0 0.0
      %4919 = vmatpush2.msra.mxu0 0.0
      %4920 = vmatprep.subr.mxu0 0.0
      %4921 = vmatpush2.msra.mxu0 0.0
      %4922 = vmatprep.mubr.f32.mxu0 0.0
      %4923 = vmatmul.mubr.f32.gmra.mxu0 %v4847
      %v4924 = vpop.f32.mrf.mxu0
      %v4925 = vadd.f32 %v4844, %v4924
      %v4926 = vpop.f32.mrf.mxu0
      %4927 = vmatprep.mubr.f32.mxu0 0.0
      %4928 = vmatmul.mubr.f32.gmra.mxu0 %v4850
      %v4929 = vpop.f32.mrf.mxu0
      %v4930 = vadd.f32 %v4844, %v4929
      %v4931 = vpop.f32.mrf.mxu0
      %4932 = vmatprep.mubr.f32.mxu0 0.0
      %4933 = vmatmul.mubr.f32.gmra.mxu0 %v4853
      %v4934 = vpop.f32.mrf.mxu0
      %v4935 = vadd.f32 %v4844, %v4934
      %v4936 = vpop.f32.mrf.mxu0
      %4937 = vmatprep.mubr.f32.mxu0 0.0
      %4938 = vmatmul.mubr.f32.gmra.mxu0 %v4856
      %v4939 = vpop.f32.mrf.mxu0
      %v4940 = vadd.f32 %v4844, %v4939
      %v4941 = vpop.f32.mrf.mxu0
      %4942 = vdwg.mxu0
      %v4943 = vmax.f32 %v4925, 0.0
      %v4944 = vmax.f32 %v4930, 0.0
      %v4945 = vmax.f32 %v4935, 0.0
      %v4946 = vmax.f32 %v4940, 0.0
      %s4947 = scalar_lea.vmem %s544, 64
      %v4948 = vld [vmem:[%s4947] sm:$0xff]
      %v4949 = vld [vmem:[%s4947 + $0x8] sm:$0xff]
      %v4950 = vld [vmem:[%s4947 + $0x10] sm:$0xff]
      %v4951 = vld [vmem:[%s4947 + $0x18] sm:$0xff]
      %v4952 = vld [vmem:[%s4947 + $0x20] sm:$0xff]
      %v4953 = vld [vmem:[%s4947 + $0x28] sm:$0xff]
      %v4954 = vld [vmem:[%s4947 + $0x30] sm:$0xff]
      %v4955 = vld [vmem:[%s4947 + $0x38] sm:$0xff]
      %v4956 = vlaneseq
      %v4957 = vshrl.u32 %v4956, 7
      %v4958 = vsub.s32 3, %v4957
      %v4959 = vrot.slane %v2888, %v4958
      %v4961 = vsel %vm2717, %v4943, 0
      %v4964 = vsel %vm2717, %v4944, 0
      %v4967 = vsel %vm2717, %v4945, 0
      %v4970 = vsel %vm2717, %v4946, 0
      %4972 = vmatprep.subr.mxu0 0.0
      %4973 = vmatpush1.msra.mxu0 0.0
      %4974 = vmatprep.subr.mxu0 0.0
      %4975 = vmatpush1.msra.mxu0 0.0
      %4976 = vmatprep.subr.mxu0 0.0
      %4977 = vmatpush1.msra.mxu0 0.0
      %4978 = vmatprep.subr.mxu0 0.0
      %4979 = vmatpush1.msra.mxu0 0.0
      %4980 = vmatprep.subr.mxu0 0.0
      %4981 = vmatpush1.msra.mxu0 0.0
      %4982 = vmatprep.subr.mxu0 0.0
      %4983 = vmatpush1.msra.mxu0 0.0
      %4984 = vmatprep.subr.mxu0 0.0
      %4985 = vmatpush1.msra.mxu0 0.0
      %4986 = vmatprep.subr.mxu0 0.0
      %4987 = vmatpush1.msra.mxu0 0.0
      %4988 = vmatprep.subr.mxu0 0.0
      %4989 = vmatpush1.msra.mxu0 %v4955
      %4990 = vmatprep.subr.mxu0 0.0
      %4991 = vmatpush1.msra.mxu0 %v4954
      %4992 = vmatprep.subr.mxu0 0.0
      %4993 = vmatpush1.msra.mxu0 %v4953
      %4994 = vmatprep.subr.mxu0 0.0
      %4995 = vmatpush1.msra.mxu0 %v4952
      %4996 = vmatprep.subr.mxu0 0.0
      %4997 = vmatpush1.msra.mxu0 %v4951
      %4998 = vmatprep.subr.mxu0 0.0
      %4999 = vmatpush1.msra.mxu0 %v4950
      %5000 = vmatprep.subr.mxu0 0.0
      %5001 = vmatpush1.msra.mxu0 %v4949
      %5002 = vmatprep.subr.mxu0 0.0
      %5003 = vmatpush1.msra.mxu0 %v4948
      %5004 = vmatprep.subr.mxu0 0.0
      %5005 = vmatpush2.msra.mxu0 0.0
      %5006 = vmatprep.subr.mxu0 0.0
      %5007 = vmatpush2.msra.mxu0 0.0
      %5008 = vmatprep.subr.mxu0 0.0
      %5009 = vmatpush2.msra.mxu0 0.0
      %5010 = vmatprep.subr.mxu0 0.0
      %5011 = vmatpush2.msra.mxu0 0.0
      %5012 = vmatprep.subr.mxu0 0.0
      %5013 = vmatpush2.msra.mxu0 0.0
      %5014 = vmatprep.subr.mxu0 0.0
      %5015 = vmatpush2.msra.mxu0 0.0
      %5016 = vmatprep.subr.mxu0 0.0
      %5017 = vmatpush2.msra.mxu0 0.0
      %5018 = vmatprep.subr.mxu0 0.0
      %5019 = vmatpush2.msra.mxu0 0.0
      %5020 = vmatprep.subr.mxu0 0.0
      %5021 = vmatpush2.msra.mxu0 0.0
      %5022 = vmatprep.subr.mxu0 0.0
      %5023 = vmatpush2.msra.mxu0 0.0
      %5024 = vmatprep.subr.mxu0 0.0
      %5025 = vmatpush2.msra.mxu0 0.0
      %5026 = vmatprep.subr.mxu0 0.0
      %5027 = vmatpush2.msra.mxu0 0.0
      %5028 = vmatprep.subr.mxu0 0.0
      %5029 = vmatpush2.msra.mxu0 0.0
      %5030 = vmatprep.subr.mxu0 0.0
      %5031 = vmatpush2.msra.mxu0 0.0
      %5032 = vmatprep.subr.mxu0 0.0
      %5033 = vmatpush2.msra.mxu0 0.0
      %5034 = vmatprep.subr.mxu0 0.0
      %5035 = vmatpush2.msra.mxu0 0.0
      %5036 = vmatprep.mubr.f32.mxu0 0.0
      %5037 = vmatmul.mubr.f32.gmra.mxu0 %v4961
      %v5038 = vpop.f32.mrf.mxu0
      %v5039 = vadd.f32 %v4959, %v5038
      %v5040 = vpop.f32.mrf.mxu0
      %5041 = vmatprep.mubr.f32.mxu0 0.0
      %5042 = vmatmul.mubr.f32.gmra.mxu0 %v4964
      %v5043 = vpop.f32.mrf.mxu0
      %v5044 = vadd.f32 %v4959, %v5043
      %v5045 = vpop.f32.mrf.mxu0
      %5046 = vmatprep.mubr.f32.mxu0 0.0
      %5047 = vmatmul.mubr.f32.gmra.mxu0 %v4967
      %v5048 = vpop.f32.mrf.mxu0
      %v5049 = vadd.f32 %v4959, %v5048
      %v5050 = vpop.f32.mrf.mxu0
      %5051 = vmatprep.mubr.f32.mxu0 0.0
      %5052 = vmatmul.mubr.f32.gmra.mxu0 %v4970
      %v5053 = vpop.f32.mrf.mxu0
      %v5054 = vadd.f32 %v4959, %v5053
      %v5055 = vpop.f32.mrf.mxu0
      %5056 = vdwg.mxu0
      %v5057 = vadd.f32 %v4829, %v5039
      %v5058 = vadd.f32 %v4830, %v5044
      %v5059 = vadd.f32 %v4831, %v5049
      %v5060 = vadd.f32 %v4832, %v5054
      %v5061 = vsel %vm562, %v5057, 0.0
      %5062 = vadd.xlane.f32.xlu0 %v5061
      %v5063 = vpop.xlane.xlu0 %5062
      %v5064 = vsel %vm562, %v5058, 0.0
      %5065 = vadd.xlane.f32.xlu0 %v5064
      %v5066 = vpop.xlane.xlu0 %5065
      %v5067 = vsel %vm562, %v5059, 0.0
      %5068 = vadd.xlane.f32.xlu0 %v5067
      %v5069 = vpop.xlane.xlu0 %5068
      %v5070 = vsel %vm562, %v5060, 0.0
      %5071 = vadd.xlane.f32.xlu0 %v5070
      %v5072 = vpop.xlane.xlu0 %5071
      %v5073 = vmul.f32 %v5063, %v575
      %v5074 = vmul.f32 %v5066, %v575
      %v5075 = vmul.f32 %v5069, %v575
      %v5076 = vmul.f32 %v5072, %v575
      %v5077 = vsub.f32 %v5057, %v5073
      %v5078 = vsub.f32 %v5058, %v5074
      %v5079 = vsub.f32 %v5059, %v5075
      %v5080 = vsub.f32 %v5060, %v5076
      %v5081 = vmul.f32 %v5077, %v5077
      %v5082 = vmul.f32 %v5078, %v5078
      %v5083 = vmul.f32 %v5079, %v5079
      %v5084 = vmul.f32 %v5080, %v5080
      %v5085 = vsel %vm562, %v5081, 0.0
      %5086 = vadd.xlane.f32.xlu0 %v5085
      %v5087 = vpop.xlane.xlu0 %5086
      %v5088 = vsel %vm562, %v5082, 0.0
      %5089 = vadd.xlane.f32.xlu0 %v5088
      %v5090 = vpop.xlane.xlu0 %5089
      %v5091 = vsel %vm562, %v5083, 0.0
      %5092 = vadd.xlane.f32.xlu0 %v5091
      %v5093 = vpop.xlane.xlu0 %5092
      %v5094 = vsel %vm562, %v5084, 0.0
      %5095 = vadd.xlane.f32.xlu0 %v5094
      %v5096 = vpop.xlane.xlu0 %5095
      %v5097 = vmul.f32 %v5087, %v575
      %v5098 = vmul.f32 %v5090, %v575
      %v5099 = vmul.f32 %v5093, %v575
      %v5100 = vmul.f32 %v5096, %v575
      %v5101 = vadd.f32 %v5097, 1e-05
      %v5102 = vadd.f32 %v5098, 1e-05
      %v5103 = vadd.f32 %v5099, 1e-05
      %v5104 = vadd.f32 %v5100, 1e-05
      %v5105 = vrsqrt.pop %v5101
      %v5106 = vrsqrt.pop %v5102
      %v5107 = vrsqrt.pop %v5103
      %v5108 = vrsqrt.pop %v5104
      %v5109 = vmul.f32 %v5077, %v5105
      %v5110 = vmul.f32 %v5078, %v5106
      %v5111 = vmul.f32 %v5079, %v5107
      %v5112 = vmul.f32 %v5080, %v5108
      %v5113 = vlaneseq
      %v5114 = vshrl.u32 %v5113, 7
      %v5115 = vsub.s32 4, %v5114
      %v5116 = vrot.slane %v2888, %v5115
      %v5117 = vmul.f32 %v5109, %v5116
      %v5118 = vmul.f32 %v5110, %v5116
      %v5119 = vmul.f32 %v5111, %v5116
      %v5120 = vmul.f32 %v5112, %v5116
      %v5121 = vlaneseq
      %v5122 = vshrl.u32 %v5121, 7
      %v5123 = vsub.s32 5, %v5122
      %v5124 = vrot.slane %v2888, %v5123
      %v5125 = vadd.f32 %v5117, %v5124
      %v5126 = vadd.f32 %v5118, %v5124
      %v5127 = vadd.f32 %v5119, %v5124
      %v5128 = vadd.f32 %v5120, %v5124
      %5129 = vst.msk [vmem:[%s554] sm:$0xff] %vm562, %v5125
      %5130 = vst.msk [vmem:[%s554 + $0x8] sm:$0xff] %vm562, %v5126
      %5131 = vst.msk [vmem:[%s554 + $0x10] sm:$0xff] %vm562, %v5127
      %5132 = vst.msk [vmem:[%s554 + $0x18] sm:$0xff] %vm562, %v5128
      %p5133 = scmp.lt.s32.totalorder %s22, 1
      %s5134 = scalar_select %p5133, %s22, 1
      %s5135 = smul.addr %s5134, 4
      %s5136 = smul.addr %s5135, 8
      %s5137 = scalar_lea.vmem %s11, %s5136
      // Predicated region
      $region65: #{cross_modality_encoder.1} parent=63 // pred_check
        %p5138 = pneg %p321
      $region66: #{cross_modality_encoder.1} parent=63 // pred_check_branch
        %5140 = sbr.rel (%p5138) target = $region68
      $region67: #{cross_modality_encoder.1} parent=63 // pred_region
        _
      $region68: #{cross_modality_encoder.1} parent=63 // pred_fallthru
        _
    $region64: #{cross_modality_encoder.1} parent=5 // pred_fallthru
      _
    %p5141 = scmp.le.s32.totalorder 2, %s17
    // Predicated region
    $region69: #{cross_modality_encoder.1} parent=5 // pred_check
      %p5142 = pneg %p5141
    $region70: #{cross_modality_encoder.1} parent=5 // pred_check_branch
      %5144 = sbr.rel (%p5142) target = $region72
    $region71: #{cross_modality_encoder.1} parent=5 // pred_region
      %s5145 = ssub.s32 %s17, 2
      // Predicated region
      $region73: #{cross_modality_encoder.1} parent=71 // pred_check
        %p5146 = pneg %p327
      $region74: #{cross_modality_encoder.1} parent=71 // pred_check_branch
        %5148 = sbr.rel (%p5146) target = $region76
      $region75: #{cross_modality_encoder.1} parent=71 // pred_region
        %p5149 = scmp.lt.s32.totalorder %s23, 1
        %s5150 = scalar_select %p5149, %s23, 1
        %s5151 = smul.addr %s5150, 4
        %s5152 = smul.addr %s5151, 8
        %s5153 = scalar_lea.vmem %s11, %s5152
      $region76: #{cross_modality_encoder.1} parent=71 // pred_fallthru
        _
    $region72: #{cross_modality_encoder.1} parent=5 // pred_fallthru
      _
  $region6: #{cross_modality_encoder.1} parent=0 // loop_footer
    %s21 = sadd.s32 1, %s17
  $region7: #{cross_modality_encoder.1} parent=0 // loop_footer_branch
    %16 = sbr.rel target = $region3
  $region8: #{cross_modality_encoder.1} parent=0 // loop_exit
    _

</llo_original>
